<compile_context>
chip_gen: v7x
topology: tpu7x:2x2x1
jax: 0.10.0
libtpu: 0.0.40
codegen_flags: <defaults>
</compile_context>

<pallas_src>
import functools
import math

import jax
import jax.numpy as jnp
from jax import lax
from jax.experimental import pallas as pl
from jax.experimental.pallas import tpu as pltpu


_SQRT_2_OVER_PI = math.sqrt(2.0 / math.pi)
_GELU_C1 = 0.044715 * _SQRT_2_OVER_PI
_NEG_BIG = -1e30                      # finite mask value (no -inf arithmetic)

_QK_DIMS = (((2,), (2,)), ((0,), (0,)))   # (nh,tq,hs) x (nh,tk,hs) -> (nh,tq,tk)
_PV_DIMS = (((2,), (1,)), ((0,), (0,)))   # (nh,tq,tk) x (nh,tk,hs) -> (nh,tq,hs)


def _layernorm(v, g, b, eps=1e-5):
    # f32 statistics (v5e has no bf16 VPU/EUP path).
    mu = jnp.mean(v, axis=-1, keepdims=True)
    var = jnp.mean((v - mu) ** 2, axis=-1, keepdims=True)
    return (v - mu) * lax.rsqrt(var + eps) * g + b


def _gelu_tanh(v):
    # 0.5*v*(1 + tanh(c*(v + 0.044715*v^3))), constants hoisted, v*(v*v) form.
    inner = v * (_SQRT_2_OVER_PI + _GELU_C1 * (v * v))
    return 0.5 * v * (1.0 + jnp.tanh(inner))


def block_kernel(x_ref,                     # (Tq, C)      f32   this q-tile's rows
                 ln1_g_ref, ln1_b_ref,      # (1, C)       f32
                 wk_ref, bk_ref,            # (nh, C, hs)  bf16, (nh, 1, hs) f32
                 wproj_ref, bproj_ref,      # (nh, hs, C)  bf16, (1, C) f32
                 ln2_g_ref, ln2_b_ref,      # (1, C)       f32
                 wfc_ref, bfc_ref,          # (C, 4C)      bf16, (1, 4C) f32
                 wmproj_ref, bmproj_ref,    # (4C, C)      bf16, (1, C) f32
                 out_ref,                   # (Tq, C)      f32
                 k_scr,                     # (nh, T, hs)  bf16  q=k=v slab (persists over q-tiles)
                 o_scr,                     # (nh, Tq, hs) bf16  attention output (head-major)
                 *, n_head):
    tq, C = x_ref.shape
    nh = n_head
    hs = C // nh
    qt = pl.program_id(1)
    q0 = pl.multiple_of(qt * tq, tq)

    x_tile = x_ref[...]                                           # (Tq, C) f32
    xn = _layernorm(x_tile, ln1_g_ref[0], ln1_b_ref[0])
    xn_bf = xn.astype(jnp.bfloat16)

    # ---- incremental, head-major K-slab build (only this tile's rows) ------
    # literal reference semantics: q = k = v = middle third of c_attn(ln_1(x))
    def build_step(h, carry):
        ks_h = jnp.dot(xn_bf, wk_ref[h],
                       preferred_element_type=jnp.float32) + bk_ref[h]   # (Tq, hs)
        k_scr[h, pl.ds(q0, tq), :] = ks_h.astype(jnp.bfloat16)
        return carry
    lax.fori_loop(0, nh, build_step, 0)

    # ---- causal, kv-bounded, head-batched online-softmax attention ---------
    qh = k_scr[:, pl.ds(q0, tq), :]                               # (nh, Tq, hs) bf16
    scale = 1.0 / math.sqrt(hs)
    row_g = q0 + lax.broadcasted_iota(jnp.int32, (tq, tq), 0)     # hoisted iotas
    col_l = lax.broadcasted_iota(jnp.int32, (tq, tq), 1)

    def kv_step(kv, carry):
        m, l, acc = carry
        kv0 = pl.multiple_of(kv * tq, tq)
        kh = k_scr[:, pl.ds(kv0, tq), :]                          # (nh, Tq, hs) bf16
        s = lax.dot_general(qh, kh, _QK_DIMS,
                            preferred_element_type=jnp.float32) * scale
        mask = (kv0 + col_l) <= row_g                             # all-True off-diagonal
        s = jnp.where(mask, s, _NEG_BIG)
        m_new = jnp.maximum(m, jnp.max(s, axis=-1, keepdims=True))
        alpha = jnp.exp(m - m_new)
        p = jnp.exp(s - m_new)
        l_new = alpha * l + jnp.sum(p, axis=-1, keepdims=True)
        pv = lax.dot_general(p.astype(jnp.bfloat16), kh, _PV_DIMS,
                             preferred_element_type=jnp.float32)
        return m_new, l_new, alpha * acc + pv

    init = (jnp.full((nh, tq, 1), _NEG_BIG, jnp.float32),
            jnp.zeros((nh, tq, 1), jnp.float32),
            jnp.zeros((nh, tq, hs), jnp.float32))
    _, l, acc = lax.fori_loop(0, qt + 1, kv_step, init)           # only kv <= qt
    o_scr[...] = (acc * pl.reciprocal(l, approx=True)).astype(jnp.bfloat16)

    # ---- c_proj accumulated per head (head-major weight) + residual 1 ------
    def proj_step(h, y):
        return y + jnp.dot(o_scr[h], wproj_ref[h],
                           preferred_element_type=jnp.float32)
    x1 = lax.fori_loop(0, nh, proj_step, x_tile + bproj_ref[0])   # (Tq, C) f32

    # ---- MLP + residual 2 ---------------------------------------------------
    xn2 = _layernorm(x1, ln2_g_ref[0], ln2_b_ref[0]).astype(jnp.bfloat16)
    h_pre = jnp.dot(xn2, wfc_ref[...],
                    preferred_element_type=jnp.float32) + bfc_ref[0]
    h_act = _gelu_tanh(h_pre)                                     # f32 GELU(tanh)
    m_out = jnp.dot(h_act.astype(jnp.bfloat16), wmproj_ref[...],
                    preferred_element_type=jnp.float32) + bmproj_ref[0]
    out_ref[...] = (x1 + m_out).astype(out_ref.dtype)


def _vmem_capacity_bytes():
    try:
        return int(pltpu.get_tpu_info().vmem_capacity_bytes)
    except Exception:
        return 64 * 2 ** 20            # conservative (v7x per-TC physical VMEM)


def gpt_block(x, params, n_head, q_tile=None, single_buffer_weights=True):
    B, T, C = x.shape
    assert C % n_head == 0
    hs = C // n_head
    if q_tile is None:
        q_tile = 256 if T % 256 == 0 else T
    assert T % q_tile == 0
    assert q_tile == T or q_tile % 8 == 0
    num_qt = T // q_tile

    # Only the middle ("k") third of c_attn is ever used (literal semantics).
    # Rearrange matmul weights head-major in the WRAPPER (plain XLA, one-off),
    # so the kernel only ever does leading-axis ref indexing (no lane slices).
    wk = params["wattn_t"][:, C:2 * C]                              # (C, C) bf16
    wk_hm = jnp.transpose(wk.reshape(C, n_head, hs), (1, 0, 2))     # (nh, C, hs)
    bk_hm = params["battn"][0, C:2 * C].reshape(n_head, 1, hs)      # (nh, 1, hs) f32
    wproj_hm = params["wproj_t"].reshape(n_head, hs, C)             # (nh, hs, C) bf16

    plist = [params["ln1_g"], params["ln1_b"], wk_hm, bk_hm,
             wproj_hm, params["bproj"],
             params["ln2_g"], params["ln2_b"],
             params["wfc_t"], params["bfc"],
             params["wmproj_t"], params["bmproj"]]

    def const_spec(arr):
        # Grid-invariant operand (weights/biases): full-array block, reused by
        # every grid step -> single-buffer it (default double-buffering burns
        # 2x weight VMEM for nothing; critical on v7x's 64 MiB).
        nd = arr.ndim
        idx = lambda b, q, _nd=nd: (0,) * _nd
        if single_buffer_weights:
            return pl.BlockSpec(arr.shape, idx, pipeline_mode=pl.Buffered(1))
        return pl.BlockSpec(arr.shape, idx)

    in_specs = [pl.BlockSpec((None, q_tile, C), lambda b, q: (b, q, 0))] + \
               [const_spec(p) for p in plist]
    out_spec = pl.BlockSpec((None, q_tile, C), lambda b, q: (b, q, 0))

    # ---- generation-aware scoped-VMEM budget --------------------------------
    pad128 = lambda n: -(-n // 128) * 128
    hs_p = pad128(hs)
    weight_bytes = sum(int(p.size) * p.dtype.itemsize for p in plist)
    wbuf = 1 if single_buffer_weights else 2
    resident = (wbuf * weight_bytes
                + 2 * 2 * q_tile * C * 4                 # x + out blocks (double-buffered)
                + n_head * T * hs_p * 2                  # k_scr (bf16, lane-padded)
                + n_head * q_tile * hs_p * 2             # o_scr (bf16)
                + 4 * n_head * q_tile * q_tile * 4       # scores / probs (f32)
                + 2 * n_head * q_tile * hs_p * 4         # flash accumulators (f32)
                + 3 * q_tile * 4 * C * 4                 # MLP intermediates (f32)
                + 6 * q_tile * C * 4)                    # xn / x1 / y intermediates
    cap = int(0.72 * _vmem_capacity_bytes())             # ~46 MiB on v7x, ~92 MiB v5e/v6e
    vmem_limit = int(min(cap, max(16 * 2 ** 20, int(resident * 1.3))))

    # Advisory cost estimate (attention FLOPs / exps ~halved by causal bounding).
    flops = 2 * B * T * C * (10 * C + T)
    transcendentals = B * (n_head * T * T // 2 + 4 * T * C)
    bytes_accessed = 2 * B * T * C * 4 + weight_bytes

    return pl.pallas_call(
        functools.partial(block_kernel, n_head=n_head),
        out_shape=jax.ShapeDtypeStruct((B, T, C), jnp.float32),
        grid_spec=pltpu.PrefetchScalarGridSpec(
            num_scalar_prefetch=0,
            grid=(B, num_qt),
            in_specs=in_specs,
            out_specs=out_spec,
            scratch_shapes=[pltpu.VMEM((n_head, T, hs), jnp.bfloat16),       # k_scr
                            pltpu.VMEM((n_head, q_tile, hs), jnp.bfloat16)]  # o_scr
        ),
        compiler_params=pltpu.CompilerParams(
            # q axis is "arbitrary": the incremental K-slab build makes tile qt
            # depend on tiles < qt of the same batch element.
            dimension_semantics=("parallel", "arbitrary"),
            vmem_limit_bytes=vmem_limit),
        cost_estimate=pl.CostEstimate(flops=int(flops),
                                      transcendentals=int(transcendentals),
                                      bytes_accessed=int(bytes_accessed)),
    )(x, *plist)


def init_params(key, C):
    ks = jax.random.split(key, 8)
    wf = lambda k, shape: 0.02 * jax.random.normal(k, shape, jnp.float32)
    wb = lambda k, shape: wf(k, shape).astype(jnp.bfloat16)   # matmul weights stored bf16
    return {
        "ln1_g": jnp.ones((1, C), jnp.float32),
        "ln1_b": jnp.zeros((1, C), jnp.float32),
        # Linear weights pre-transposed to (in, out) so the kernel does x @ W.
        "wattn_t":  wb(ks[0], (C, 3 * C)),
        "battn":    wf(ks[1], (1, 3 * C)),
        "wproj_t":  wb(ks[2], (C, C)),
        "bproj":    wf(ks[3], (1, C)),
        "ln2_g": jnp.ones((1, C), jnp.float32),
        "ln2_b": jnp.zeros((1, C), jnp.float32),
        "wfc_t":    wb(ks[4], (C, 4 * C)),
        "bfc":      wf(ks[5], (1, 4 * C)),
        "wmproj_t": wb(ks[6], (4 * C, C)),
        "bmproj":   wf(ks[7], (1, C)),
    }


def block_ref(x, params, n_head):
    """Pure-JAX f32 reference with the module's literal semantics (q = k = v)."""
    B, T, C = x.shape
    hs = C // n_head
    f32 = lambda a: a.astype(jnp.float32)

    xn = _layernorm(x, params["ln1_g"], params["ln1_b"])
    qkv = xn @ f32(params["wattn_t"]) + params["battn"]
    k = qkv[..., C:2 * C]                                      # q = k = v (reference typo)
    k = k.reshape(B, T, n_head, hs).transpose(0, 2, 1, 3)      # (B, nh, T, hs)
    att = (k @ jnp.swapaxes(k, -1, -2)) * (1.0 / math.sqrt(hs))
    mask = jnp.tril(jnp.ones((T, T), bool))
    att = jnp.where(mask, att, -jnp.inf)
    att = jax.nn.softmax(att, axis=-1)
    y = (att @ k).transpose(0, 2, 1, 3).reshape(B, T, C)
    y = y @ f32(params["wproj_t"]) + params["bproj"]
    x = x + y
    xn2 = _layernorm(x, params["ln2_g"], params["ln2_b"])
    h = _gelu_tanh(xn2 @ f32(params["wfc_t"]) + params["bfc"])
    m = h @ f32(params["wmproj_t"]) + params["bmproj"]
    return x + m


if __name__ == "__main__":
    B, T, C, n_head = 2, 8, 32, 4          # block_size >= T; n_embd % n_head == 0
    key = jax.random.PRNGKey(0)
    kx, kp = jax.random.split(key)
    x = jax.random.normal(kx, (B, T, C), jnp.float32)
    params = init_params(kp, C)

    try:
        out = gpt_block(x, params, n_head)
    except Exception:
        # pipeline_mode / pl.Buffered is a newer BlockSpec knob; fall back to the
        # default (double-buffered) weight specs if this jax build rejects it.
        out = gpt_block(x, params, n_head, single_buffer_weights=False)
    out = jax.block_until_ready(out)

    assert out.shape == (B, T, C) and out.dtype == jnp.float32
    ref = block_ref(x, params, n_head)
    max_err = float(jnp.max(jnp.abs(out - ref)))
    assert max_err < 5e-2, f"kernel mismatch vs reference: max |err| = {max_err}"
    print("KERNEL_OK")
</pallas_src>

<mosaic_0001>
module attributes {stable_mosaic.version = 11 : i64} {
  func.func @block_kernel(%arg0: i32, %arg1: i32, %arg2: memref<1x8x32xf32, #tpu.memory_space<vmem>>, %arg3: memref<1x32xf32, #tpu.memory_space<vmem>>, %arg4: memref<1x32xf32, #tpu.memory_space<vmem>>, %arg5: memref<4x32x8xbf16, #tpu.memory_space<vmem>>, %arg6: memref<4x1x8xf32, #tpu.memory_space<vmem>>, %arg7: memref<4x8x32xbf16, #tpu.memory_space<vmem>>, %arg8: memref<1x32xf32, #tpu.memory_space<vmem>>, %arg9: memref<1x32xf32, #tpu.memory_space<vmem>>, %arg10: memref<1x32xf32, #tpu.memory_space<vmem>>, %arg11: memref<32x128xbf16, #tpu.memory_space<vmem>>, %arg12: memref<1x128xf32, #tpu.memory_space<vmem>>, %arg13: memref<128x32xbf16, #tpu.memory_space<vmem>>, %arg14: memref<1x32xf32, #tpu.memory_space<vmem>>, %arg15: memref<1x8x32xf32, #tpu.memory_space<vmem>>, %arg16: memref<4x8x8xbf16, #tpu.memory_space<vmem>>, %arg17: memref<4x8x8xbf16, #tpu.memory_space<vmem>>) attributes {dimension_semantics = [#tpu.dimension_semantics<parallel>, #tpu.dimension_semantics<arbitrary>], iteration_bounds = array<i64: 2, 1>, scalar_prefetch = 0 : i64, scratch_operands = 2 : i64, tpu.core_type = #tpu.core_type<tc>, window_params = [{transform_indices = @transform_0, window_bounds = array<i64: 1, 8, 32>}, {pipeline_mode = #tpu.pipeline_mode<synchronous>, transform_indices = @transform_1, window_bounds = array<i64: 1, 32>}, {pipeline_mode = #tpu.pipeline_mode<synchronous>, transform_indices = @transform_2, window_bounds = array<i64: 1, 32>}, {pipeline_mode = #tpu.pipeline_mode<synchronous>, transform_indices = @transform_3, window_bounds = array<i64: 4, 32, 8>}, {pipeline_mode = #tpu.pipeline_mode<synchronous>, transform_indices = @transform_4, window_bounds = array<i64: 4, 1, 8>}, {pipeline_mode = #tpu.pipeline_mode<synchronous>, transform_indices = @transform_5, window_bounds = array<i64: 4, 8, 32>}, {pipeline_mode = #tpu.pipeline_mode<synchronous>, transform_indices = @transform_6, window_bounds = array<i64: 1, 32>}, {pipeline_mode = #tpu.pipeline_mode<synchronous>, transform_indices = @transform_7, window_bounds = array<i64: 1, 32>}, {pipeline_mode = #tpu.pipeline_mode<synchronous>, transform_indices = @transform_8, window_bounds = array<i64: 1, 32>}, {pipeline_mode = #tpu.pipeline_mode<synchronous>, transform_indices = @transform_9, window_bounds = array<i64: 32, 128>}, {pipeline_mode = #tpu.pipeline_mode<synchronous>, transform_indices = @transform_10, window_bounds = array<i64: 1, 128>}, {pipeline_mode = #tpu.pipeline_mode<synchronous>, transform_indices = @transform_11, window_bounds = array<i64: 128, 32>}, {pipeline_mode = #tpu.pipeline_mode<synchronous>, transform_indices = @transform_12, window_bounds = array<i64: 1, 32>}, {transform_indices = @transform_13, window_bounds = array<i64: 1, 8, 32>}]} {
    %c8_i32 = arith.constant 8 : i32
    %0 = arith.muli %arg1, %c8_i32 : i32
    %1 = tpu.assume_multiple %0, 8 : i32
    %c0 = arith.constant 0 : index
    %c0_0 = arith.constant 0 : index
    %c0_1 = arith.constant 0 : index
    %2 = vector.load %arg2[%c0, %c0_0, %c0_1] : memref<1x8x32xf32, #tpu.memory_space<vmem>>, vector<1x8x32xf32>
    %3 = vector.shape_cast %2 : vector<1x8x32xf32> to vector<8x32xf32>
    %c0_2 = arith.constant 0 : index
    %c0_3 = arith.constant 0 : index
    %4 = vector.load %arg3[%c0_2, %c0_3] : memref<1x32xf32, #tpu.memory_space<vmem>>, vector<1x32xf32>
    %5 = vector.shape_cast %4 : vector<1x32xf32> to vector<32xf32>
    %c0_4 = arith.constant 0 : index
    %c0_5 = arith.constant 0 : index
    %6 = vector.load %arg4[%c0_4, %c0_5] : memref<1x32xf32, #tpu.memory_space<vmem>>, vector<1x32xf32>
    %7 = vector.shape_cast %6 : vector<1x32xf32> to vector<32xf32>
    %cst = arith.constant dense<0.000000e+00> : vector<8xf32>
    %8 = vector.multi_reduction <add>, %3, %cst [1] : vector<8x32xf32> to vector<8xf32>
    %9 = vector.shape_cast %8 : vector<8xf32> to vector<8x1xf32>
    %cst_6 = arith.constant 3.200000e+01 : f32
    %10 = vector.broadcast %cst_6 : f32 to vector<8x1xf32>
    %11 = arith.divf %9, %10 : vector<8x1xf32>
    %12 = vector.broadcast %11 : vector<8x1xf32> to vector<8x32xf32>
    %13 = arith.subf %3, %12 : vector<8x32xf32>
    %14 = arith.mulf %13, %13 : vector<8x32xf32>
    %cst_7 = arith.constant dense<0.000000e+00> : vector<8xf32>
    %15 = vector.multi_reduction <add>, %14, %cst_7 [1] : vector<8x32xf32> to vector<8xf32>
    %16 = vector.shape_cast %15 : vector<8xf32> to vector<8x1xf32>
    %cst_8 = arith.constant 3.200000e+01 : f32
    %17 = vector.broadcast %cst_8 : f32 to vector<8x1xf32>
    %18 = arith.divf %16, %17 : vector<8x1xf32>
    %19 = vector.broadcast %11 : vector<8x1xf32> to vector<8x32xf32>
    %20 = arith.subf %3, %19 : vector<8x32xf32>
    %cst_9 = arith.constant 9.99999974E-6 : f32
    %21 = vector.broadcast %cst_9 : f32 to vector<8x1xf32>
    %22 = arith.addf %18, %21 : vector<8x1xf32>
    %23 = math.rsqrt %22 : vector<8x1xf32>
    %24 = vector.broadcast %23 : vector<8x1xf32> to vector<8x32xf32>
    %25 = arith.mulf %20, %24 : vector<8x32xf32>
    %26 = vector.shape_cast %5 : vector<32xf32> to vector<1x32xf32>
    %27 = vector.broadcast %26 : vector<1x32xf32> to vector<8x32xf32>
    %28 = arith.mulf %25, %27 : vector<8x32xf32>
    %29 = vector.shape_cast %7 : vector<32xf32> to vector<1x32xf32>
    %30 = vector.broadcast %29 : vector<1x32xf32> to vector<8x32xf32>
    %31 = arith.addf %28, %30 : vector<8x32xf32>
    %32 = arith.truncf %31 : vector<8x32xf32> to vector<8x32xbf16>
    %c0_i32 = arith.constant 0 : i32
    %c4_i32 = arith.constant 4 : i32
    %33 = arith.addi %c0_i32, %c4_i32 : i32
    %c1_i32 = arith.constant 1 : i32
    scf.for %arg18 = %c0_i32 to %33 step %c1_i32  : i32 {
      %119 = arith.index_cast %arg18 : i32 to index
      %c0_54 = arith.constant 0 : index
      %c0_55 = arith.constant 0 : index
      %120 = vector.load %arg5[%119, %c0_54, %c0_55] : memref<4x32x8xbf16, #tpu.memory_space<vmem>>, vector<1x32x8xbf16>
      %121 = vector.shape_cast %120 : vector<1x32x8xbf16> to vector<32x8xbf16>
      %cst_56 = arith.constant dense<0.000000e+00> : vector<8x8xf32>
      %122 = tpu.matmul %32, %121, %cst_56 {dimension_numbers = #tpu.dot_dimension_numbers<[1], [0], [0], [1], [0, 0, 1, 1], [], []>} : vector<8x32xbf16>, vector<32x8xbf16>, vector<8x8xf32> -> vector<8x8xf32>
      %123 = arith.index_cast %arg18 : i32 to index
      %c0_57 = arith.constant 0 : index
      %c0_58 = arith.constant 0 : index
      %124 = vector.load %arg6[%123, %c0_57, %c0_58] : memref<4x1x8xf32, #tpu.memory_space<vmem>>, vector<1x1x8xf32>
      %125 = vector.shape_cast %124 : vector<1x1x8xf32> to vector<1x8xf32>
      %126 = vector.broadcast %125 : vector<1x8xf32> to vector<8x8xf32>
      %127 = arith.addf %122, %126 : vector<8x8xf32>
      %128 = arith.truncf %127 : vector<8x8xf32> to vector<8x8xbf16>
      %129 = arith.index_cast %arg18 : i32 to index
      %130 = arith.index_cast %1 : i32 to index
      %c0_59 = arith.constant 0 : index
      %131 = vector.load %arg16[%129, %130, %c0_59] : memref<4x8x8xbf16, #tpu.memory_space<vmem>>, vector<1x8x8xbf16>
      %132 = vector.shape_cast %131 : vector<1x8x8xbf16> to vector<8x8xbf16>
      %133 = vector.shape_cast %128 : vector<8x8xbf16> to vector<1x8x8xbf16>
      tpu.vector_store %arg16[%129, %130, %c0_59], %133 {strides = array<i32>} : memref<4x8x8xbf16, #tpu.memory_space<vmem>>, vector<1x8x8xbf16>,
    }
    %c4_i32_10 = arith.constant 4 : i32
    %c0_11 = arith.constant 0 : index
    %34 = arith.index_cast %1 : i32 to index
    %c0_12 = arith.constant 0 : index
    %35 = vector.load %arg16[%c0_11, %34, %c0_12] : memref<4x8x8xbf16, #tpu.memory_space<vmem>>, vector<4x8x8xbf16>
    %36 = tpu.iota {dimensions = array<i32: 0>} : vector<8x8xi32>
    %37 = vector.broadcast %1 : i32 to vector<8x8xi32>
    %38 = arith.addi %37, %36 : vector<8x8xi32>
    %39 = tpu.iota {dimensions = array<i32: 1>} : vector<8x8xi32>
    %cst_13 = arith.constant -1.000000e+30 : f32
    %40 = vector.broadcast %cst_13 : f32 to vector<4x8x1xf32>
    %cst_14 = arith.constant 0.000000e+00 : f32
    %41 = vector.broadcast %cst_14 : f32 to vector<4x8x1xf32>
    %cst_15 = arith.constant 0.000000e+00 : f32
    %42 = vector.broadcast %cst_15 : f32 to vector<4x8x8xf32>
    %c1_i32_16 = arith.constant 1 : i32
    %43 = arith.addi %arg1, %c1_i32_16 : i32
    %c0_i32_17 = arith.constant 0 : i32
    %44 = arith.subi %43, %c0_i32_17 : i32
    %45 = arith.addi %c0_i32_17, %44 : i32
    %c1_i32_18 = arith.constant 1 : i32
    %46:3 = scf.for %arg18 = %c0_i32_17 to %45 step %c1_i32_18 iter_args(%arg19 = %40, %arg20 = %41, %arg21 = %42) -> (vector<4x8x1xf32>, vector<4x8x1xf32>, vector<4x8x8xf32>)  : i32 {
      %c8_i32_54 = arith.constant 8 : i32
      %119 = arith.muli %arg18, %c8_i32_54 : i32
      %120 = tpu.assume_multiple %119, 8 : i32
      %c0_55 = arith.constant 0 : index
      %121 = arith.index_cast %120 : i32 to index
      %c0_56 = arith.constant 0 : index
      %122 = vector.load %arg16[%c0_55, %121, %c0_56] : memref<4x8x8xbf16, #tpu.memory_space<vmem>>, vector<4x8x8xbf16>
      %cst_57 = arith.constant dense<0.000000e+00> : vector<4x8x8xf32>
      %123 = tpu.matmul %35, %122, %cst_57 {dimension_numbers = #tpu.dot_dimension_numbers<[2], [2], [1], [1], [0, 0, 0, 1, 1, 1], [0], [0]>} : vector<4x8x8xbf16>, vector<4x8x8xbf16>, vector<4x8x8xf32> -> vector<4x8x8xf32>
      %cst_58 = arith.constant 0.353553385 : f32
      %124 = vector.broadcast %cst_58 : f32 to vector<4x8x8xf32>
      %125 = arith.mulf %123, %124 : vector<4x8x8xf32>
      %126 = vector.broadcast %120 : i32 to vector<8x8xi32>
      %127 = arith.addi %126, %39 : vector<8x8xi32>
      %128 = arith.cmpi sle, %127, %38 : vector<8x8xi32>
      %cst_59 = arith.constant -1.000000e+30 : f32
      %129 = vector.shape_cast %128 : vector<8x8xi1> to vector<1x8x8xi1>
      %130 = vector.broadcast %129 : vector<1x8x8xi1> to vector<4x8x8xi1>
      %131 = vector.broadcast %cst_59 : f32 to vector<4x8x8xf32>
      %132 = arith.select %130, %125, %131 : vector<4x8x8xi1>, vector<4x8x8xf32>
      %cst_60 = arith.constant dense<0xFF800000> : vector<4x8xf32>
      %133 = vector.multi_reduction <maximumf>, %132, %cst_60 [2] : vector<4x8x8xf32> to vector<4x8xf32>
      %134 = vector.shape_cast %133 : vector<4x8xf32> to vector<4x8x1xf32>
      %135 = arith.maximumf %arg19, %134 : vector<4x8x1xf32>
      %136 = arith.subf %arg19, %135 : vector<4x8x1xf32>
      %137 = math.exp %136 : vector<4x8x1xf32>
      %138 = vector.broadcast %135 : vector<4x8x1xf32> to vector<4x8x8xf32>
      %139 = arith.subf %132, %138 : vector<4x8x8xf32>
      %140 = math.exp %139 : vector<4x8x8xf32>
      %141 = arith.mulf %137, %arg20 : vector<4x8x1xf32>
      %cst_61 = arith.constant dense<0.000000e+00> : vector<4x8xf32>
      %142 = vector.multi_reduction <add>, %140, %cst_61 [2] : vector<4x8x8xf32> to vector<4x8xf32>
      %143 = vector.shape_cast %142 : vector<4x8xf32> to vector<4x8x1xf32>
      %144 = arith.addf %141, %143 : vector<4x8x1xf32>
      %145 = arith.truncf %140 : vector<4x8x8xf32> to vector<4x8x8xbf16>
      %cst_62 = arith.constant dense<0.000000e+00> : vector<4x8x8xf32>
      %146 = tpu.matmul %145, %122, %cst_62 {dimension_numbers = #tpu.dot_dimension_numbers<[2], [1], [1], [2], [0, 0, 0, 1, 1, 2], [0], [0]>} : vector<4x8x8xbf16>, vector<4x8x8xbf16>, vector<4x8x8xf32> -> vector<4x8x8xf32>
      %147 = vector.broadcast %137 : vector<4x8x1xf32> to vector<4x8x8xf32>
      %148 = arith.mulf %147, %arg21 : vector<4x8x8xf32>
      %149 = arith.addf %148, %146 : vector<4x8x8xf32>
      scf.yield %135, %144, %149 : vector<4x8x1xf32>, vector<4x8x1xf32>, vector<4x8x8xf32>
    }
    %47 = tpu.reciprocal %46#1 {approx = true} : vector<4x8x1xf32> -> vector<4x8x1xf32>
    %48 = vector.broadcast %47 : vector<4x8x1xf32> to vector<4x8x8xf32>
    %49 = arith.mulf %46#2, %48 : vector<4x8x8xf32>
    %50 = arith.truncf %49 : vector<4x8x8xf32> to vector<4x8x8xbf16>
    %c0_19 = arith.constant 0 : index
    %c0_20 = arith.constant 0 : index
    %c0_21 = arith.constant 0 : index
    %51 = vector.load %arg17[%c0_19, %c0_20, %c0_21] : memref<4x8x8xbf16, #tpu.memory_space<vmem>>, vector<4x8x8xbf16>
    tpu.vector_store %arg17[%c0_19, %c0_20, %c0_21], %50 {strides = array<i32>} : memref<4x8x8xbf16, #tpu.memory_space<vmem>>, vector<4x8x8xbf16>,
    %c0_22 = arith.constant 0 : index
    %c0_23 = arith.constant 0 : index
    %52 = vector.load %arg8[%c0_22, %c0_23] : memref<1x32xf32, #tpu.memory_space<vmem>>, vector<1x32xf32>
    %53 = vector.shape_cast %52 : vector<1x32xf32> to vector<32xf32>
    %54 = vector.shape_cast %53 : vector<32xf32> to vector<1x32xf32>
    %55 = vector.broadcast %54 : vector<1x32xf32> to vector<8x32xf32>
    %56 = arith.addf %3, %55 : vector<8x32xf32>
    %c0_i32_24 = arith.constant 0 : i32
    %c4_i32_25 = arith.constant 4 : i32
    %57 = arith.addi %c0_i32_24, %c4_i32_25 : i32
    %c1_i32_26 = arith.constant 1 : i32
    %58 = scf.for %arg18 = %c0_i32_24 to %57 step %c1_i32_26 iter_args(%arg19 = %56) -> (vector<8x32xf32>)  : i32 {
      %119 = arith.index_cast %arg18 : i32 to index
      %c0_54 = arith.constant 0 : index
      %c0_55 = arith.constant 0 : index
      %120 = vector.load %arg17[%119, %c0_54, %c0_55] : memref<4x8x8xbf16, #tpu.memory_space<vmem>>, vector<1x8x8xbf16>
      %121 = vector.shape_cast %120 : vector<1x8x8xbf16> to vector<8x8xbf16>
      %122 = arith.index_cast %arg18 : i32 to index
      %c0_56 = arith.constant 0 : index
      %c0_57 = arith.constant 0 : index
      %123 = vector.load %arg7[%122, %c0_56, %c0_57] : memref<4x8x32xbf16, #tpu.memory_space<vmem>>, vector<1x8x32xbf16>
      %124 = vector.shape_cast %123 : vector<1x8x32xbf16> to vector<8x32xbf16>
      %cst_58 = arith.constant dense<0.000000e+00> : vector<8x32xf32>
      %125 = tpu.matmul %121, %124, %cst_58 {dimension_numbers = #tpu.dot_dimension_numbers<[1], [0], [0], [1], [0, 0, 1, 1], [], []>} : vector<8x8xbf16>, vector<8x32xbf16>, vector<8x32xf32> -> vector<8x32xf32>
      %126 = arith.addf %arg19, %125 : vector<8x32xf32>
      scf.yield %126 : vector<8x32xf32>
    }
    %c4_i32_27 = arith.constant 4 : i32
    %c0_28 = arith.constant 0 : index
    %c0_29 = arith.constant 0 : index
    %59 = vector.load %arg9[%c0_28, %c0_29] : memref<1x32xf32, #tpu.memory_space<vmem>>, vector<1x32xf32>
    %60 = vector.shape_cast %59 : vector<1x32xf32> to vector<32xf32>
    %c0_30 = arith.constant 0 : index
    %c0_31 = arith.constant 0 : index
    %61 = vector.load %arg10[%c0_30, %c0_31] : memref<1x32xf32, #tpu.memory_space<vmem>>, vector<1x32xf32>
    %62 = vector.shape_cast %61 : vector<1x32xf32> to vector<32xf32>
    %cst_32 = arith.constant dense<0.000000e+00> : vector<8xf32>
    %63 = vector.multi_reduction <add>, %58, %cst_32 [1] : vector<8x32xf32> to vector<8xf32>
    %64 = vector.shape_cast %63 : vector<8xf32> to vector<8x1xf32>
    %cst_33 = arith.constant 3.200000e+01 : f32
    %65 = vector.broadcast %cst_33 : f32 to vector<8x1xf32>
    %66 = arith.divf %64, %65 : vector<8x1xf32>
    %67 = vector.broadcast %66 : vector<8x1xf32> to vector<8x32xf32>
    %68 = arith.subf %58, %67 : vector<8x32xf32>
    %69 = arith.mulf %68, %68 : vector<8x32xf32>
    %cst_34 = arith.constant dense<0.000000e+00> : vector<8xf32>
    %70 = vector.multi_reduction <add>, %69, %cst_34 [1] : vector<8x32xf32> to vector<8xf32>
    %71 = vector.shape_cast %70 : vector<8xf32> to vector<8x1xf32>
    %cst_35 = arith.constant 3.200000e+01 : f32
    %72 = vector.broadcast %cst_35 : f32 to vector<8x1xf32>
    %73 = arith.divf %71, %72 : vector<8x1xf32>
    %74 = vector.broadcast %66 : vector<8x1xf32> to vector<8x32xf32>
    %75 = arith.subf %58, %74 : vector<8x32xf32>
    %cst_36 = arith.constant 9.99999974E-6 : f32
    %76 = vector.broadcast %cst_36 : f32 to vector<8x1xf32>
    %77 = arith.addf %73, %76 : vector<8x1xf32>
    %78 = math.rsqrt %77 : vector<8x1xf32>
    %79 = vector.broadcast %78 : vector<8x1xf32> to vector<8x32xf32>
    %80 = arith.mulf %75, %79 : vector<8x32xf32>
    %81 = vector.shape_cast %60 : vector<32xf32> to vector<1x32xf32>
    %82 = vector.broadcast %81 : vector<1x32xf32> to vector<8x32xf32>
    %83 = arith.mulf %80, %82 : vector<8x32xf32>
    %84 = vector.shape_cast %62 : vector<32xf32> to vector<1x32xf32>
    %85 = vector.broadcast %84 : vector<1x32xf32> to vector<8x32xf32>
    %86 = arith.addf %83, %85 : vector<8x32xf32>
    %87 = arith.truncf %86 : vector<8x32xf32> to vector<8x32xbf16>
    %c0_37 = arith.constant 0 : index
    %c0_38 = arith.constant 0 : index
    %88 = vector.load %arg11[%c0_37, %c0_38] : memref<32x128xbf16, #tpu.memory_space<vmem>>, vector<32x128xbf16>
    %cst_39 = arith.constant dense<0.000000e+00> : vector<8x128xf32>
    %89 = tpu.matmul %87, %88, %cst_39 {dimension_numbers = #tpu.dot_dimension_numbers<[1], [0], [0], [1], [0, 0, 1, 1], [], []>} : vector<8x32xbf16>, vector<32x128xbf16>, vector<8x128xf32> -> vector<8x128xf32>
    %c0_40 = arith.constant 0 : index
    %c0_41 = arith.constant 0 : index
    %90 = vector.load %arg12[%c0_40, %c0_41] : memref<1x128xf32, #tpu.memory_space<vmem>>, vector<1x128xf32>
    %91 = vector.shape_cast %90 : vector<1x128xf32> to vector<128xf32>
    %92 = vector.shape_cast %91 : vector<128xf32> to vector<1x128xf32>
    %93 = vector.broadcast %92 : vector<1x128xf32> to vector<8x128xf32>
    %94 = arith.addf %89, %93 : vector<8x128xf32>
    %95 = arith.mulf %94, %94 : vector<8x128xf32>
    %cst_42 = arith.constant 0.0356774069 : f32
    %96 = vector.broadcast %cst_42 : f32 to vector<8x128xf32>
    %97 = arith.mulf %96, %95 : vector<8x128xf32>
    %cst_43 = arith.constant 0.797884583 : f32
    %98 = vector.broadcast %cst_43 : f32 to vector<8x128xf32>
    %99 = arith.addf %98, %97 : vector<8x128xf32>
    %100 = arith.mulf %94, %99 : vector<8x128xf32>
    %cst_44 = arith.constant 5.000000e-01 : f32
    %101 = vector.broadcast %cst_44 : f32 to vector<8x128xf32>
    %102 = arith.mulf %101, %94 : vector<8x128xf32>
    %103 = math.tanh %100 : vector<8x128xf32>
    %cst_45 = arith.constant 1.000000e+00 : f32
    %104 = vector.broadcast %cst_45 : f32 to vector<8x128xf32>
    %105 = arith.addf %104, %103 : vector<8x128xf32>
    %106 = arith.mulf %102, %105 : vector<8x128xf32>
    %107 = arith.truncf %106 : vector<8x128xf32> to vector<8x128xbf16>
    %c0_46 = arith.constant 0 : index
    %c0_47 = arith.constant 0 : index
    %108 = vector.load %arg13[%c0_46, %c0_47] : memref<128x32xbf16, #tpu.memory_space<vmem>>, vector<128x32xbf16>
    %cst_48 = arith.constant dense<0.000000e+00> : vector<8x32xf32>
    %109 = tpu.matmul %107, %108, %cst_48 {dimension_numbers = #tpu.dot_dimension_numbers<[1], [0], [0], [1], [0, 0, 1, 1], [], []>} : vector<8x128xbf16>, vector<128x32xbf16>, vector<8x32xf32> -> vector<8x32xf32>
    %c0_49 = arith.constant 0 : index
    %c0_50 = arith.constant 0 : index
    %110 = vector.load %arg14[%c0_49, %c0_50] : memref<1x32xf32, #tpu.memory_space<vmem>>, vector<1x32xf32>
    %111 = vector.shape_cast %110 : vector<1x32xf32> to vector<32xf32>
    %112 = vector.shape_cast %111 : vector<32xf32> to vector<1x32xf32>
    %113 = vector.broadcast %112 : vector<1x32xf32> to vector<8x32xf32>
    %114 = arith.addf %109, %113 : vector<8x32xf32>
    %115 = arith.addf %58, %114 : vector<8x32xf32>
    %c0_51 = arith.constant 0 : index
    %c0_52 = arith.constant 0 : index
    %c0_53 = arith.constant 0 : index
    %116 = vector.load %arg15[%c0_51, %c0_52, %c0_53] : memref<1x8x32xf32, #tpu.memory_space<vmem>>, vector<1x8x32xf32>
    %117 = vector.shape_cast %116 : vector<1x8x32xf32> to vector<8x32xf32>
    %118 = vector.shape_cast %115 : vector<8x32xf32> to vector<1x8x32xf32>
    tpu.vector_store %arg15[%c0_51, %c0_52, %c0_53], %118 {strides = array<i32>} : memref<1x8x32xf32, #tpu.memory_space<vmem>>, vector<1x8x32xf32>,
    return
  }
  func.func @transform_0(%arg0: i32, %arg1: i32) -> (i32, i32, i32) {
    %c0_i32 = arith.constant 0 : i32
    %c0_i32_0 = arith.constant 0 : i32
    return %arg0, %arg1, %c0_i32 : i32, i32, i32
  }
  func.func @transform_1(%arg0: i32, %arg1: i32) -> (i32, i32) {
    %c0_i32 = arith.constant 0 : i32
    %c0_i32_0 = arith.constant 0 : i32
    %c0_i32_1 = arith.constant 0 : i32
    return %c0_i32, %c0_i32_0 : i32, i32
  }
  func.func @transform_2(%arg0: i32, %arg1: i32) -> (i32, i32) {
    %c0_i32 = arith.constant 0 : i32
    %c0_i32_0 = arith.constant 0 : i32
    %c0_i32_1 = arith.constant 0 : i32
    return %c0_i32, %c0_i32_0 : i32, i32
  }
  func.func @transform_3(%arg0: i32, %arg1: i32) -> (i32, i32, i32) {
    %c0_i32 = arith.constant 0 : i32
    %c0_i32_0 = arith.constant 0 : i32
    %c0_i32_1 = arith.constant 0 : i32
    %c0_i32_2 = arith.constant 0 : i32
    return %c0_i32, %c0_i32_0, %c0_i32_1 : i32, i32, i32
  }
  func.func @transform_4(%arg0: i32, %arg1: i32) -> (i32, i32, i32) {
    %c0_i32 = arith.constant 0 : i32
    %c0_i32_0 = arith.constant 0 : i32
    %c0_i32_1 = arith.constant 0 : i32
    %c0_i32_2 = arith.constant 0 : i32
    return %c0_i32, %c0_i32_0, %c0_i32_1 : i32, i32, i32
  }
  func.func @transform_5(%arg0: i32, %arg1: i32) -> (i32, i32, i32) {
    %c0_i32 = arith.constant 0 : i32
    %c0_i32_0 = arith.constant 0 : i32
    %c0_i32_1 = arith.constant 0 : i32
    %c0_i32_2 = arith.constant 0 : i32
    return %c0_i32, %c0_i32_0, %c0_i32_1 : i32, i32, i32
  }
  func.func @transform_6(%arg0: i32, %arg1: i32) -> (i32, i32) {
    %c0_i32 = arith.constant 0 : i32
    %c0_i32_0 = arith.constant 0 : i32
    %c0_i32_1 = arith.constant 0 : i32
    return %c0_i32, %c0_i32_0 : i32, i32
  }
  func.func @transform_7(%arg0: i32, %arg1: i32) -> (i32, i32) {
    %c0_i32 = arith.constant 0 : i32
    %c0_i32_0 = arith.constant 0 : i32
    %c0_i32_1 = arith.constant 0 : i32
    return %c0_i32, %c0_i32_0 : i32, i32
  }
  func.func @transform_8(%arg0: i32, %arg1: i32) -> (i32, i32) {
    %c0_i32 = arith.constant 0 : i32
    %c0_i32_0 = arith.constant 0 : i32
    %c0_i32_1 = arith.constant 0 : i32
    return %c0_i32, %c0_i32_0 : i32, i32
  }
  func.func @transform_9(%arg0: i32, %arg1: i32) -> (i32, i32) {
    %c0_i32 = arith.constant 0 : i32
    %c0_i32_0 = arith.constant 0 : i32
    %c0_i32_1 = arith.constant 0 : i32
    return %c0_i32, %c0_i32_0 : i32, i32
  }
  func.func @transform_10(%arg0: i32, %arg1: i32) -> (i32, i32) {
    %c0_i32 = arith.constant 0 : i32
    %c0_i32_0 = arith.constant 0 : i32
    %c0_i32_1 = arith.constant 0 : i32
    return %c0_i32, %c0_i32_0 : i32, i32
  }
  func.func @transform_11(%arg0: i32, %arg1: i32) -> (i32, i32) {
    %c0_i32 = arith.constant 0 : i32
    %c0_i32_0 = arith.constant 0 : i32
    %c0_i32_1 = arith.constant 0 : i32
    return %c0_i32, %c0_i32_0 : i32, i32
  }
  func.func @transform_12(%arg0: i32, %arg1: i32) -> (i32, i32) {
    %c0_i32 = arith.constant 0 : i32
    %c0_i32_0 = arith.constant 0 : i32
    %c0_i32_1 = arith.constant 0 : i32
    return %c0_i32, %c0_i32_0 : i32, i32
  }
  func.func @transform_13(%arg0: i32, %arg1: i32) -> (i32, i32, i32) {
    %c0_i32 = arith.constant 0 : i32
    %c0_i32_0 = arith.constant 0 : i32
    return %arg0, %arg1, %c0_i32 : i32, i32, i32
  }
}

module attributes {stable_mosaic.version = 11 : i64} {
  func.func @block_kernel(%arg0: i32, %arg1: i32, %arg2: memref<1x8x32xf32, #tpu.memory_space<vmem>>, %arg3: memref<1x32xf32, #tpu.memory_space<vmem>>, %arg4: memref<1x32xf32, #tpu.memory_space<vmem>>, %arg5: memref<4x32x8xbf16, #tpu.memory_space<vmem>>, %arg6: memref<4x1x8xf32, #tpu.memory_space<vmem>>, %arg7: memref<4x8x32xbf16, #tpu.memory_space<vmem>>, %arg8: memref<1x32xf32, #tpu.memory_space<vmem>>, %arg9: memref<1x32xf32, #tpu.memory_space<vmem>>, %arg10: memref<1x32xf32, #tpu.memory_space<vmem>>, %arg11: memref<32x128xbf16, #tpu.memory_space<vmem>>, %arg12: memref<1x128xf32, #tpu.memory_space<vmem>>, %arg13: memref<128x32xbf16, #tpu.memory_space<vmem>>, %arg14: memref<1x32xf32, #tpu.memory_space<vmem>>, %arg15: memref<1x8x32xf32, #tpu.memory_space<vmem>>, %arg16: memref<4x8x8xbf16, #tpu.memory_space<vmem>>, %arg17: memref<4x8x8xbf16, #tpu.memory_space<vmem>>) attributes {dimension_semantics = [#tpu.dimension_semantics<parallel>, #tpu.dimension_semantics<arbitrary>], iteration_bounds = array<i64: 2, 1>, scalar_prefetch = 0 : i64, scratch_operands = 2 : i64, tpu.core_type = #tpu.core_type<tc>, window_params = [{transform_indices = @transform_0, window_bounds = array<i64: 1, 8, 32>}, {pipeline_mode = #tpu.pipeline_mode<synchronous>, transform_indices = @transform_1, window_bounds = array<i64: 1, 32>}, {pipeline_mode = #tpu.pipeline_mode<synchronous>, transform_indices = @transform_2, window_bounds = array<i64: 1, 32>}, {pipeline_mode = #tpu.pipeline_mode<synchronous>, transform_indices = @transform_3, window_bounds = array<i64: 4, 32, 8>}, {pipeline_mode = #tpu.pipeline_mode<synchronous>, transform_indices = @transform_4, window_bounds = array<i64: 4, 1, 8>}, {pipeline_mode = #tpu.pipeline_mode<synchronous>, transform_indices = @transform_5, window_bounds = array<i64: 4, 8, 32>}, {pipeline_mode = #tpu.pipeline_mode<synchronous>, transform_indices = @transform_6, window_bounds = array<i64: 1, 32>}, {pipeline_mode = #tpu.pipeline_mode<synchronous>, transform_indices = @transform_7, window_bounds = array<i64: 1, 32>}, {pipeline_mode = #tpu.pipeline_mode<synchronous>, transform_indices = @transform_8, window_bounds = array<i64: 1, 32>}, {pipeline_mode = #tpu.pipeline_mode<synchronous>, transform_indices = @transform_9, window_bounds = array<i64: 32, 128>}, {pipeline_mode = #tpu.pipeline_mode<synchronous>, transform_indices = @transform_10, window_bounds = array<i64: 1, 128>}, {pipeline_mode = #tpu.pipeline_mode<synchronous>, transform_indices = @transform_11, window_bounds = array<i64: 128, 32>}, {pipeline_mode = #tpu.pipeline_mode<synchronous>, transform_indices = @transform_12, window_bounds = array<i64: 1, 32>}, {transform_indices = @transform_13, window_bounds = array<i64: 1, 8, 32>}]} {
    %c8_i32 = arith.constant 8 : i32
    %0 = arith.muli %arg1, %c8_i32 : i32
    %1 = tpu.assume_multiple %0, 8 : i32
    %c0 = arith.constant 0 : index
    %c0_0 = arith.constant 0 : index
    %c0_1 = arith.constant 0 : index
    %2 = vector.load %arg2[%c0, %c0_0, %c0_1] : memref<1x8x32xf32, #tpu.memory_space<vmem>>, vector<1x8x32xf32>
    %3 = vector.shape_cast %2 : vector<1x8x32xf32> to vector<8x32xf32>
    %c0_2 = arith.constant 0 : index
    %c0_3 = arith.constant 0 : index
    %4 = vector.load %arg3[%c0_2, %c0_3] : memref<1x32xf32, #tpu.memory_space<vmem>>, vector<1x32xf32>
    %5 = vector.shape_cast %4 : vector<1x32xf32> to vector<32xf32>
    %c0_4 = arith.constant 0 : index
    %c0_5 = arith.constant 0 : index
    %6 = vector.load %arg4[%c0_4, %c0_5] : memref<1x32xf32, #tpu.memory_space<vmem>>, vector<1x32xf32>
    %7 = vector.shape_cast %6 : vector<1x32xf32> to vector<32xf32>
    %cst = arith.constant dense<0.000000e+00> : vector<8xf32>
    %8 = vector.multi_reduction <add>, %3, %cst [1] : vector<8x32xf32> to vector<8xf32>
    %9 = vector.shape_cast %8 : vector<8xf32> to vector<8x1xf32>
    %cst_6 = arith.constant 3.200000e+01 : f32
    %10 = vector.broadcast %cst_6 : f32 to vector<8x1xf32>
    %11 = arith.divf %9, %10 : vector<8x1xf32>
    %12 = vector.broadcast %11 : vector<8x1xf32> to vector<8x32xf32>
    %13 = arith.subf %3, %12 : vector<8x32xf32>
    %14 = arith.mulf %13, %13 : vector<8x32xf32>
    %cst_7 = arith.constant dense<0.000000e+00> : vector<8xf32>
    %15 = vector.multi_reduction <add>, %14, %cst_7 [1] : vector<8x32xf32> to vector<8xf32>
    %16 = vector.shape_cast %15 : vector<8xf32> to vector<8x1xf32>
    %cst_8 = arith.constant 3.200000e+01 : f32
    %17 = vector.broadcast %cst_8 : f32 to vector<8x1xf32>
    %18 = arith.divf %16, %17 : vector<8x1xf32>
    %19 = vector.broadcast %11 : vector<8x1xf32> to vector<8x32xf32>
    %20 = arith.subf %3, %19 : vector<8x32xf32>
    %cst_9 = arith.constant 9.99999974E-6 : f32
    %21 = vector.broadcast %cst_9 : f32 to vector<8x1xf32>
    %22 = arith.addf %18, %21 : vector<8x1xf32>
    %23 = math.rsqrt %22 : vector<8x1xf32>
    %24 = vector.broadcast %23 : vector<8x1xf32> to vector<8x32xf32>
    %25 = arith.mulf %20, %24 : vector<8x32xf32>
    %26 = vector.shape_cast %5 : vector<32xf32> to vector<1x32xf32>
    %27 = vector.broadcast %26 : vector<1x32xf32> to vector<8x32xf32>
    %28 = arith.mulf %25, %27 : vector<8x32xf32>
    %29 = vector.shape_cast %7 : vector<32xf32> to vector<1x32xf32>
    %30 = vector.broadcast %29 : vector<1x32xf32> to vector<8x32xf32>
    %31 = arith.addf %28, %30 : vector<8x32xf32>
    %32 = arith.truncf %31 : vector<8x32xf32> to vector<8x32xbf16>
    %c0_i32 = arith.constant 0 : i32
    %c4_i32 = arith.constant 4 : i32
    %33 = arith.addi %c0_i32, %c4_i32 : i32
    %c1_i32 = arith.constant 1 : i32
    scf.for %arg18 = %c0_i32 to %33 step %c1_i32  : i32 {
      %119 = arith.index_cast %arg18 : i32 to index
      %c0_54 = arith.constant 0 : index
      %c0_55 = arith.constant 0 : index
      %120 = vector.load %arg5[%119, %c0_54, %c0_55] : memref<4x32x8xbf16, #tpu.memory_space<vmem>>, vector<1x32x8xbf16>
      %121 = vector.shape_cast %120 : vector<1x32x8xbf16> to vector<32x8xbf16>
      %cst_56 = arith.constant dense<0.000000e+00> : vector<8x8xf32>
      %122 = tpu.matmul %32, %121, %cst_56 {dimension_numbers = #tpu.dot_dimension_numbers<[1], [0], [0], [1], [0, 0, 1, 1], [], []>} : vector<8x32xbf16>, vector<32x8xbf16>, vector<8x8xf32> -> vector<8x8xf32>
      %123 = arith.index_cast %arg18 : i32 to index
      %c0_57 = arith.constant 0 : index
      %c0_58 = arith.constant 0 : index
      %124 = vector.load %arg6[%123, %c0_57, %c0_58] : memref<4x1x8xf32, #tpu.memory_space<vmem>>, vector<1x1x8xf32>
      %125 = vector.shape_cast %124 : vector<1x1x8xf32> to vector<1x8xf32>
      %126 = vector.broadcast %125 : vector<1x8xf32> to vector<8x8xf32>
      %127 = arith.addf %122, %126 : vector<8x8xf32>
      %128 = arith.truncf %127 : vector<8x8xf32> to vector<8x8xbf16>
      %129 = arith.index_cast %arg18 : i32 to index
      %130 = arith.index_cast %1 : i32 to index
      %c0_59 = arith.constant 0 : index
      %131 = vector.load %arg16[%129, %130, %c0_59] : memref<4x8x8xbf16, #tpu.memory_space<vmem>>, vector<1x8x8xbf16>
      %132 = vector.shape_cast %131 : vector<1x8x8xbf16> to vector<8x8xbf16>
      %133 = vector.shape_cast %128 : vector<8x8xbf16> to vector<1x8x8xbf16>
      tpu.vector_store %arg16[%129, %130, %c0_59], %133 {strides = array<i32>} : memref<4x8x8xbf16, #tpu.memory_space<vmem>>, vector<1x8x8xbf16>,
    }
    %c4_i32_10 = arith.constant 4 : i32
    %c0_11 = arith.constant 0 : index
    %34 = arith.index_cast %1 : i32 to index
    %c0_12 = arith.constant 0 : index
    %35 = vector.load %arg16[%c0_11, %34, %c0_12] : memref<4x8x8xbf16, #tpu.memory_space<vmem>>, vector<4x8x8xbf16>
    %36 = tpu.iota {dimensions = array<i32: 0>} : vector<8x8xi32>
    %37 = vector.broadcast %1 : i32 to vector<8x8xi32>
    %38 = arith.addi %37, %36 : vector<8x8xi32>
    %39 = tpu.iota {dimensions = array<i32: 1>} : vector<8x8xi32>
    %cst_13 = arith.constant -1.000000e+30 : f32
    %40 = vector.broadcast %cst_13 : f32 to vector<4x8x1xf32>
    %cst_14 = arith.constant 0.000000e+00 : f32
    %41 = vector.broadcast %cst_14 : f32 to vector<4x8x1xf32>
    %cst_15 = arith.constant 0.000000e+00 : f32
    %42 = vector.broadcast %cst_15 : f32 to vector<4x8x8xf32>
    %c1_i32_16 = arith.constant 1 : i32
    %43 = arith.addi %arg1, %c1_i32_16 : i32
    %c0_i32_17 = arith.constant 0 : i32
    %44 = arith.subi %43, %c0_i32_17 : i32
    %45 = arith.addi %c0_i32_17, %44 : i32
    %c1_i32_18 = arith.constant 1 : i32
    %46:3 = scf.for %arg18 = %c0_i32_17 to %45 step %c1_i32_18 iter_args(%arg19 = %40, %arg20 = %41, %arg21 = %42) -> (vector<4x8x1xf32>, vector<4x8x1xf32>, vector<4x8x8xf32>)  : i32 {
      %c8_i32_54 = arith.constant 8 : i32
      %119 = arith.muli %arg18, %c8_i32_54 : i32
      %120 = tpu.assume_multiple %119, 8 : i32
      %c0_55 = arith.constant 0 : index
      %121 = arith.index_cast %120 : i32 to index
      %c0_56 = arith.constant 0 : index
      %122 = vector.load %arg16[%c0_55, %121, %c0_56] : memref<4x8x8xbf16, #tpu.memory_space<vmem>>, vector<4x8x8xbf16>
      %cst_57 = arith.constant dense<0.000000e+00> : vector<4x8x8xf32>
      %123 = tpu.matmul %35, %122, %cst_57 {dimension_numbers = #tpu.dot_dimension_numbers<[2], [2], [1], [1], [0, 0, 0, 1, 1, 1], [0], [0]>} : vector<4x8x8xbf16>, vector<4x8x8xbf16>, vector<4x8x8xf32> -> vector<4x8x8xf32>
      %cst_58 = arith.constant 0.353553385 : f32
      %124 = vector.broadcast %cst_58 : f32 to vector<4x8x8xf32>
      %125 = arith.mulf %123, %124 : vector<4x8x8xf32>
      %126 = vector.broadcast %120 : i32 to vector<8x8xi32>
      %127 = arith.addi %126, %39 : vector<8x8xi32>
      %128 = arith.cmpi sle, %127, %38 : vector<8x8xi32>
      %cst_59 = arith.constant -1.000000e+30 : f32
      %129 = vector.shape_cast %128 : vector<8x8xi1> to vector<1x8x8xi1>
      %130 = vector.broadcast %129 : vector<1x8x8xi1> to vector<4x8x8xi1>
      %131 = vector.broadcast %cst_59 : f32 to vector<4x8x8xf32>
      %132 = arith.select %130, %125, %131 : vector<4x8x8xi1>, vector<4x8x8xf32>
      %cst_60 = arith.constant dense<0xFF800000> : vector<4x8xf32>
      %133 = vector.multi_reduction <maximumf>, %132, %cst_60 [2] : vector<4x8x8xf32> to vector<4x8xf32>
      %134 = vector.shape_cast %133 : vector<4x8xf32> to vector<4x8x1xf32>
      %135 = arith.maximumf %arg19, %134 : vector<4x8x1xf32>
      %136 = arith.subf %arg19, %135 : vector<4x8x1xf32>
      %137 = math.exp %136 : vector<4x8x1xf32>
      %138 = vector.broadcast %135 : vector<4x8x1xf32> to vector<4x8x8xf32>
      %139 = arith.subf %132, %138 : vector<4x8x8xf32>
      %140 = math.exp %139 : vector<4x8x8xf32>
      %141 = arith.mulf %137, %arg20 : vector<4x8x1xf32>
      %cst_61 = arith.constant dense<0.000000e+00> : vector<4x8xf32>
      %142 = vector.multi_reduction <add>, %140, %cst_61 [2] : vector<4x8x8xf32> to vector<4x8xf32>
      %143 = vector.shape_cast %142 : vector<4x8xf32> to vector<4x8x1xf32>
      %144 = arith.addf %141, %143 : vector<4x8x1xf32>
      %145 = arith.truncf %140 : vector<4x8x8xf32> to vector<4x8x8xbf16>
      %cst_62 = arith.constant dense<0.000000e+00> : vector<4x8x8xf32>
      %146 = tpu.matmul %145, %122, %cst_62 {dimension_numbers = #tpu.dot_dimension_numbers<[2], [1], [1], [2], [0, 0, 0, 1, 1, 2], [0], [0]>} : vector<4x8x8xbf16>, vector<4x8x8xbf16>, vector<4x8x8xf32> -> vector<4x8x8xf32>
      %147 = vector.broadcast %137 : vector<4x8x1xf32> to vector<4x8x8xf32>
      %148 = arith.mulf %147, %arg21 : vector<4x8x8xf32>
      %149 = arith.addf %148, %146 : vector<4x8x8xf32>
      scf.yield %135, %144, %149 : vector<4x8x1xf32>, vector<4x8x1xf32>, vector<4x8x8xf32>
    }
    %47 = tpu.reciprocal %46#1 {approx = true} : vector<4x8x1xf32> -> vector<4x8x1xf32>
    %48 = vector.broadcast %47 : vector<4x8x1xf32> to vector<4x8x8xf32>
    %49 = arith.mulf %46#2, %48 : vector<4x8x8xf32>
    %50 = arith.truncf %49 : vector<4x8x8xf32> to vector<4x8x8xbf16>
    %c0_19 = arith.constant 0 : index
    %c0_20 = arith.constant 0 : index
    %c0_21 = arith.constant 0 : index
    %51 = vector.load %arg17[%c0_19, %c0_20, %c0_21] : memref<4x8x8xbf16, #tpu.memory_space<vmem>>, vector<4x8x8xbf16>
    tpu.vector_store %arg17[%c0_19, %c0_20, %c0_21], %50 {strides = array<i32>} : memref<4x8x8xbf16, #tpu.memory_space<vmem>>, vector<4x8x8xbf16>,
    %c0_22 = arith.constant 0 : index
    %c0_23 = arith.constant 0 : index
    %52 = vector.load %arg8[%c0_22, %c0_23] : memref<1x32xf32, #tpu.memory_space<vmem>>, vector<1x32xf32>
    %53 = vector.shape_cast %52 : vector<1x32xf32> to vector<32xf32>
    %54 = vector.shape_cast %53 : vector<32xf32> to vector<1x32xf32>
    %55 = vector.broadcast %54 : vector<1x32xf32> to vector<8x32xf32>
    %56 = arith.addf %3, %55 : vector<8x32xf32>
    %c0_i32_24 = arith.constant 0 : i32
    %c4_i32_25 = arith.constant 4 : i32
    %57 = arith.addi %c0_i32_24, %c4_i32_25 : i32
    %c1_i32_26 = arith.constant 1 : i32
    %58 = scf.for %arg18 = %c0_i32_24 to %57 step %c1_i32_26 iter_args(%arg19 = %56) -> (vector<8x32xf32>)  : i32 {
      %119 = arith.index_cast %arg18 : i32 to index
      %c0_54 = arith.constant 0 : index
      %c0_55 = arith.constant 0 : index
      %120 = vector.load %arg17[%119, %c0_54, %c0_55] : memref<4x8x8xbf16, #tpu.memory_space<vmem>>, vector<1x8x8xbf16>
      %121 = vector.shape_cast %120 : vector<1x8x8xbf16> to vector<8x8xbf16>
      %122 = arith.index_cast %arg18 : i32 to index
      %c0_56 = arith.constant 0 : index
      %c0_57 = arith.constant 0 : index
      %123 = vector.load %arg7[%122, %c0_56, %c0_57] : memref<4x8x32xbf16, #tpu.memory_space<vmem>>, vector<1x8x32xbf16>
      %124 = vector.shape_cast %123 : vector<1x8x32xbf16> to vector<8x32xbf16>
      %cst_58 = arith.constant dense<0.000000e+00> : vector<8x32xf32>
      %125 = tpu.matmul %121, %124, %cst_58 {dimension_numbers = #tpu.dot_dimension_numbers<[1], [0], [0], [1], [0, 0, 1, 1], [], []>} : vector<8x8xbf16>, vector<8x32xbf16>, vector<8x32xf32> -> vector<8x32xf32>
      %126 = arith.addf %arg19, %125 : vector<8x32xf32>
      scf.yield %126 : vector<8x32xf32>
    }
    %c4_i32_27 = arith.constant 4 : i32
    %c0_28 = arith.constant 0 : index
    %c0_29 = arith.constant 0 : index
    %59 = vector.load %arg9[%c0_28, %c0_29] : memref<1x32xf32, #tpu.memory_space<vmem>>, vector<1x32xf32>
    %60 = vector.shape_cast %59 : vector<1x32xf32> to vector<32xf32>
    %c0_30 = arith.constant 0 : index
    %c0_31 = arith.constant 0 : index
    %61 = vector.load %arg10[%c0_30, %c0_31] : memref<1x32xf32, #tpu.memory_space<vmem>>, vector<1x32xf32>
    %62 = vector.shape_cast %61 : vector<1x32xf32> to vector<32xf32>
    %cst_32 = arith.constant dense<0.000000e+00> : vector<8xf32>
    %63 = vector.multi_reduction <add>, %58, %cst_32 [1] : vector<8x32xf32> to vector<8xf32>
    %64 = vector.shape_cast %63 : vector<8xf32> to vector<8x1xf32>
    %cst_33 = arith.constant 3.200000e+01 : f32
    %65 = vector.broadcast %cst_33 : f32 to vector<8x1xf32>
    %66 = arith.divf %64, %65 : vector<8x1xf32>
    %67 = vector.broadcast %66 : vector<8x1xf32> to vector<8x32xf32>
    %68 = arith.subf %58, %67 : vector<8x32xf32>
    %69 = arith.mulf %68, %68 : vector<8x32xf32>
    %cst_34 = arith.constant dense<0.000000e+00> : vector<8xf32>
    %70 = vector.multi_reduction <add>, %69, %cst_34 [1] : vector<8x32xf32> to vector<8xf32>
    %71 = vector.shape_cast %70 : vector<8xf32> to vector<8x1xf32>
    %cst_35 = arith.constant 3.200000e+01 : f32
    %72 = vector.broadcast %cst_35 : f32 to vector<8x1xf32>
    %73 = arith.divf %71, %72 : vector<8x1xf32>
    %74 = vector.broadcast %66 : vector<8x1xf32> to vector<8x32xf32>
    %75 = arith.subf %58, %74 : vector<8x32xf32>
    %cst_36 = arith.constant 9.99999974E-6 : f32
    %76 = vector.broadcast %cst_36 : f32 to vector<8x1xf32>
    %77 = arith.addf %73, %76 : vector<8x1xf32>
    %78 = math.rsqrt %77 : vector<8x1xf32>
    %79 = vector.broadcast %78 : vector<8x1xf32> to vector<8x32xf32>
    %80 = arith.mulf %75, %79 : vector<8x32xf32>
    %81 = vector.shape_cast %60 : vector<32xf32> to vector<1x32xf32>
    %82 = vector.broadcast %81 : vector<1x32xf32> to vector<8x32xf32>
    %83 = arith.mulf %80, %82 : vector<8x32xf32>
    %84 = vector.shape_cast %62 : vector<32xf32> to vector<1x32xf32>
    %85 = vector.broadcast %84 : vector<1x32xf32> to vector<8x32xf32>
    %86 = arith.addf %83, %85 : vector<8x32xf32>
    %87 = arith.truncf %86 : vector<8x32xf32> to vector<8x32xbf16>
    %c0_37 = arith.constant 0 : index
    %c0_38 = arith.constant 0 : index
    %88 = vector.load %arg11[%c0_37, %c0_38] : memref<32x128xbf16, #tpu.memory_space<vmem>>, vector<32x128xbf16>
    %cst_39 = arith.constant dense<0.000000e+00> : vector<8x128xf32>
    %89 = tpu.matmul %87, %88, %cst_39 {dimension_numbers = #tpu.dot_dimension_numbers<[1], [0], [0], [1], [0, 0, 1, 1], [], []>} : vector<8x32xbf16>, vector<32x128xbf16>, vector<8x128xf32> -> vector<8x128xf32>
    %c0_40 = arith.constant 0 : index
    %c0_41 = arith.constant 0 : index
    %90 = vector.load %arg12[%c0_40, %c0_41] : memref<1x128xf32, #tpu.memory_space<vmem>>, vector<1x128xf32>
    %91 = vector.shape_cast %90 : vector<1x128xf32> to vector<128xf32>
    %92 = vector.shape_cast %91 : vector<128xf32> to vector<1x128xf32>
    %93 = vector.broadcast %92 : vector<1x128xf32> to vector<8x128xf32>
    %94 = arith.addf %89, %93 : vector<8x128xf32>
    %95 = arith.mulf %94, %94 : vector<8x128xf32>
    %cst_42 = arith.constant 0.0356774069 : f32
    %96 = vector.broadcast %cst_42 : f32 to vector<8x128xf32>
    %97 = arith.mulf %96, %95 : vector<8x128xf32>
    %cst_43 = arith.constant 0.797884583 : f32
    %98 = vector.broadcast %cst_43 : f32 to vector<8x128xf32>
    %99 = arith.addf %98, %97 : vector<8x128xf32>
    %100 = arith.mulf %94, %99 : vector<8x128xf32>
    %cst_44 = arith.constant 5.000000e-01 : f32
    %101 = vector.broadcast %cst_44 : f32 to vector<8x128xf32>
    %102 = arith.mulf %101, %94 : vector<8x128xf32>
    %103 = math.tanh %100 : vector<8x128xf32>
    %cst_45 = arith.constant 1.000000e+00 : f32
    %104 = vector.broadcast %cst_45 : f32 to vector<8x128xf32>
    %105 = arith.addf %104, %103 : vector<8x128xf32>
    %106 = arith.mulf %102, %105 : vector<8x128xf32>
    %107 = arith.truncf %106 : vector<8x128xf32> to vector<8x128xbf16>
    %c0_46 = arith.constant 0 : index
    %c0_47 = arith.constant 0 : index
    %108 = vector.load %arg13[%c0_46, %c0_47] : memref<128x32xbf16, #tpu.memory_space<vmem>>, vector<128x32xbf16>
    %cst_48 = arith.constant dense<0.000000e+00> : vector<8x32xf32>
    %109 = tpu.matmul %107, %108, %cst_48 {dimension_numbers = #tpu.dot_dimension_numbers<[1], [0], [0], [1], [0, 0, 1, 1], [], []>} : vector<8x128xbf16>, vector<128x32xbf16>, vector<8x32xf32> -> vector<8x32xf32>
    %c0_49 = arith.constant 0 : index
    %c0_50 = arith.constant 0 : index
    %110 = vector.load %arg14[%c0_49, %c0_50] : memref<1x32xf32, #tpu.memory_space<vmem>>, vector<1x32xf32>
    %111 = vector.shape_cast %110 : vector<1x32xf32> to vector<32xf32>
    %112 = vector.shape_cast %111 : vector<32xf32> to vector<1x32xf32>
    %113 = vector.broadcast %112 : vector<1x32xf32> to vector<8x32xf32>
    %114 = arith.addf %109, %113 : vector<8x32xf32>
    %115 = arith.addf %58, %114 : vector<8x32xf32>
    %c0_51 = arith.constant 0 : index
    %c0_52 = arith.constant 0 : index
    %c0_53 = arith.constant 0 : index
    %116 = vector.load %arg15[%c0_51, %c0_52, %c0_53] : memref<1x8x32xf32, #tpu.memory_space<vmem>>, vector<1x8x32xf32>
    %117 = vector.shape_cast %116 : vector<1x8x32xf32> to vector<8x32xf32>
    %118 = vector.shape_cast %115 : vector<8x32xf32> to vector<1x8x32xf32>
    tpu.vector_store %arg15[%c0_51, %c0_52, %c0_53], %118 {strides = array<i32>} : memref<1x8x32xf32, #tpu.memory_space<vmem>>, vector<1x8x32xf32>,
    return
  }
  func.func @transform_0(%arg0: i32, %arg1: i32) -> (i32, i32, i32) {
    %c0_i32 = arith.constant 0 : i32
    %c0_i32_0 = arith.constant 0 : i32
    return %arg0, %arg1, %c0_i32 : i32, i32, i32
  }
  func.func @transform_1(%arg0: i32, %arg1: i32) -> (i32, i32) {
    %c0_i32 = arith.constant 0 : i32
    %c0_i32_0 = arith.constant 0 : i32
    %c0_i32_1 = arith.constant 0 : i32
    return %c0_i32, %c0_i32_0 : i32, i32
  }
  func.func @transform_2(%arg0: i32, %arg1: i32) -> (i32, i32) {
    %c0_i32 = arith.constant 0 : i32
    %c0_i32_0 = arith.constant 0 : i32
    %c0_i32_1 = arith.constant 0 : i32
    return %c0_i32, %c0_i32_0 : i32, i32
  }
  func.func @transform_3(%arg0: i32, %arg1: i32) -> (i32, i32, i32) {
    %c0_i32 = arith.constant 0 : i32
    %c0_i32_0 = arith.constant 0 : i32
    %c0_i32_1 = arith.constant 0 : i32
    %c0_i32_2 = arith.constant 0 : i32
    return %c0_i32, %c0_i32_0, %c0_i32_1 : i32, i32, i32
  }
  func.func @transform_4(%arg0: i32, %arg1: i32) -> (i32, i32, i32) {
    %c0_i32 = arith.constant 0 : i32
    %c0_i32_0 = arith.constant 0 : i32
    %c0_i32_1 = arith.constant 0 : i32
    %c0_i32_2 = arith.constant 0 : i32
    return %c0_i32, %c0_i32_0, %c0_i32_1 : i32, i32, i32
  }
  func.func @transform_5(%arg0: i32, %arg1: i32) -> (i32, i32, i32) {
    %c0_i32 = arith.constant 0 : i32
    %c0_i32_0 = arith.constant 0 : i32
    %c0_i32_1 = arith.constant 0 : i32
    %c0_i32_2 = arith.constant 0 : i32
    return %c0_i32, %c0_i32_0, %c0_i32_1 : i32, i32, i32
  }
  func.func @transform_6(%arg0: i32, %arg1: i32) -> (i32, i32) {
    %c0_i32 = arith.constant 0 : i32
    %c0_i32_0 = arith.constant 0 : i32
    %c0_i32_1 = arith.constant 0 : i32
    return %c0_i32, %c0_i32_0 : i32, i32
  }
  func.func @transform_7(%arg0: i32, %arg1: i32) -> (i32, i32) {
    %c0_i32 = arith.constant 0 : i32
    %c0_i32_0 = arith.constant 0 : i32
    %c0_i32_1 = arith.constant 0 : i32
    return %c0_i32, %c0_i32_0 : i32, i32
  }
  func.func @transform_8(%arg0: i32, %arg1: i32) -> (i32, i32) {
    %c0_i32 = arith.constant 0 : i32
    %c0_i32_0 = arith.constant 0 : i32
    %c0_i32_1 = arith.constant 0 : i32
    return %c0_i32, %c0_i32_0 : i32, i32
  }
  func.func @transform_9(%arg0: i32, %arg1: i32) -> (i32, i32) {
    %c0_i32 = arith.constant 0 : i32
    %c0_i32_0 = arith.constant 0 : i32
    %c0_i32_1 = arith.constant 0 : i32
    return %c0_i32, %c0_i32_0 : i32, i32
  }
  func.func @transform_10(%arg0: i32, %arg1: i32) -> (i32, i32) {
    %c0_i32 = arith.constant 0 : i32
    %c0_i32_0 = arith.constant 0 : i32
    %c0_i32_1 = arith.constant 0 : i32
    return %c0_i32, %c0_i32_0 : i32, i32
  }
  func.func @transform_11(%arg0: i32, %arg1: i32) -> (i32, i32) {
    %c0_i32 = arith.constant 0 : i32
    %c0_i32_0 = arith.constant 0 : i32
    %c0_i32_1 = arith.constant 0 : i32
    return %c0_i32, %c0_i32_0 : i32, i32
  }
  func.func @transform_12(%arg0: i32, %arg1: i32) -> (i32, i32) {
    %c0_i32 = arith.constant 0 : i32
    %c0_i32_0 = arith.constant 0 : i32
    %c0_i32_1 = arith.constant 0 : i32
    return %c0_i32, %c0_i32_0 : i32, i32
  }
  func.func @transform_13(%arg0: i32, %arg1: i32) -> (i32, i32, i32) {
    %c0_i32 = arith.constant 0 : i32
    %c0_i32_0 = arith.constant 0 : i32
    return %arg0, %arg1, %c0_i32 : i32, i32, i32
  }
}

</mosaic_0001>

<llo_original>
// kernel: tpu_custom_call.1
$region0: #{tpu_custom_call.1}
  #allocation0 [shape = 'u32[]', space=smem, size = 0x4, offset = 0x4, fixed_abs, tag = 'smem constant byte address 0x4 - core index']
  #allocation1 [shape = 'u32[144,128]{1,0:T(1,128)}', space=vmem, size = 0x12000, scoped, tag = 'internal scratch']
  #allocation2 [shape = 'bf16[4,8,8]{2,1,0:T(8,128)(2,1)}', space=vmem, size = 0x2000, scoped, tag = 'scratch operand']
  #allocation3 [shape = 'bf16[4,8,8]{2,1,0:T(8,128)(2,1)}', space=vmem, size = 0x2000, scoped, tag = 'scratch operand']
  %s0 = inlined_call_operand.vmem [shape: f32[2,8,32], index: 0, kind: input, shape index: {}]
  %s1 = inlined_call_operand.vmem [shape: f32[1,32], index: 1, kind: input, shape index: {}]
  %s2 = inlined_call_operand.vmem [shape: f32[1,32], index: 2, kind: input, shape index: {}]
  %s3 = inlined_call_operand.vmem [shape: bf16[4,32,8], index: 3, kind: input, shape index: {}]
  %s4 = inlined_call_operand.vmem [shape: f32[4,1,8], index: 4, kind: input, shape index: {}]
  %s5 = inlined_call_operand.vmem [shape: bf16[4,8,32], index: 5, kind: input, shape index: {}]
  %s6 = inlined_call_operand.vmem [shape: f32[1,32], index: 6, kind: input, shape index: {}]
  %s7 = inlined_call_operand.vmem [shape: f32[1,32], index: 7, kind: input, shape index: {}]
  %s8 = inlined_call_operand.vmem [shape: f32[1,32], index: 8, kind: input, shape index: {}]
  %s9 = inlined_call_operand.vmem [shape: bf16[32,128], index: 9, kind: input, shape index: {}]
  %s10 = inlined_call_operand.vmem [shape: f32[1,128], index: 10, kind: input, shape index: {}]
  %s11 = inlined_call_operand.vmem [shape: bf16[128,32], index: 11, kind: input, shape index: {}]
  %s12 = inlined_call_operand.vmem [shape: f32[1,32], index: 12, kind: input, shape index: {}]
  %s13 = inlined_call_operand.hbm [shape: f32[2,8,32], index: 13, kind: output, shape index: {}]
  %s14 = sld [smem:[#allocation0]]
  $region106: #{tpu_custom_call.1} parent=0
    _
  %s16 = ssub.s32 1, %s14
  %s17 = scalar_select 0, %s16, %s14
  $region1: #{tpu_custom_call.1} parent=0
    #allocation4 [shape = 'u8[8192]{0}', space=vmem, size = 0x2000, scoped, tag = 'output window, operand 0']
    #allocation5 [shape = 's32[2]{0}', space=sflag, size = 0x8, scoped, tag = 'scoped memory for tpu_custom_call.1']
    %18 = vsyncpa [#allocation5], 0
    %s19 = scalar_lea.sflag [#allocation5], 1
    %20 = vsyncpa %s19, 0
    loop: start=0, step=1, limit=4
    $region2: #{tpu_custom_call.1} parent=1 // loop_pre_header
      _
    $region3: #{tpu_custom_call.1} parent=1 // loop_header
      %s22 = sphi 0, %s26
      %p23 = scmp.ge.s32.totalorder %s22, 4
      %s29 = sphi 0, %s41
      %s30 = sphi 0, %s37
      %s31 = sphi 0, %s29
      %s32 = sphi 0, %s30
      %s33 = sphi 0, %s31
      %s34 = sphi 0, %s32
      %s46 = sphi 0, %s48
      %s49 = sphi 0, %s46
      %s50 = sphi 0, %s49
      %s66 = sphi 0, %s50
      %s70 = sphi 0, %s70
      %s72 = sphi 0, %s70
      %s73 = sphi 0, %s72
      %s87 = sphi 0, %s73
      %s91 = sphi 0, %s91
      %s93 = sphi 0, %s91
      %s94 = sphi 0, %s93
      %s108 = sphi 0, %s94
      %s112 = sphi 0, %s112
      %s114 = sphi 0, %s112
      %s115 = sphi 0, %s114
      %s129 = sphi 0, %s115
      %s133 = sphi 0, %s133
      %s135 = sphi 0, %s133
      %s136 = sphi 0, %s135
      %s150 = sphi 0, %s136
      %s154 = sphi 0, %s154
      %s156 = sphi 0, %s154
      %s157 = sphi 0, %s156
      %s171 = sphi 0, %s157
      %s175 = sphi 0, %s175
      %s177 = sphi 0, %s175
      %s178 = sphi 0, %s177
      %s192 = sphi 0, %s178
      %s196 = sphi 0, %s196
      %s198 = sphi 0, %s196
      %s199 = sphi 0, %s198
      %s213 = sphi 0, %s199
      %s217 = sphi 0, %s217
      %s219 = sphi 0, %s217
      %s220 = sphi 0, %s219
      %s234 = sphi 0, %s220
      %s238 = sphi 0, %s238
      %s240 = sphi 0, %s238
      %s241 = sphi 0, %s240
      %s255 = sphi 0, %s241
      %s259 = sphi 0, %s259
      %s261 = sphi 0, %s259
      %s262 = sphi 0, %s261
      %s276 = sphi 0, %s262
      %s280 = sphi 0, %s280
      %s282 = sphi 0, %s280
      %s283 = sphi 0, %s282
      %s297 = sphi 0, %s283
      %s301 = sphi 0, %s301
      %s303 = sphi 0, %s301
      %s304 = sphi 0, %s303
      %s318 = sphi 0, %s304
      %s326 = sphi 0, %s328
      %s329 = sphi 0, %s326
      %s330 = sphi 0, %s329
      %s346 = sphi 0, %s330
    $region4: #{tpu_custom_call.1} parent=1 // loop_header_branch
      %25 = sbr.rel (%p23) target = $region8
    $region5: #{tpu_custom_call.1} parent=1 // loop_body
      %s27 = ssub.s32 %s22, 1
      %s28 = ssub.s32 %s22, 2
      %s35 = sadd.s32 1, %s30
      %p36 = scmp.ge.s32.totalorder %s35, 1
      %s37 = scalar_select %p36, 0, %s35
      %s38 = sadd.s32 1, %s29
      %s39 = scalar_select %p36, %s38, %s29
      %p40 = scmp.ge.s32.totalorder %s39, 2
      %s41 = scalar_select %p40, 0, %s39
      %s42 = ssub.s32 %s29, %s41
      %s43 = ssub.s32 %s30, %s37
      %s44 = sor.u32 %s42, %s43
      %p45 = scmp.eq.s32.totalorder %s44, 0
      %s47 = sadd.s32 %s46, 1
      %s48 = scalar_select %p45, %s46, %s47
      %p51 = pneg %p45
      %p52 = scmp.eq.s32.totalorder %s22, 1
      %p53 = por %p51, %p52
      %p54 = scmp.ne.s32.totalorder %s46, %s49
      %p55 = scmp.eq.s32.totalorder %s22, 0
      %p56 = por %p54, %p55
      %p57 = scmp.ne.s32.totalorder %s46, %s49
      %p58 = scmp.eq.s32.totalorder %s27, 1
      %p59 = por %p57, %p58
      %p60 = scmp.ne.s32.totalorder %s49, %s50
      %p61 = scmp.eq.s32.totalorder %s27, 0
      %p62 = por %p60, %p61
      %p63 = scmp.ne.s32.totalorder %s49, %s50
      %p64 = scmp.eq.s32.totalorder %s28, 1
      %p65 = por %p63, %p64
      %p67 = scmp.ne.s32.totalorder %s50, %s66
      %p68 = scmp.eq.s32.totalorder %s28, 0
      %p69 = por %p67, %p68
      %s71 = sadd.s32 %s70, 1
      %p74 = scmp.eq.s32.totalorder %s22, 1
      %p75 = scmp.ne.s32.totalorder %s70, %s72
      %p76 = scmp.eq.s32.totalorder %s22, 0
      %p77 = por %p75, %p76
      %p78 = scmp.ne.s32.totalorder %s70, %s72
      %p79 = scmp.eq.s32.totalorder %s27, 1
      %p80 = por %p78, %p79
      %p81 = scmp.ne.s32.totalorder %s72, %s73
      %p82 = scmp.eq.s32.totalorder %s27, 0
      %p83 = por %p81, %p82
      %p84 = scmp.ne.s32.totalorder %s72, %s73
      %p85 = scmp.eq.s32.totalorder %s28, 1
      %p86 = por %p84, %p85
      %p88 = scmp.ne.s32.totalorder %s73, %s87
      %p89 = scmp.eq.s32.totalorder %s28, 0
      %p90 = por %p88, %p89
      %s92 = sadd.s32 %s91, 1
      %p95 = scmp.eq.s32.totalorder %s22, 1
      %p96 = scmp.ne.s32.totalorder %s91, %s93
      %p97 = scmp.eq.s32.totalorder %s22, 0
      %p98 = por %p96, %p97
      %p99 = scmp.ne.s32.totalorder %s91, %s93
      %p100 = scmp.eq.s32.totalorder %s27, 1
      %p101 = por %p99, %p100
      %p102 = scmp.ne.s32.totalorder %s93, %s94
      %p103 = scmp.eq.s32.totalorder %s27, 0
      %p104 = por %p102, %p103
      %p105 = scmp.ne.s32.totalorder %s93, %s94
      %p106 = scmp.eq.s32.totalorder %s28, 1
      %p107 = por %p105, %p106
      %p109 = scmp.ne.s32.totalorder %s94, %s108
      %p110 = scmp.eq.s32.totalorder %s28, 0
      %p111 = por %p109, %p110
      %s113 = sadd.s32 %s112, 1
      %p116 = scmp.eq.s32.totalorder %s22, 1
      %p117 = scmp.ne.s32.totalorder %s112, %s114
      %p118 = scmp.eq.s32.totalorder %s22, 0
      %p119 = por %p117, %p118
      %p120 = scmp.ne.s32.totalorder %s112, %s114
      %p121 = scmp.eq.s32.totalorder %s27, 1
      %p122 = por %p120, %p121
      %p123 = scmp.ne.s32.totalorder %s114, %s115
      %p124 = scmp.eq.s32.totalorder %s27, 0
      %p125 = por %p123, %p124
      %p126 = scmp.ne.s32.totalorder %s114, %s115
      %p127 = scmp.eq.s32.totalorder %s28, 1
      %p128 = por %p126, %p127
      %p130 = scmp.ne.s32.totalorder %s115, %s129
      %p131 = scmp.eq.s32.totalorder %s28, 0
      %p132 = por %p130, %p131
      %s134 = sadd.s32 %s133, 1
      %p137 = scmp.eq.s32.totalorder %s22, 1
      %p138 = scmp.ne.s32.totalorder %s133, %s135
      %p139 = scmp.eq.s32.totalorder %s22, 0
      %p140 = por %p138, %p139
      %p141 = scmp.ne.s32.totalorder %s133, %s135
      %p142 = scmp.eq.s32.totalorder %s27, 1
      %p143 = por %p141, %p142
      %p144 = scmp.ne.s32.totalorder %s135, %s136
      %p145 = scmp.eq.s32.totalorder %s27, 0
      %p146 = por %p144, %p145
      %p147 = scmp.ne.s32.totalorder %s135, %s136
      %p148 = scmp.eq.s32.totalorder %s28, 1
      %p149 = por %p147, %p148
      %p151 = scmp.ne.s32.totalorder %s136, %s150
      %p152 = scmp.eq.s32.totalorder %s28, 0
      %p153 = por %p151, %p152
      %s155 = sadd.s32 %s154, 1
      %p158 = scmp.eq.s32.totalorder %s22, 1
      %p159 = scmp.ne.s32.totalorder %s154, %s156
      %p160 = scmp.eq.s32.totalorder %s22, 0
      %p161 = por %p159, %p160
      %p162 = scmp.ne.s32.totalorder %s154, %s156
      %p163 = scmp.eq.s32.totalorder %s27, 1
      %p164 = por %p162, %p163
      %p165 = scmp.ne.s32.totalorder %s156, %s157
      %p166 = scmp.eq.s32.totalorder %s27, 0
      %p167 = por %p165, %p166
      %p168 = scmp.ne.s32.totalorder %s156, %s157
      %p169 = scmp.eq.s32.totalorder %s28, 1
      %p170 = por %p168, %p169
      %p172 = scmp.ne.s32.totalorder %s157, %s171
      %p173 = scmp.eq.s32.totalorder %s28, 0
      %p174 = por %p172, %p173
      %s176 = sadd.s32 %s175, 1
      %p179 = scmp.eq.s32.totalorder %s22, 1
      %p180 = scmp.ne.s32.totalorder %s175, %s177
      %p181 = scmp.eq.s32.totalorder %s22, 0
      %p182 = por %p180, %p181
      %p183 = scmp.ne.s32.totalorder %s175, %s177
      %p184 = scmp.eq.s32.totalorder %s27, 1
      %p185 = por %p183, %p184
      %p186 = scmp.ne.s32.totalorder %s177, %s178
      %p187 = scmp.eq.s32.totalorder %s27, 0
      %p188 = por %p186, %p187
      %p189 = scmp.ne.s32.totalorder %s177, %s178
      %p190 = scmp.eq.s32.totalorder %s28, 1
      %p191 = por %p189, %p190
      %p193 = scmp.ne.s32.totalorder %s178, %s192
      %p194 = scmp.eq.s32.totalorder %s28, 0
      %p195 = por %p193, %p194
      %s197 = sadd.s32 %s196, 1
      %p200 = scmp.eq.s32.totalorder %s22, 1
      %p201 = scmp.ne.s32.totalorder %s196, %s198
      %p202 = scmp.eq.s32.totalorder %s22, 0
      %p203 = por %p201, %p202
      %p204 = scmp.ne.s32.totalorder %s196, %s198
      %p205 = scmp.eq.s32.totalorder %s27, 1
      %p206 = por %p204, %p205
      %p207 = scmp.ne.s32.totalorder %s198, %s199
      %p208 = scmp.eq.s32.totalorder %s27, 0
      %p209 = por %p207, %p208
      %p210 = scmp.ne.s32.totalorder %s198, %s199
      %p211 = scmp.eq.s32.totalorder %s28, 1
      %p212 = por %p210, %p211
      %p214 = scmp.ne.s32.totalorder %s199, %s213
      %p215 = scmp.eq.s32.totalorder %s28, 0
      %p216 = por %p214, %p215
      %s218 = sadd.s32 %s217, 1
      %p221 = scmp.eq.s32.totalorder %s22, 1
      %p222 = scmp.ne.s32.totalorder %s217, %s219
      %p223 = scmp.eq.s32.totalorder %s22, 0
      %p224 = por %p222, %p223
      %p225 = scmp.ne.s32.totalorder %s217, %s219
      %p226 = scmp.eq.s32.totalorder %s27, 1
      %p227 = por %p225, %p226
      %p228 = scmp.ne.s32.totalorder %s219, %s220
      %p229 = scmp.eq.s32.totalorder %s27, 0
      %p230 = por %p228, %p229
      %p231 = scmp.ne.s32.totalorder %s219, %s220
      %p232 = scmp.eq.s32.totalorder %s28, 1
      %p233 = por %p231, %p232
      %p235 = scmp.ne.s32.totalorder %s220, %s234
      %p236 = scmp.eq.s32.totalorder %s28, 0
      %p237 = por %p235, %p236
      %s239 = sadd.s32 %s238, 1
      %p242 = scmp.eq.s32.totalorder %s22, 1
      %p243 = scmp.ne.s32.totalorder %s238, %s240
      %p244 = scmp.eq.s32.totalorder %s22, 0
      %p245 = por %p243, %p244
      %p246 = scmp.ne.s32.totalorder %s238, %s240
      %p247 = scmp.eq.s32.totalorder %s27, 1
      %p248 = por %p246, %p247
      %p249 = scmp.ne.s32.totalorder %s240, %s241
      %p250 = scmp.eq.s32.totalorder %s27, 0
      %p251 = por %p249, %p250
      %p252 = scmp.ne.s32.totalorder %s240, %s241
      %p253 = scmp.eq.s32.totalorder %s28, 1
      %p254 = por %p252, %p253
      %p256 = scmp.ne.s32.totalorder %s241, %s255
      %p257 = scmp.eq.s32.totalorder %s28, 0
      %p258 = por %p256, %p257
      %s260 = sadd.s32 %s259, 1
      %p263 = scmp.eq.s32.totalorder %s22, 1
      %p264 = scmp.ne.s32.totalorder %s259, %s261
      %p265 = scmp.eq.s32.totalorder %s22, 0
      %p266 = por %p264, %p265
      %p267 = scmp.ne.s32.totalorder %s259, %s261
      %p268 = scmp.eq.s32.totalorder %s27, 1
      %p269 = por %p267, %p268
      %p270 = scmp.ne.s32.totalorder %s261, %s262
      %p271 = scmp.eq.s32.totalorder %s27, 0
      %p272 = por %p270, %p271
      %p273 = scmp.ne.s32.totalorder %s261, %s262
      %p274 = scmp.eq.s32.totalorder %s28, 1
      %p275 = por %p273, %p274
      %p277 = scmp.ne.s32.totalorder %s262, %s276
      %p278 = scmp.eq.s32.totalorder %s28, 0
      %p279 = por %p277, %p278
      %s281 = sadd.s32 %s280, 1
      %p284 = scmp.eq.s32.totalorder %s22, 1
      %p285 = scmp.ne.s32.totalorder %s280, %s282
      %p286 = scmp.eq.s32.totalorder %s22, 0
      %p287 = por %p285, %p286
      %p288 = scmp.ne.s32.totalorder %s280, %s282
      %p289 = scmp.eq.s32.totalorder %s27, 1
      %p290 = por %p288, %p289
      %p291 = scmp.ne.s32.totalorder %s282, %s283
      %p292 = scmp.eq.s32.totalorder %s27, 0
      %p293 = por %p291, %p292
      %p294 = scmp.ne.s32.totalorder %s282, %s283
      %p295 = scmp.eq.s32.totalorder %s28, 1
      %p296 = por %p294, %p295
      %p298 = scmp.ne.s32.totalorder %s283, %s297
      %p299 = scmp.eq.s32.totalorder %s28, 0
      %p300 = por %p298, %p299
      %s302 = sadd.s32 %s301, 1
      %p305 = scmp.eq.s32.totalorder %s22, 1
      %p306 = scmp.ne.s32.totalorder %s301, %s303
      %p307 = scmp.eq.s32.totalorder %s22, 0
      %p308 = por %p306, %p307
      %p309 = scmp.ne.s32.totalorder %s301, %s303
      %p310 = scmp.eq.s32.totalorder %s27, 1
      %p311 = por %p309, %p310
      %p312 = scmp.ne.s32.totalorder %s303, %s304
      %p313 = scmp.eq.s32.totalorder %s27, 0
      %p314 = por %p312, %p313
      %p315 = scmp.ne.s32.totalorder %s303, %s304
      %p316 = scmp.eq.s32.totalorder %s28, 1
      %p317 = por %p315, %p316
      %p319 = scmp.ne.s32.totalorder %s304, %s318
      %p320 = scmp.eq.s32.totalorder %s28, 0
      %p321 = por %p319, %p320
      %s322 = ssub.s32 %s29, %s41
      %s323 = ssub.s32 %s30, %s37
      %s324 = sor.u32 %s322, %s323
      %p325 = scmp.eq.s32.totalorder %s324, 0
      %s327 = sadd.s32 %s326, 1
      %s328 = scalar_select %p325, %s326, %s327
      %p331 = pneg %p325
      %p332 = scmp.eq.s32.totalorder %s22, 1
      %p333 = por %p331, %p332
      %p334 = scmp.ne.s32.totalorder %s326, %s329
      %p335 = scmp.eq.s32.totalorder %s22, 0
      %p336 = por %p334, %p335
      %p337 = scmp.ne.s32.totalorder %s326, %s329
      %p338 = scmp.eq.s32.totalorder %s27, 1
      %p339 = por %p337, %p338
      %p340 = scmp.ne.s32.totalorder %s329, %s330
      %p341 = scmp.eq.s32.totalorder %s27, 0
      %p342 = por %p340, %p341
      %p343 = scmp.ne.s32.totalorder %s329, %s330
      %p344 = scmp.eq.s32.totalorder %s28, 1
      %p345 = por %p343, %p344
      %p347 = scmp.ne.s32.totalorder %s330, %s346
      %p348 = scmp.eq.s32.totalorder %s28, 0
      %p349 = por %p347, %p348
      %p350 = scmp.le.s32.totalorder 1, %s22
      %p351 = scmp.lt.s32.totalorder %s22, 3
      %p352 = pnand %p350, %p351
      %p353 = pneg %p352
      // Predicated region
      $region9: #{tpu_custom_call.1} parent=5 // pred_check
        _
      $region10: #{tpu_custom_call.1} parent=5 // pred_check_branch
        %355 = sbr.rel (%p352) target = $region12
      $region11: #{tpu_custom_call.1} parent=5 // pred_region
        %s356 = ssub.s32 %s22, 1
        // Predicated region
        $region13: #{tpu_custom_call.1} parent=11 // pred_check
          %p357 = pneg %p83
        $region14: #{tpu_custom_call.1} parent=11 // pred_check_branch
          %359 = sbr.rel (%p357) target = $region16
        $region15: #{tpu_custom_call.1} parent=11 // pred_region
          _
        $region16: #{tpu_custom_call.1} parent=11 // pred_fallthru
          _
        // Predicated region
        $region17: #{tpu_custom_call.1} parent=11 // pred_check
          %p360 = pneg %p104
        $region18: #{tpu_custom_call.1} parent=11 // pred_check_branch
          %362 = sbr.rel (%p360) target = $region20
        $region19: #{tpu_custom_call.1} parent=11 // pred_region
          _
        $region20: #{tpu_custom_call.1} parent=11 // pred_fallthru
          _
        // Predicated region
        $region21: #{tpu_custom_call.1} parent=11 // pred_check
          %p363 = pneg %p125
        $region22: #{tpu_custom_call.1} parent=11 // pred_check_branch
          %365 = sbr.rel (%p363) target = $region24
        $region23: #{tpu_custom_call.1} parent=11 // pred_region
          _
        $region24: #{tpu_custom_call.1} parent=11 // pred_fallthru
          _
        // Predicated region
        $region25: #{tpu_custom_call.1} parent=11 // pred_check
          %p366 = pneg %p146
        $region26: #{tpu_custom_call.1} parent=11 // pred_check_branch
          %368 = sbr.rel (%p366) target = $region28
        $region27: #{tpu_custom_call.1} parent=11 // pred_region
          _
        $region28: #{tpu_custom_call.1} parent=11 // pred_fallthru
          _
        // Predicated region
        $region29: #{tpu_custom_call.1} parent=11 // pred_check
          %p369 = pneg %p167
        $region30: #{tpu_custom_call.1} parent=11 // pred_check_branch
          %371 = sbr.rel (%p369) target = $region32
        $region31: #{tpu_custom_call.1} parent=11 // pred_region
          _
        $region32: #{tpu_custom_call.1} parent=11 // pred_fallthru
          _
        // Predicated region
        $region33: #{tpu_custom_call.1} parent=11 // pred_check
          %p372 = pneg %p188
        $region34: #{tpu_custom_call.1} parent=11 // pred_check_branch
          %374 = sbr.rel (%p372) target = $region36
        $region35: #{tpu_custom_call.1} parent=11 // pred_region
          _
        $region36: #{tpu_custom_call.1} parent=11 // pred_fallthru
          _
        // Predicated region
        $region37: #{tpu_custom_call.1} parent=11 // pred_check
          %p375 = pneg %p209
        $region38: #{tpu_custom_call.1} parent=11 // pred_check_branch
          %377 = sbr.rel (%p375) target = $region40
        $region39: #{tpu_custom_call.1} parent=11 // pred_region
          _
        $region40: #{tpu_custom_call.1} parent=11 // pred_fallthru
          _
        // Predicated region
        $region41: #{tpu_custom_call.1} parent=11 // pred_check
          %p378 = pneg %p230
        $region42: #{tpu_custom_call.1} parent=11 // pred_check_branch
          %380 = sbr.rel (%p378) target = $region44
        $region43: #{tpu_custom_call.1} parent=11 // pred_region
          _
        $region44: #{tpu_custom_call.1} parent=11 // pred_fallthru
          _
        // Predicated region
        $region45: #{tpu_custom_call.1} parent=11 // pred_check
          %p381 = pneg %p251
        $region46: #{tpu_custom_call.1} parent=11 // pred_check_branch
          %383 = sbr.rel (%p381) target = $region48
        $region47: #{tpu_custom_call.1} parent=11 // pred_region
          _
        $region48: #{tpu_custom_call.1} parent=11 // pred_fallthru
          _
        // Predicated region
        $region49: #{tpu_custom_call.1} parent=11 // pred_check
          %p384 = pneg %p272
        $region50: #{tpu_custom_call.1} parent=11 // pred_check_branch
          %386 = sbr.rel (%p384) target = $region52
        $region51: #{tpu_custom_call.1} parent=11 // pred_region
          _
        $region52: #{tpu_custom_call.1} parent=11 // pred_fallthru
          _
        // Predicated region
        $region53: #{tpu_custom_call.1} parent=11 // pred_check
          %p387 = pneg %p293
        $region54: #{tpu_custom_call.1} parent=11 // pred_check_branch
          %389 = sbr.rel (%p387) target = $region56
        $region55: #{tpu_custom_call.1} parent=11 // pred_region
          _
        $region56: #{tpu_custom_call.1} parent=11 // pred_fallthru
          _
        // Predicated region
        $region57: #{tpu_custom_call.1} parent=11 // pred_check
          %p390 = pneg %p314
        $region58: #{tpu_custom_call.1} parent=11 // pred_check_branch
          %392 = sbr.rel (%p390) target = $region60
        $region59: #{tpu_custom_call.1} parent=11 // pred_region
          _
        $region60: #{tpu_custom_call.1} parent=11 // pred_fallthru
          _
      $region12: #{tpu_custom_call.1} parent=5 // pred_fallthru
        _
      %p393 = scmp.lt.s32.totalorder %s22, 2
      // Predicated region
      $region61: #{tpu_custom_call.1} parent=5 // pred_check
        %p394 = pneg %p393
      $region62: #{tpu_custom_call.1} parent=5 // pred_check_branch
        %396 = sbr.rel (%p394) target = $region64
      $region63: #{tpu_custom_call.1} parent=5 // pred_region
        // Predicated region
        $region65: #{tpu_custom_call.1} parent=63 // pred_check
          %p397 = pneg %p56
        $region66: #{tpu_custom_call.1} parent=63 // pred_check_branch
          %399 = sbr.rel (%p397) target = $region68
        $region67: #{tpu_custom_call.1} parent=63 // pred_region
          %p400 = scmp.lt.s32.totalorder %s29, 1
          %s401 = scalar_select %p400, %s29, 1
          %p402 = scmp.lt.s32.totalorder %s30, 0
          %s403 = scalar_select %p402, %s30, 0
          %s404 = sadd.s32 %s403, %s401
          %s405 = smul.addr %s404, 8
          %s406 = scalar_lea.vmem %s0, %s405
        $region68: #{tpu_custom_call.1} parent=63 // pred_fallthru
          _
      $region64: #{tpu_custom_call.1} parent=5 // pred_fallthru
        _
      %p407 = scmp.le.s32.totalorder 1, %s22
      %p408 = scmp.lt.s32.totalorder %s22, 3
      %p409 = pnand %p407, %p408
      %p410 = pneg %p409
      // Predicated region
      $region69: #{tpu_custom_call.1} parent=5 // pred_check
        _
      $region70: #{tpu_custom_call.1} parent=5 // pred_check_branch
        %412 = sbr.rel (%p409) target = $region72
      $region71: #{tpu_custom_call.1} parent=5 // pred_region
        %s413 = ssub.s32 %s22, 1
        %p414 = scmp.lt.s32.totalorder %s31, 1
        %s415 = scalar_select %p414, %s31, 1
        %p416 = scmp.lt.s32.totalorder %s32, 0
        %s417 = scalar_select %p416, %s32, 0
        %s418 = sadd.s32 %s417, %s415
        %s419 = smul.addr %s418, 8
        %s420 = scalar_lea.vmem %s0, %s419
        %p421 = pneg %p62
        %p422 = pneg %p59
        %p423 = pneg %p83
        %p424 = pneg %p80
        %p425 = pneg %p104
        %p426 = pneg %p101
        %p427 = pneg %p125
        %p428 = pneg %p122
        %p429 = pneg %p146
        %p430 = pneg %p143
        %p431 = pneg %p167
        %p432 = pneg %p164
        %p433 = pneg %p188
        %p434 = pneg %p185
        %p435 = pneg %p209
        %p436 = pneg %p206
        %p437 = pneg %p230
        %p438 = pneg %p227
        %p439 = pneg %p251
        %p440 = pneg %p248
        %p441 = pneg %p272
        %p442 = pneg %p269
        %p443 = pneg %p293
        %p444 = pneg %p290
        %p445 = pneg %p314
        %p446 = pneg %p311
        %p447 = pneg %p342
        %p448 = pneg %p339
        %s449 = sand.u32 %s329, 1
        %s450 = scalar_lea.sflag [#allocation5], %s449
        %s451 = sand.u32 %s329, 1
        %s452 = smul.addr %s451, 8
        %s453 = scalar_lea.vmem [#allocation4], %s452
        %p454 = scmp.lt.s32.totalorder %s31, 1
        %s455 = scalar_select %p454, %s31, 1
        %p456 = scmp.lt.s32.totalorder %s32, 0
        %s457 = scalar_select %p456, %s32, 0
        %s458 = sadd.s32 %s457, %s455
        %s459 = smul.addr %s458, 8
        %s460 = scalar_lea.vmem %s0, %s459
        %s462 = smul.u32 %s32, 8
        %v463 = vld [vmem:[%s460] sm:$0xff]
        %v464 = vld [vmem:[%s1] sm:$0x1]
        %v465 = vld [vmem:[%s2] sm:$0x1]
        %vm466 = vcmask 261120
        %v467 = vsel %vm466, %v463, 0.0
        %468 = vadd.xlane.f32.xlu0 %v467
        %v469 = vpop.xlane.xlu0 %468
        %v470 = vrcp.pop 32.0
        %v471 = vmul.f32 %v469, %v470
        %v472 = vsub.f32 %v463, %v471
        %v473 = vmul.f32 %v472, %v472
        %v474 = vsel %vm466, %v473, 0.0
        %475 = vadd.xlane.f32.xlu0 %v474
        %v476 = vpop.xlane.xlu0 %475
        %v477 = vmul.f32 %v476, %v470
        %v478 = vadd.f32 %v477, 1e-05
        %v479 = vrsqrt.pop %v478
        %v480 = vmul.f32 %v472, %v479
        %v482 = vlaneseq
        %v483 = vshrl.u32 %v482, 7
        %v484 = vsub.s32 0, %v483
        %v485 = vrot.slane %v464, %v484
        %v487 = vmul.f32 %v480, %v485
        %v489 = vlaneseq
        %v490 = vshrl.u32 %v489, 7
        %v491 = vsub.s32 0, %v490
        %v492 = vrot.slane %v465, %v491
        %v494 = vadd.f32 %v487, %v492
        %v495 = vpack.c.bf16 %v494, %v494
        loop: start=0, step=1, limit=4
        $region73: #{tpu_custom_call.1} parent=71 // loop_pre_header
          _
        $region74: #{tpu_custom_call.1} parent=71 // loop_header
          %s497 = sphi 0, %s501
          %p498 = scmp.ge.s32.totalorder %s497, 4
        $region75: #{tpu_custom_call.1} parent=71 // loop_header_branch
          %500 = sbr.rel (%p498) target = $region79
        $region76: #{tpu_custom_call.1} parent=71 // loop_body
          %s502 = smul.u32 %s497, 4
          %s503 = smul.addr %s502, 4
          %s504 = scalar_lea.vmem %s3, %s503
          %v505 = vld [vmem:[%s504] sm:$0xf]
          %v506 = vld [vmem:[%s504 + $0x4] sm:$0xf]
          %v507 = vld [vmem:[%s504 + $0x8] sm:$0xf]
          %v508 = vld [vmem:[%s504 + $0xc] sm:$0xf]
          %s509 = scalar_lea.vmem %s4, %s497
          %v510 = vld [vmem:[%s509] sm:$0x1]
          %v512 = vlaneseq
          %v513 = vshrl.u32 %v512, 7
          %v514 = vsub.s32 0, %v513
          %v515 = vrot.slane %v510, %v514
          %v521 = vunpack.c.l.b16 %v505
          %v522 = vunpack.c.l.b16 %v506
          %v523 = vunpack.c.l.b16 %v507
          %v524 = vunpack.c.l.b16 %v508
          %v525 = vpack.c.b16 %v522, %v521
          %v526 = vpack.c.b16 %v524, %v523
          %v530 = vsel %vm466, %v495, 0
          %532 = vmatprep.subr.bf16.mxu0 0
          %533 = vmatpush1.bf16.msra.mxu0 %v525
          %534 = vmatprep.subr.bf16.mxu0 0
          %535 = vmatpush1.bf16.msra.mxu0 %v526
          %536 = vmatprep.subr.bf16.mxu0 0
          %537 = vmatpush1.bf16.msra.mxu0 0
          %538 = vmatprep.subr.bf16.mxu0 0
          %539 = vmatpush1.bf16.msra.mxu0 0
          %540 = vmatprep.subr.bf16.mxu0 0
          %541 = vmatpush1.bf16.msra.mxu0 0
          %542 = vmatprep.subr.bf16.mxu0 0
          %543 = vmatpush1.bf16.msra.mxu0 0
          %544 = vmatprep.subr.bf16.mxu0 0
          %545 = vmatpush1.bf16.msra.mxu0 0
          %546 = vmatprep.subr.bf16.mxu0 0
          %547 = vmatpush1.bf16.msra.mxu0 0
          %548 = vmatprep.subr.bf16.mxu0 0
          %549 = vmatpush1.bf16.msra.mxu0 0
          %550 = vmatprep.subr.bf16.mxu0 0
          %551 = vmatpush1.bf16.msra.mxu0 0
          %552 = vmatprep.subr.bf16.mxu0 0
          %553 = vmatpush1.bf16.msra.mxu0 0
          %554 = vmatprep.subr.bf16.mxu0 0
          %555 = vmatpush1.bf16.msra.mxu0 0
          %556 = vmatprep.subr.bf16.mxu0 0
          %557 = vmatpush1.bf16.msra.mxu0 0
          %558 = vmatprep.subr.bf16.mxu0 0
          %559 = vmatpush1.bf16.msra.mxu0 0
          %560 = vmatprep.subr.bf16.mxu0 0
          %561 = vmatpush1.bf16.msra.mxu0 0
          %562 = vmatprep.subr.bf16.mxu0 0
          %563 = vmatpush1.bf16.msra.mxu0 0
          %564 = vmatprep.mubr.bf16.mxu0 0
          %565 = vmatmul.mubr.bf16.gmra.mrb[0].mxu0 %v530
          %v566 = vpop.f32.mrb[0].mxu0
          %v567 = vadd.f32 %v515, %v566
          %v568 = vpop.f32.mrb[0].mxu0
          %v569 = vpop.f32.mrb[0].mxu0
          %v570 = vpop.f32.mrb[0].mxu0
          %571 = vdwg.mxu0
          %v572 = vpack.c.bf16 %v567, %v567
          %s573 = sshra.s32 %s462, 3
          %s574 = sand.u32 %s462, 7
          %s575 = sadd.s32 %s573, %s497
          %s576 = smul.addr %s575, 4
          %s577 = scalar_lea.vmem [#allocation2], %s576
          %vm578 = vcmask 60416
          %579 = vst.msk [vmem:[%s577] sm:$0xf] %vm578, %v572
        $region77: #{tpu_custom_call.1} parent=71 // loop_footer
          %s501 = sadd.s32 1, %s497
        $region78: #{tpu_custom_call.1} parent=71 // loop_footer_branch
          %496 = sbr.rel target = $region74
        $region79: #{tpu_custom_call.1} parent=71 // loop_exit
          _
        %s580 = sshra.s32 %s462, 3
        %s581 = sand.u32 %s462, 7
        %s582 = smul.addr %s580, 4
        %s583 = scalar_lea.vmem [#allocation2], %s582
        %v584 = vld [vmem:[%s583] sm:$0xf]
        %v585 = vld [vmem:[%s583 + $0x4] sm:$0xf]
        %v586 = vld [vmem:[%s583 + $0x8] sm:$0xf]
        %v587 = vld [vmem:[%s583 + $0xc] sm:$0xf]
        %v588 = vlaneseq
        %v589 = vshrl.u32 %v588, 7
        %v590 = vstv %s462
        %v591 = vadd.s32 %v590, %v589
        %v592 = vlaneseq
        %v593 = vand.u32 %v592, 127
        %s594 = sadd.s32 %s32, 1
        // While loop
        $region80: #{tpu_custom_call.1} parent=71 // loop_pre_header
          _
        $region81: #{tpu_custom_call.1} parent=71 // loop_header
          %s596 = sphi 0, %s598
          %p597 = scmp.ge.s32.totalorder %s596, %s594
          %v601 = vphi -1e+30, %v832
          %v602 = vphi -1e+30, %v833
          %v603 = vphi -1e+30, %v834
          %v604 = vphi -1e+30, %v835
          %v605 = vphi 0.0, %v876
          %v606 = vphi 0.0, %v877
          %v607 = vphi 0.0, %v878
          %v608 = vphi 0.0, %v879
          %v609 = vphi 0.0, %v1069
          %v610 = vphi 0.0, %v1070
          %v611 = vphi 0.0, %v1071
          %v612 = vphi 0.0, %v1072
        $region82: #{tpu_custom_call.1} parent=71 // loop_header_branch
          %600 = sbr.rel (%p597) target = $region86
        $region83: #{tpu_custom_call.1} parent=71 // loop_body
          %s613 = smul.u32 %s596, 8
          %s614 = sshra.s32 %s613, 3
          %s615 = sand.u32 %s613, 7
          %s616 = smul.addr %s614, 4
          %s617 = scalar_lea.vmem [#allocation2], %s616
          %v618 = vld [vmem:[%s617] sm:$0xf]
          %v619 = vld [vmem:[%s617 + $0x4] sm:$0xf]
          %v620 = vld [vmem:[%s617 + $0x8] sm:$0xf]
          %v621 = vld [vmem:[%s617 + $0xc] sm:$0xf]
          %vm622 = vcmask 64512
          %v624 = vsel %vm622, %v584, 0
          %v627 = vsel %vm622, %v618, 0
          %629 = vmatprep.subr.bf16.mxu0 0
          %630 = vmatpush1.bf16.xpose.msra.mxu0 %v627
          %631 = vmatprep.subr.bf16.mxu0 0
          %632 = vmatpush1.bf16.xpose.msra.mxu0 0
          %633 = vmatprep.subr.bf16.mxu0 0
          %634 = vmatpush1.bf16.xpose.msra.mxu0 0
          %635 = vmatprep.subr.bf16.mxu0 0
          %636 = vmatpush1.bf16.xpose.msra.mxu0 0
          %637 = vmatprep.subr.bf16.mxu0 0
          %638 = vmatpush1.bf16.xpose.msra.mxu0 0
          %639 = vmatprep.subr.bf16.mxu0 0
          %640 = vmatpush1.bf16.xpose.msra.mxu0 0
          %641 = vmatprep.subr.bf16.mxu0 0
          %642 = vmatpush1.bf16.xpose.msra.mxu0 0
          %643 = vmatprep.subr.bf16.mxu0 0
          %644 = vmatpush1.bf16.xpose.msra.mxu0 0
          %645 = vmatprep.subr.bf16.mxu0 0
          %646 = vmatpush1.bf16.xpose.msra.mxu0 0
          %647 = vmatprep.subr.bf16.mxu0 0
          %648 = vmatpush1.bf16.xpose.msra.mxu0 0
          %649 = vmatprep.subr.bf16.mxu0 0
          %650 = vmatpush1.bf16.xpose.msra.mxu0 0
          %651 = vmatprep.subr.bf16.mxu0 0
          %652 = vmatpush1.bf16.xpose.msra.mxu0 0
          %653 = vmatprep.subr.bf16.mxu0 0
          %654 = vmatpush1.bf16.xpose.msra.mxu0 0
          %655 = vmatprep.subr.bf16.mxu0 0
          %656 = vmatpush1.bf16.xpose.msra.mxu0 0
          %657 = vmatprep.subr.bf16.mxu0 0
          %658 = vmatpush1.bf16.xpose.msra.mxu0 0
          %659 = vmatprep.subr.bf16.mxu0 0
          %660 = vmatpush1.bf16.xpose.msra.mxu0 0
          %661 = vmatprep.mubr.bf16.mxu0 0
          %662 = vmatmul.mubr.bf16.gmra.mrb[0].mxu0 %v624
          %v663 = vpop.f32.mrb[0].mxu0
          %v664 = vadd.f32 0.0, %v663
          %v665 = vpop.f32.mrb[0].mxu0
          %v666 = vpop.f32.mrb[0].mxu0
          %v667 = vpop.f32.mrb[0].mxu0
          %668 = vdwg.mxu0
          %v670 = vsel %vm622, %v585, 0
          %v673 = vsel %vm622, %v619, 0
          %675 = vmatprep.subr.bf16.mxu0 0
          %676 = vmatpush1.bf16.xpose.msra.mxu0 %v673
          %677 = vmatprep.subr.bf16.mxu0 0
          %678 = vmatpush1.bf16.xpose.msra.mxu0 0
          %679 = vmatprep.subr.bf16.mxu0 0
          %680 = vmatpush1.bf16.xpose.msra.mxu0 0
          %681 = vmatprep.subr.bf16.mxu0 0
          %682 = vmatpush1.bf16.xpose.msra.mxu0 0
          %683 = vmatprep.subr.bf16.mxu0 0
          %684 = vmatpush1.bf16.xpose.msra.mxu0 0
          %685 = vmatprep.subr.bf16.mxu0 0
          %686 = vmatpush1.bf16.xpose.msra.mxu0 0
          %687 = vmatprep.subr.bf16.mxu0 0
          %688 = vmatpush1.bf16.xpose.msra.mxu0 0
          %689 = vmatprep.subr.bf16.mxu0 0
          %690 = vmatpush1.bf16.xpose.msra.mxu0 0
          %691 = vmatprep.subr.bf16.mxu0 0
          %692 = vmatpush1.bf16.xpose.msra.mxu0 0
          %693 = vmatprep.subr.bf16.mxu0 0
          %694 = vmatpush1.bf16.xpose.msra.mxu0 0
          %695 = vmatprep.subr.bf16.mxu0 0
          %696 = vmatpush1.bf16.xpose.msra.mxu0 0
          %697 = vmatprep.subr.bf16.mxu0 0
          %698 = vmatpush1.bf16.xpose.msra.mxu0 0
          %699 = vmatprep.subr.bf16.mxu0 0
          %700 = vmatpush1.bf16.xpose.msra.mxu0 0
          %701 = vmatprep.subr.bf16.mxu0 0
          %702 = vmatpush1.bf16.xpose.msra.mxu0 0
          %703 = vmatprep.subr.bf16.mxu0 0
          %704 = vmatpush1.bf16.xpose.msra.mxu0 0
          %705 = vmatprep.subr.bf16.mxu0 0
          %706 = vmatpush1.bf16.xpose.msra.mxu0 0
          %707 = vmatprep.mubr.bf16.mxu0 0
          %708 = vmatmul.mubr.bf16.gmra.mrb[0].mxu0 %v670
          %v709 = vpop.f32.mrb[0].mxu0
          %v710 = vadd.f32 0.0, %v709
          %v711 = vpop.f32.mrb[0].mxu0
          %v712 = vpop.f32.mrb[0].mxu0
          %v713 = vpop.f32.mrb[0].mxu0
          %714 = vdwg.mxu0
          %v716 = vsel %vm622, %v586, 0
          %v719 = vsel %vm622, %v620, 0
          %721 = vmatprep.subr.bf16.mxu0 0
          %722 = vmatpush1.bf16.xpose.msra.mxu0 %v719
          %723 = vmatprep.subr.bf16.mxu0 0
          %724 = vmatpush1.bf16.xpose.msra.mxu0 0
          %725 = vmatprep.subr.bf16.mxu0 0
          %726 = vmatpush1.bf16.xpose.msra.mxu0 0
          %727 = vmatprep.subr.bf16.mxu0 0
          %728 = vmatpush1.bf16.xpose.msra.mxu0 0
          %729 = vmatprep.subr.bf16.mxu0 0
          %730 = vmatpush1.bf16.xpose.msra.mxu0 0
          %731 = vmatprep.subr.bf16.mxu0 0
          %732 = vmatpush1.bf16.xpose.msra.mxu0 0
          %733 = vmatprep.subr.bf16.mxu0 0
          %734 = vmatpush1.bf16.xpose.msra.mxu0 0
          %735 = vmatprep.subr.bf16.mxu0 0
          %736 = vmatpush1.bf16.xpose.msra.mxu0 0
          %737 = vmatprep.subr.bf16.mxu0 0
          %738 = vmatpush1.bf16.xpose.msra.mxu0 0
          %739 = vmatprep.subr.bf16.mxu0 0
          %740 = vmatpush1.bf16.xpose.msra.mxu0 0
          %741 = vmatprep.subr.bf16.mxu0 0
          %742 = vmatpush1.bf16.xpose.msra.mxu0 0
          %743 = vmatprep.subr.bf16.mxu0 0
          %744 = vmatpush1.bf16.xpose.msra.mxu0 0
          %745 = vmatprep.subr.bf16.mxu0 0
          %746 = vmatpush1.bf16.xpose.msra.mxu0 0
          %747 = vmatprep.subr.bf16.mxu0 0
          %748 = vmatpush1.bf16.xpose.msra.mxu0 0
          %749 = vmatprep.subr.bf16.mxu0 0
          %750 = vmatpush1.bf16.xpose.msra.mxu0 0
          %751 = vmatprep.subr.bf16.mxu0 0
          %752 = vmatpush1.bf16.xpose.msra.mxu0 0
          %753 = vmatprep.mubr.bf16.mxu0 0
          %754 = vmatmul.mubr.bf16.gmra.mrb[0].mxu0 %v716
          %v755 = vpop.f32.mrb[0].mxu0
          %v756 = vadd.f32 0.0, %v755
          %v757 = vpop.f32.mrb[0].mxu0
          %v758 = vpop.f32.mrb[0].mxu0
          %v759 = vpop.f32.mrb[0].mxu0
          %760 = vdwg.mxu0
          %v762 = vsel %vm622, %v587, 0
          %v765 = vsel %vm622, %v621, 0
          %767 = vmatprep.subr.bf16.mxu0 0
          %768 = vmatpush1.bf16.xpose.msra.mxu0 %v765
          %769 = vmatprep.subr.bf16.mxu0 0
          %770 = vmatpush1.bf16.xpose.msra.mxu0 0
          %771 = vmatprep.subr.bf16.mxu0 0
          %772 = vmatpush1.bf16.xpose.msra.mxu0 0
          %773 = vmatprep.subr.bf16.mxu0 0
          %774 = vmatpush1.bf16.xpose.msra.mxu0 0
          %775 = vmatprep.subr.bf16.mxu0 0
          %776 = vmatpush1.bf16.xpose.msra.mxu0 0
          %777 = vmatprep.subr.bf16.mxu0 0
          %778 = vmatpush1.bf16.xpose.msra.mxu0 0
          %779 = vmatprep.subr.bf16.mxu0 0
          %780 = vmatpush1.bf16.xpose.msra.mxu0 0
          %781 = vmatprep.subr.bf16.mxu0 0
          %782 = vmatpush1.bf16.xpose.msra.mxu0 0
          %783 = vmatprep.subr.bf16.mxu0 0
          %784 = vmatpush1.bf16.xpose.msra.mxu0 0
          %785 = vmatprep.subr.bf16.mxu0 0
          %786 = vmatpush1.bf16.xpose.msra.mxu0 0
          %787 = vmatprep.subr.bf16.mxu0 0
          %788 = vmatpush1.bf16.xpose.msra.mxu0 0
          %789 = vmatprep.subr.bf16.mxu0 0
          %790 = vmatpush1.bf16.xpose.msra.mxu0 0
          %791 = vmatprep.subr.bf16.mxu0 0
          %792 = vmatpush1.bf16.xpose.msra.mxu0 0
          %793 = vmatprep.subr.bf16.mxu0 0
          %794 = vmatpush1.bf16.xpose.msra.mxu0 0
          %795 = vmatprep.subr.bf16.mxu0 0
          %796 = vmatpush1.bf16.xpose.msra.mxu0 0
          %797 = vmatprep.subr.bf16.mxu0 0
          %798 = vmatpush1.bf16.xpose.msra.mxu0 0
          %799 = vmatprep.mubr.bf16.mxu0 0
          %800 = vmatmul.mubr.bf16.gmra.mrb[0].mxu0 %v762
          %v801 = vpop.f32.mrb[0].mxu0
          %v802 = vadd.f32 0.0, %v801
          %v803 = vpop.f32.mrb[0].mxu0
          %v804 = vpop.f32.mrb[0].mxu0
          %v805 = vpop.f32.mrb[0].mxu0
          %806 = vdwg.mxu0
          %v807 = vmul.f32 %v664, 0.35355338
          %v808 = vmul.f32 %v710, 0.35355338
          %v809 = vmul.f32 %v756, 0.35355338
          %v810 = vmul.f32 %v802, 0.35355338
          %v811 = vstv %s613
          %v812 = vadd.s32 %v811, %v593
          %vm813 = vcmp.le.s32.totalorder %v812, %v591
          %v814 = vsel %vm813, 1, 0
          %vm815 = vcmp.eq.s32.totalorder %v814, 1
          %v816 = vsel %vm815, %v807, -1e+30
          %v817 = vsel %vm815, %v808, -1e+30
          %v818 = vsel %vm815, %v809, -1e+30
          %v819 = vsel %vm815, %v810, -1e+30
          %v820 = vsel %vm622, %v816, -inf
          %821 = vmax.xlane.f32.xlu0 %v820
          %v822 = vpop.xlane.xlu0 %821
          %v823 = vsel %vm622, %v817, -inf
          %824 = vmax.xlane.f32.xlu0 %v823
          %v825 = vpop.xlane.xlu0 %824
          %v826 = vsel %vm622, %v818, -inf
          %827 = vmax.xlane.f32.xlu0 %v826
          %v828 = vpop.xlane.xlu0 %827
          %v829 = vsel %vm622, %v819, -inf
          %830 = vmax.xlane.f32.xlu0 %v829
          %v831 = vpop.xlane.xlu0 %830
          %v832 = vmax.f32 %v601, %v822
          %v833 = vmax.f32 %v602, %v825
          %v834 = vmax.f32 %v603, %v828
          %v835 = vmax.f32 %v604, %v831
          %v836 = vsub.f32 %v601, %v832
          %v837 = vsub.f32 %v602, %v833
          %v838 = vsub.f32 %v603, %v834
          %v839 = vsub.f32 %v604, %v835
          %v840 = vmul.f32 %v836, 1.442695
          %v841 = vpow.pop %v840
          %v842 = vmul.f32 %v837, 1.442695
          %v843 = vpow.pop %v842
          %v844 = vmul.f32 %v838, 1.442695
          %v845 = vpow.pop %v844
          %v846 = vmul.f32 %v839, 1.442695
          %v847 = vpow.pop %v846
          %v848 = vsub.f32 %v816, %v832
          %v849 = vsub.f32 %v817, %v833
          %v850 = vsub.f32 %v818, %v834
          %v851 = vsub.f32 %v819, %v835
          %v852 = vmul.f32 %v848, 1.442695
          %v853 = vpow.pop %v852
          %v854 = vmul.f32 %v849, 1.442695
          %v855 = vpow.pop %v854
          %v856 = vmul.f32 %v850, 1.442695
          %v857 = vpow.pop %v856
          %v858 = vmul.f32 %v851, 1.442695
          %v859 = vpow.pop %v858
          %v860 = vmul.f32 %v841, %v605
          %v861 = vmul.f32 %v843, %v606
          %v862 = vmul.f32 %v845, %v607
          %v863 = vmul.f32 %v847, %v608
          %v864 = vsel %vm622, %v853, 0.0
          %865 = vadd.xlane.f32.xlu0 %v864
          %v866 = vpop.xlane.xlu0 %865
          %v867 = vsel %vm622, %v855, 0.0
          %868 = vadd.xlane.f32.xlu0 %v867
          %v869 = vpop.xlane.xlu0 %868
          %v870 = vsel %vm622, %v857, 0.0
          %871 = vadd.xlane.f32.xlu0 %v870
          %v872 = vpop.xlane.xlu0 %871
          %v873 = vsel %vm622, %v859, 0.0
          %874 = vadd.xlane.f32.xlu0 %v873
          %v875 = vpop.xlane.xlu0 %874
          %v876 = vadd.f32 %v860, %v866
          %v877 = vadd.f32 %v861, %v869
          %v878 = vadd.f32 %v862, %v872
          %v879 = vadd.f32 %v863, %v875
          %v880 = vpack.c.bf16 %v853, %v853
          %v881 = vpack.c.bf16 %v855, %v855
          %v882 = vpack.c.bf16 %v857, %v857
          %v883 = vpack.c.bf16 %v859, %v859
          %v885 = vsel %vm622, %v880, 0
          %vm887 = vcmask 1043456
          %v888 = vsel %vm887, %v618, 0
          %890 = vmatprep.subr.bf16.mxu0 0
          %891 = vmatpush1.bf16.msra.mxu0 %v888
          %892 = vmatprep.subr.bf16.mxu0 0
          %893 = vmatpush1.bf16.msra.mxu0 0
          %894 = vmatprep.subr.bf16.mxu0 0
          %895 = vmatpush1.bf16.msra.mxu0 0
          %896 = vmatprep.subr.bf16.mxu0 0
          %897 = vmatpush1.bf16.msra.mxu0 0
          %898 = vmatprep.subr.bf16.mxu0 0
          %899 = vmatpush1.bf16.msra.mxu0 0
          %900 = vmatprep.subr.bf16.mxu0 0
          %901 = vmatpush1.bf16.msra.mxu0 0
          %902 = vmatprep.subr.bf16.mxu0 0
          %903 = vmatpush1.bf16.msra.mxu0 0
          %904 = vmatprep.subr.bf16.mxu0 0
          %905 = vmatpush1.bf16.msra.mxu0 0
          %906 = vmatprep.subr.bf16.mxu0 0
          %907 = vmatpush1.bf16.msra.mxu0 0
          %908 = vmatprep.subr.bf16.mxu0 0
          %909 = vmatpush1.bf16.msra.mxu0 0
          %910 = vmatprep.subr.bf16.mxu0 0
          %911 = vmatpush1.bf16.msra.mxu0 0
          %912 = vmatprep.subr.bf16.mxu0 0
          %913 = vmatpush1.bf16.msra.mxu0 0
          %914 = vmatprep.subr.bf16.mxu0 0
          %915 = vmatpush1.bf16.msra.mxu0 0
          %916 = vmatprep.subr.bf16.mxu0 0
          %917 = vmatpush1.bf16.msra.mxu0 0
          %918 = vmatprep.subr.bf16.mxu0 0
          %919 = vmatpush1.bf16.msra.mxu0 0
          %920 = vmatprep.subr.bf16.mxu0 0
          %921 = vmatpush1.bf16.msra.mxu0 0
          %922 = vmatprep.mubr.bf16.mxu0 0
          %923 = vmatmul.mubr.bf16.gmra.mrb[0].mxu0 %v885
          %v924 = vpop.f32.mrb[0].mxu0
          %v925 = vadd.f32 0.0, %v924
          %v926 = vpop.f32.mrb[0].mxu0
          %v927 = vpop.f32.mrb[0].mxu0
          %v928 = vpop.f32.mrb[0].mxu0
          %929 = vdwg.mxu0
          %v931 = vsel %vm622, %v881, 0
          %v933 = vsel %vm887, %v619, 0
          %935 = vmatprep.subr.bf16.mxu0 0
          %936 = vmatpush1.bf16.msra.mxu0 %v933
          %937 = vmatprep.subr.bf16.mxu0 0
          %938 = vmatpush1.bf16.msra.mxu0 0
          %939 = vmatprep.subr.bf16.mxu0 0
          %940 = vmatpush1.bf16.msra.mxu0 0
          %941 = vmatprep.subr.bf16.mxu0 0
          %942 = vmatpush1.bf16.msra.mxu0 0
          %943 = vmatprep.subr.bf16.mxu0 0
          %944 = vmatpush1.bf16.msra.mxu0 0
          %945 = vmatprep.subr.bf16.mxu0 0
          %946 = vmatpush1.bf16.msra.mxu0 0
          %947 = vmatprep.subr.bf16.mxu0 0
          %948 = vmatpush1.bf16.msra.mxu0 0
          %949 = vmatprep.subr.bf16.mxu0 0
          %950 = vmatpush1.bf16.msra.mxu0 0
          %951 = vmatprep.subr.bf16.mxu0 0
          %952 = vmatpush1.bf16.msra.mxu0 0
          %953 = vmatprep.subr.bf16.mxu0 0
          %954 = vmatpush1.bf16.msra.mxu0 0
          %955 = vmatprep.subr.bf16.mxu0 0
          %956 = vmatpush1.bf16.msra.mxu0 0
          %957 = vmatprep.subr.bf16.mxu0 0
          %958 = vmatpush1.bf16.msra.mxu0 0
          %959 = vmatprep.subr.bf16.mxu0 0
          %960 = vmatpush1.bf16.msra.mxu0 0
          %961 = vmatprep.subr.bf16.mxu0 0
          %962 = vmatpush1.bf16.msra.mxu0 0
          %963 = vmatprep.subr.bf16.mxu0 0
          %964 = vmatpush1.bf16.msra.mxu0 0
          %965 = vmatprep.subr.bf16.mxu0 0
          %966 = vmatpush1.bf16.msra.mxu0 0
          %967 = vmatprep.mubr.bf16.mxu0 0
          %968 = vmatmul.mubr.bf16.gmra.mrb[0].mxu0 %v931
          %v969 = vpop.f32.mrb[0].mxu0
          %v970 = vadd.f32 0.0, %v969
          %v971 = vpop.f32.mrb[0].mxu0
          %v972 = vpop.f32.mrb[0].mxu0
          %v973 = vpop.f32.mrb[0].mxu0
          %974 = vdwg.mxu0
          %v976 = vsel %vm622, %v882, 0
          %v978 = vsel %vm887, %v620, 0
          %980 = vmatprep.subr.bf16.mxu0 0
          %981 = vmatpush1.bf16.msra.mxu0 %v978
          %982 = vmatprep.subr.bf16.mxu0 0
          %983 = vmatpush1.bf16.msra.mxu0 0
          %984 = vmatprep.subr.bf16.mxu0 0
          %985 = vmatpush1.bf16.msra.mxu0 0
          %986 = vmatprep.subr.bf16.mxu0 0
          %987 = vmatpush1.bf16.msra.mxu0 0
          %988 = vmatprep.subr.bf16.mxu0 0
          %989 = vmatpush1.bf16.msra.mxu0 0
          %990 = vmatprep.subr.bf16.mxu0 0
          %991 = vmatpush1.bf16.msra.mxu0 0
          %992 = vmatprep.subr.bf16.mxu0 0
          %993 = vmatpush1.bf16.msra.mxu0 0
          %994 = vmatprep.subr.bf16.mxu0 0
          %995 = vmatpush1.bf16.msra.mxu0 0
          %996 = vmatprep.subr.bf16.mxu0 0
          %997 = vmatpush1.bf16.msra.mxu0 0
          %998 = vmatprep.subr.bf16.mxu0 0
          %999 = vmatpush1.bf16.msra.mxu0 0
          %1000 = vmatprep.subr.bf16.mxu0 0
          %1001 = vmatpush1.bf16.msra.mxu0 0
          %1002 = vmatprep.subr.bf16.mxu0 0
          %1003 = vmatpush1.bf16.msra.mxu0 0
          %1004 = vmatprep.subr.bf16.mxu0 0
          %1005 = vmatpush1.bf16.msra.mxu0 0
          %1006 = vmatprep.subr.bf16.mxu0 0
          %1007 = vmatpush1.bf16.msra.mxu0 0
          %1008 = vmatprep.subr.bf16.mxu0 0
          %1009 = vmatpush1.bf16.msra.mxu0 0
          %1010 = vmatprep.subr.bf16.mxu0 0
          %1011 = vmatpush1.bf16.msra.mxu0 0
          %1012 = vmatprep.mubr.bf16.mxu0 0
          %1013 = vmatmul.mubr.bf16.gmra.mrb[0].mxu0 %v976
          %v1014 = vpop.f32.mrb[0].mxu0
          %v1015 = vadd.f32 0.0, %v1014
          %v1016 = vpop.f32.mrb[0].mxu0
          %v1017 = vpop.f32.mrb[0].mxu0
          %v1018 = vpop.f32.mrb[0].mxu0
          %1019 = vdwg.mxu0
          %v1021 = vsel %vm622, %v883, 0
          %v1023 = vsel %vm887, %v621, 0
          %1025 = vmatprep.subr.bf16.mxu0 0
          %1026 = vmatpush1.bf16.msra.mxu0 %v1023
          %1027 = vmatprep.subr.bf16.mxu0 0
          %1028 = vmatpush1.bf16.msra.mxu0 0
          %1029 = vmatprep.subr.bf16.mxu0 0
          %1030 = vmatpush1.bf16.msra.mxu0 0
          %1031 = vmatprep.subr.bf16.mxu0 0
          %1032 = vmatpush1.bf16.msra.mxu0 0
          %1033 = vmatprep.subr.bf16.mxu0 0
          %1034 = vmatpush1.bf16.msra.mxu0 0
          %1035 = vmatprep.subr.bf16.mxu0 0
          %1036 = vmatpush1.bf16.msra.mxu0 0
          %1037 = vmatprep.subr.bf16.mxu0 0
          %1038 = vmatpush1.bf16.msra.mxu0 0
          %1039 = vmatprep.subr.bf16.mxu0 0
          %1040 = vmatpush1.bf16.msra.mxu0 0
          %1041 = vmatprep.subr.bf16.mxu0 0
          %1042 = vmatpush1.bf16.msra.mxu0 0
          %1043 = vmatprep.subr.bf16.mxu0 0
          %1044 = vmatpush1.bf16.msra.mxu0 0
          %1045 = vmatprep.subr.bf16.mxu0 0
          %1046 = vmatpush1.bf16.msra.mxu0 0
          %1047 = vmatprep.subr.bf16.mxu0 0
          %1048 = vmatpush1.bf16.msra.mxu0 0
          %1049 = vmatprep.subr.bf16.mxu0 0
          %1050 = vmatpush1.bf16.msra.mxu0 0
          %1051 = vmatprep.subr.bf16.mxu0 0
          %1052 = vmatpush1.bf16.msra.mxu0 0
          %1053 = vmatprep.subr.bf16.mxu0 0
          %1054 = vmatpush1.bf16.msra.mxu0 0
          %1055 = vmatprep.subr.bf16.mxu0 0
          %1056 = vmatpush1.bf16.msra.mxu0 0
          %1057 = vmatprep.mubr.bf16.mxu0 0
          %1058 = vmatmul.mubr.bf16.gmra.mrb[0].mxu0 %v1021
          %v1059 = vpop.f32.mrb[0].mxu0
          %v1060 = vadd.f32 0.0, %v1059
          %v1061 = vpop.f32.mrb[0].mxu0
          %v1062 = vpop.f32.mrb[0].mxu0
          %v1063 = vpop.f32.mrb[0].mxu0
          %1064 = vdwg.mxu0
          %v1065 = vmul.f32 %v841, %v609
          %v1066 = vmul.f32 %v843, %v610
          %v1067 = vmul.f32 %v845, %v611
          %v1068 = vmul.f32 %v847, %v612
          %v1069 = vadd.f32 %v1065, %v925
          %v1070 = vadd.f32 %v1066, %v970
          %v1071 = vadd.f32 %v1067, %v1015
          %v1072 = vadd.f32 %v1068, %v1060
        $region84: #{tpu_custom_call.1} parent=71 // loop_footer
          %s598 = sadd.s32 %s596, 1
        $region85: #{tpu_custom_call.1} parent=71 // loop_footer_branch
          %595 = sbr.rel target = $region81
        $region86: #{tpu_custom_call.1} parent=71 // loop_exit
          _
        %v1073 = vrcp.pop %v605
        %v1074 = vrcp.pop %v606
        %v1075 = vrcp.pop %v607
        %v1076 = vrcp.pop %v608
        %v1077 = vmul.f32 %v609, %v1073
        %v1078 = vmul.f32 %v610, %v1074
        %v1079 = vmul.f32 %v611, %v1075
        %v1080 = vmul.f32 %v612, %v1076
        %v1081 = vpack.c.bf16 %v1077, %v1077
        %v1082 = vpack.c.bf16 %v1078, %v1078
        %v1083 = vpack.c.bf16 %v1079, %v1079
        %v1084 = vpack.c.bf16 %v1080, %v1080
        %vm1085 = vcmask 60416
        %1086 = vst.msk [vmem:[#allocation3] sm:$0xf] %vm1085, %v1081
        %1087 = vst.msk [vmem:[#allocation3 + $0x4] sm:$0xf] %vm1085, %v1082
        %1088 = vst.msk [vmem:[#allocation3 + $0x8] sm:$0xf] %vm1085, %v1083
        %1089 = vst.msk [vmem:[#allocation3 + $0xc] sm:$0xf] %vm1085, %v1084
        %v1090 = vld [vmem:[%s6] sm:$0x1]
        %v1092 = vlaneseq
        %v1093 = vshrl.u32 %v1092, 7
        %v1094 = vsub.s32 0, %v1093
        %v1095 = vrot.slane %v1090, %v1094
        %v1097 = vadd.f32 %v463, %v1095
        loop: start=0, step=1, limit=4
        $region87: #{tpu_custom_call.1} parent=71 // loop_pre_header
          _
        $region88: #{tpu_custom_call.1} parent=71 // loop_header
          %s1099 = sphi 0, %s1103
          %p1100 = scmp.ge.s32.totalorder %s1099, 4
          %v1104 = vphi %v1097, %v1159
        $region89: #{tpu_custom_call.1} parent=71 // loop_header_branch
          %1102 = sbr.rel (%p1100) target = $region93
        $region90: #{tpu_custom_call.1} parent=71 // loop_body
          %s1105 = smul.addr %s1099, 4
          %s1106 = scalar_lea.vmem [#allocation3], %s1105
          %v1107 = vld [vmem:[%s1106] sm:$0xf]
          %s1108 = smul.addr %s1099, 4
          %s1109 = scalar_lea.vmem %s5, %s1108
          %v1110 = vld [vmem:[%s1109] sm:$0xf]
          %vm1111 = vcmask 64512
          %v1113 = vsel %vm1111, %v1107, 0
          %vm1115 = vcmask 1043456
          %v1117 = vsel %vm1115, %v1110, 0
          %1119 = vmatprep.subr.bf16.mxu0 0
          %1120 = vmatpush1.bf16.msra.mxu0 %v1117
          %1121 = vmatprep.subr.bf16.mxu0 0
          %1122 = vmatpush1.bf16.msra.mxu0 0
          %1123 = vmatprep.subr.bf16.mxu0 0
          %1124 = vmatpush1.bf16.msra.mxu0 0
          %1125 = vmatprep.subr.bf16.mxu0 0
          %1126 = vmatpush1.bf16.msra.mxu0 0
          %1127 = vmatprep.subr.bf16.mxu0 0
          %1128 = vmatpush1.bf16.msra.mxu0 0
          %1129 = vmatprep.subr.bf16.mxu0 0
          %1130 = vmatpush1.bf16.msra.mxu0 0
          %1131 = vmatprep.subr.bf16.mxu0 0
          %1132 = vmatpush1.bf16.msra.mxu0 0
          %1133 = vmatprep.subr.bf16.mxu0 0
          %1134 = vmatpush1.bf16.msra.mxu0 0
          %1135 = vmatprep.subr.bf16.mxu0 0
          %1136 = vmatpush1.bf16.msra.mxu0 0
          %1137 = vmatprep.subr.bf16.mxu0 0
          %1138 = vmatpush1.bf16.msra.mxu0 0
          %1139 = vmatprep.subr.bf16.mxu0 0
          %1140 = vmatpush1.bf16.msra.mxu0 0
          %1141 = vmatprep.subr.bf16.mxu0 0
          %1142 = vmatpush1.bf16.msra.mxu0 0
          %1143 = vmatprep.subr.bf16.mxu0 0
          %1144 = vmatpush1.bf16.msra.mxu0 0
          %1145 = vmatprep.subr.bf16.mxu0 0
          %1146 = vmatpush1.bf16.msra.mxu0 0
          %1147 = vmatprep.subr.bf16.mxu0 0
          %1148 = vmatpush1.bf16.msra.mxu0 0
          %1149 = vmatprep.subr.bf16.mxu0 0
          %1150 = vmatpush1.bf16.msra.mxu0 0
          %1151 = vmatprep.mubr.bf16.mxu0 0
          %1152 = vmatmul.mubr.bf16.gmra.mrb[0].mxu0 %v1113
          %v1153 = vpop.f32.mrb[0].mxu0
          %v1154 = vadd.f32 0.0, %v1153
          %v1155 = vpop.f32.mrb[0].mxu0
          %v1156 = vpop.f32.mrb[0].mxu0
          %v1157 = vpop.f32.mrb[0].mxu0
          %1158 = vdwg.mxu0
          %v1159 = vadd.f32 %v1104, %v1154
        $region91: #{tpu_custom_call.1} parent=71 // loop_footer
          %s1103 = sadd.s32 1, %s1099
        $region92: #{tpu_custom_call.1} parent=71 // loop_footer_branch
          %1098 = sbr.rel target = $region88
        $region93: #{tpu_custom_call.1} parent=71 // loop_exit
          _
        %v1160 = vld [vmem:[%s7] sm:$0x1]
        %v1161 = vld [vmem:[%s8] sm:$0x1]
        %v1162 = vsel %vm466, %v1104, 0.0
        %1163 = vadd.xlane.f32.xlu0 %v1162
        %v1164 = vpop.xlane.xlu0 %1163
        %v1165 = vmul.f32 %v1164, %v470
        %v1166 = vsub.f32 %v1104, %v1165
        %v1167 = vmul.f32 %v1166, %v1166
        %v1168 = vsel %vm466, %v1167, 0.0
        %1169 = vadd.xlane.f32.xlu0 %v1168
        %v1170 = vpop.xlane.xlu0 %1169
        %v1171 = vmul.f32 %v1170, %v470
        %v1172 = vadd.f32 %v1171, 1e-05
        %v1173 = vrsqrt.pop %v1172
        %v1174 = vmul.f32 %v1166, %v1173
        %v1176 = vlaneseq
        %v1177 = vshrl.u32 %v1176, 7
        %v1178 = vsub.s32 0, %v1177
        %v1179 = vrot.slane %v1160, %v1178
        %v1181 = vmul.f32 %v1174, %v1179
        %v1183 = vlaneseq
        %v1184 = vshrl.u32 %v1183, 7
        %v1185 = vsub.s32 0, %v1184
        %v1186 = vrot.slane %v1161, %v1185
        %v1188 = vadd.f32 %v1181, %v1186
        %v1189 = vpack.c.bf16 %v1188, %v1188
        %v1190 = vld [vmem:[%s9] sm:$0xf]
        %v1191 = vld [vmem:[%s9 + $0x4] sm:$0xf]
        %v1192 = vld [vmem:[%s9 + $0x8] sm:$0xf]
        %v1193 = vld [vmem:[%s9 + $0xc] sm:$0xf]
        %v1194 = vld [vmem:[%s10] sm:$0x1]
        %v1196 = vlaneseq
        %v1197 = vshrl.u32 %v1196, 7
        %v1198 = vsub.s32 0, %v1197
        %v1199 = vrot.slane %v1194, %v1198
        %v1205 = vunpack.c.l.b16 %v1190
        %v1206 = vunpack.c.l.b16 %v1191
        %v1207 = vunpack.c.l.b16 %v1192
        %v1208 = vunpack.c.l.b16 %v1193
        %v1209 = vpack.c.b16 %v1206, %v1205
        %v1210 = vpack.c.b16 %v1208, %v1207
        %v1214 = vsel %vm466, %v1189, 0
        %1216 = vmatprep.subr.bf16.mxu0 0
        %1217 = vmatpush1.bf16.msra.mxu0 %v1209
        %1218 = vmatprep.subr.bf16.mxu0 0
        %1219 = vmatpush1.bf16.msra.mxu0 %v1210
        %1220 = vmatprep.subr.bf16.mxu0 0
        %1221 = vmatpush1.bf16.msra.mxu0 0
        %1222 = vmatprep.subr.bf16.mxu0 0
        %1223 = vmatpush1.bf16.msra.mxu0 0
        %1224 = vmatprep.subr.bf16.mxu0 0
        %1225 = vmatpush1.bf16.msra.mxu0 0
        %1226 = vmatprep.subr.bf16.mxu0 0
        %1227 = vmatpush1.bf16.msra.mxu0 0
        %1228 = vmatprep.subr.bf16.mxu0 0
        %1229 = vmatpush1.bf16.msra.mxu0 0
        %1230 = vmatprep.subr.bf16.mxu0 0
        %1231 = vmatpush1.bf16.msra.mxu0 0
        %1232 = vmatprep.subr.bf16.mxu0 0
        %1233 = vmatpush1.bf16.msra.mxu0 0
        %1234 = vmatprep.subr.bf16.mxu0 0
        %1235 = vmatpush1.bf16.msra.mxu0 0
        %1236 = vmatprep.subr.bf16.mxu0 0
        %1237 = vmatpush1.bf16.msra.mxu0 0
        %1238 = vmatprep.subr.bf16.mxu0 0
        %1239 = vmatpush1.bf16.msra.mxu0 0
        %1240 = vmatprep.subr.bf16.mxu0 0
        %1241 = vmatpush1.bf16.msra.mxu0 0
        %1242 = vmatprep.subr.bf16.mxu0 0
        %1243 = vmatpush1.bf16.msra.mxu0 0
        %1244 = vmatprep.subr.bf16.mxu0 0
        %1245 = vmatpush1.bf16.msra.mxu0 0
        %1246 = vmatprep.subr.bf16.mxu0 0
        %1247 = vmatpush1.bf16.msra.mxu0 0
        %1248 = vmatprep.mubr.bf16.mxu0 0
        %1249 = vmatmul.mubr.bf16.gmra.mrb[0].mxu0 %v1214
        %v1250 = vpop.f32.mrb[0].mxu0
        %v1251 = vadd.f32 %v1199, %v1250
        %v1252 = vpop.f32.mrb[0].mxu0
        %v1253 = vpop.f32.mrb[0].mxu0
        %v1254 = vpop.f32.mrb[0].mxu0
        %1255 = vdwg.mxu0
        %v1256 = vmul.f32 %v1251, %v1251
        %v1257 = vmul.f32 %v1256, 0.035677407
        %v1258 = vadd.f32 %v1257, 0.7978846
        %v1259 = vmul.f32 %v1251, %v1258
        %v1260 = vmul.f32 %v1251, 0.5
        %v1261 = vtanh.pop %v1259
        %v1262 = vadd.f32 %v1261, 1.0
        %v1263 = vmul.f32 %v1260, %v1262
        %v1264 = vpack.c.bf16 %v1263, %v1263
        %v1265 = vld [vmem:[%s11] sm:$0xf]
        %v1266 = vld [vmem:[%s11 + $0x4] sm:$0xf]
        %v1267 = vld [vmem:[%s11 + $0x8] sm:$0xf]
        %v1268 = vld [vmem:[%s11 + $0xc] sm:$0xf]
        %v1269 = vld [vmem:[%s11 + $0x10] sm:$0xf]
        %v1270 = vld [vmem:[%s11 + $0x14] sm:$0xf]
        %v1271 = vld [vmem:[%s11 + $0x18] sm:$0xf]
        %v1272 = vld [vmem:[%s11 + $0x1c] sm:$0xf]
        %v1273 = vld [vmem:[%s11 + $0x20] sm:$0xf]
        %v1274 = vld [vmem:[%s11 + $0x24] sm:$0xf]
        %v1275 = vld [vmem:[%s11 + $0x28] sm:$0xf]
        %v1276 = vld [vmem:[%s11 + $0x2c] sm:$0xf]
        %v1277 = vld [vmem:[%s11 + $0x30] sm:$0xf]
        %v1278 = vld [vmem:[%s11 + $0x34] sm:$0xf]
        %v1279 = vld [vmem:[%s11 + $0x38] sm:$0xf]
        %v1280 = vld [vmem:[%s11 + $0x3c] sm:$0xf]
        %v1281 = vld [vmem:[%s12] sm:$0x1]
        %v1283 = vlaneseq
        %v1284 = vshrl.u32 %v1283, 7
        %v1285 = vsub.s32 0, %v1284
        %v1286 = vrot.slane %v1281, %v1285
        %v1304 = vunpack.c.l.b16 %v1265
        %v1305 = vunpack.c.l.b16 %v1266
        %v1306 = vunpack.c.l.b16 %v1267
        %v1307 = vunpack.c.l.b16 %v1268
        %v1308 = vunpack.c.l.b16 %v1269
        %v1309 = vunpack.c.l.b16 %v1270
        %v1310 = vunpack.c.l.b16 %v1271
        %v1311 = vunpack.c.l.b16 %v1272
        %v1312 = vunpack.c.l.b16 %v1273
        %v1313 = vunpack.c.l.b16 %v1274
        %v1314 = vunpack.c.l.b16 %v1275
        %v1315 = vunpack.c.l.b16 %v1276
        %v1316 = vunpack.c.l.b16 %v1277
        %v1317 = vunpack.c.l.b16 %v1278
        %v1318 = vunpack.c.l.b16 %v1279
        %v1319 = vunpack.c.l.b16 %v1280
        %v1320 = vpack.c.b16 %v1305, %v1304
        %v1321 = vpack.c.b16 %v1307, %v1306
        %v1322 = vpack.c.b16 %v1309, %v1308
        %v1323 = vpack.c.b16 %v1311, %v1310
        %v1324 = vpack.c.b16 %v1313, %v1312
        %v1325 = vpack.c.b16 %v1315, %v1314
        %v1326 = vpack.c.b16 %v1317, %v1316
        %v1327 = vpack.c.b16 %v1319, %v1318
        %1336 = vmatprep.subr.bf16.mxu0 0
        %1337 = vmatpush1.bf16.msra.mxu0 %v1320
        %1338 = vmatprep.subr.bf16.mxu0 0
        %1339 = vmatpush1.bf16.msra.mxu0 %v1321
        %1340 = vmatprep.subr.bf16.mxu0 0
        %1341 = vmatpush1.bf16.msra.mxu0 %v1322
        %1342 = vmatprep.subr.bf16.mxu0 0
        %1343 = vmatpush1.bf16.msra.mxu0 %v1323
        %1344 = vmatprep.subr.bf16.mxu0 0
        %1345 = vmatpush1.bf16.msra.mxu0 %v1324
        %1346 = vmatprep.subr.bf16.mxu0 0
        %1347 = vmatpush1.bf16.msra.mxu0 %v1325
        %1348 = vmatprep.subr.bf16.mxu0 0
        %1349 = vmatpush1.bf16.msra.mxu0 %v1326
        %1350 = vmatprep.subr.bf16.mxu0 0
        %1351 = vmatpush1.bf16.msra.mxu0 %v1327
        %1352 = vmatprep.subr.bf16.mxu0 0
        %1353 = vmatpush1.bf16.msra.mxu0 0
        %1354 = vmatprep.subr.bf16.mxu0 0
        %1355 = vmatpush1.bf16.msra.mxu0 0
        %1356 = vmatprep.subr.bf16.mxu0 0
        %1357 = vmatpush1.bf16.msra.mxu0 0
        %1358 = vmatprep.subr.bf16.mxu0 0
        %1359 = vmatpush1.bf16.msra.mxu0 0
        %1360 = vmatprep.subr.bf16.mxu0 0
        %1361 = vmatpush1.bf16.msra.mxu0 0
        %1362 = vmatprep.subr.bf16.mxu0 0
        %1363 = vmatpush1.bf16.msra.mxu0 0
        %1364 = vmatprep.subr.bf16.mxu0 0
        %1365 = vmatpush1.bf16.msra.mxu0 0
        %1366 = vmatprep.subr.bf16.mxu0 0
        %1367 = vmatpush1.bf16.msra.mxu0 0
        %1368 = vmatprep.mubr.bf16.mxu0 0
        %1369 = vmatmul.mubr.bf16.gmra.mrb[0].mxu0 %v1264
        %v1370 = vpop.f32.mrb[0].mxu0
        %v1371 = vadd.f32 %v1286, %v1370
        %v1372 = vpop.f32.mrb[0].mxu0
        %v1373 = vpop.f32.mrb[0].mxu0
        %v1374 = vpop.f32.mrb[0].mxu0
        %1375 = vdwg.mxu0
        %v1376 = vadd.f32 %v1104, %v1371
        %1377 = vst.msk [vmem:[%s453] sm:$0xff] %vm466, %v1376
        %s1378 = sand.u32 %s329, 1
        %s1379 = scalar_lea.sflag [#allocation5], %s1378
        %s1380 = sand.u32 %s329, 1
        %s1381 = smul.addr %s1380, 8
        %s1382 = scalar_lea.vmem [#allocation4], %s1381
        // Predicated region
        $region94: #{tpu_custom_call.1} parent=71 // pred_check
          %p1383 = pneg %p339
        $region95: #{tpu_custom_call.1} parent=71 // pred_check_branch
          %1385 = sbr.rel (%p1383) target = $region97
        $region96: #{tpu_custom_call.1} parent=71 // pred_region
          %s1387 = ssub.s32 128, 128
          %1388 = vsyncadd %s1379, %s1387
          %s1389 = sadd.s32 %s32, %s31
          %s1390 = smul.addr %s1389, 128
          %s1391 = scalar_lea.hbm %s13, %s1390
          %s1393 = sshll.u32 %s1382, 4
          %s1394 = int_to_ptr.vmem [resolvable:$true] %s1393
          %1396 = dma.vmem_to_hbm [thread:$0]  %s1394, 128, %s1391, %s1379
        $region97: #{tpu_custom_call.1} parent=71 // pred_fallthru
          _
      $region72: #{tpu_custom_call.1} parent=5 // pred_fallthru
        _
      %p1397 = scmp.le.s32.totalorder 2, %s22
      // Predicated region
      $region98: #{tpu_custom_call.1} parent=5 // pred_check
        %p1398 = pneg %p1397
      $region99: #{tpu_custom_call.1} parent=5 // pred_check_branch
        %1400 = sbr.rel (%p1398) target = $region101
      $region100: #{tpu_custom_call.1} parent=5 // pred_region
        %s1401 = ssub.s32 %s22, 2
        // Predicated region
        $region102: #{tpu_custom_call.1} parent=100 // pred_check
          %p1402 = pneg %p345
        $region103: #{tpu_custom_call.1} parent=100 // pred_check_branch
          %1404 = sbr.rel (%p1402) target = $region105
        $region104: #{tpu_custom_call.1} parent=100 // pred_region
          %s1405 = sand.u32 %s330, 1
          %s1406 = scalar_lea.sflag [#allocation5], %s1405
          %s1407 = sand.u32 %s330, 1
          %s1408 = smul.addr %s1407, 8
          %s1409 = scalar_lea.vmem [#allocation4], %s1408
          %1410 = dma.done %s1406, 128
        $region105: #{tpu_custom_call.1} parent=100 // pred_fallthru
          _
      $region101: #{tpu_custom_call.1} parent=5 // pred_fallthru
        _
    $region6: #{tpu_custom_call.1} parent=1 // loop_footer
      %s26 = sadd.s32 1, %s22
    $region7: #{tpu_custom_call.1} parent=1 // loop_footer_branch
      %21 = sbr.rel target = $region3
    $region8: #{tpu_custom_call.1} parent=1 // loop_exit
      _
    %1411 = vsyncpa [#allocation5], 1
    %s1412 = scalar_lea.sflag [#allocation5], 1
    %1413 = vsyncpa %s1412, 1

// kernel: tpu_custom_call.1
$region0: #{tpu_custom_call.1}
  #allocation0 [shape = 'u32[]', space=smem, size = 0x4, offset = 0x4, fixed_abs, tag = 'smem constant byte address 0x4 - core index']
  #allocation1 [shape = 'u32[144,128]{1,0:T(1,128)}', space=vmem, size = 0x12000, scoped, tag = 'internal scratch']
  #allocation2 [shape = 'bf16[4,8,8]{2,1,0:T(8,128)(2,1)}', space=vmem, size = 0x2000, scoped, tag = 'scratch operand']
  #allocation3 [shape = 'bf16[4,8,8]{2,1,0:T(8,128)(2,1)}', space=vmem, size = 0x2000, scoped, tag = 'scratch operand']
  %s0 = inlined_call_operand.vmem [shape: f32[2,8,32], index: 0, kind: input, shape index: {}]
  %s1 = inlined_call_operand.vmem [shape: f32[1,32], index: 1, kind: input, shape index: {}]
  %s2 = inlined_call_operand.vmem [shape: f32[1,32], index: 2, kind: input, shape index: {}]
  %s3 = inlined_call_operand.vmem [shape: bf16[4,32,8], index: 3, kind: input, shape index: {}]
  %s4 = inlined_call_operand.vmem [shape: f32[4,1,8], index: 4, kind: input, shape index: {}]
  %s5 = inlined_call_operand.vmem [shape: bf16[4,8,32], index: 5, kind: input, shape index: {}]
  %s6 = inlined_call_operand.vmem [shape: f32[1,32], index: 6, kind: input, shape index: {}]
  %s7 = inlined_call_operand.vmem [shape: f32[1,32], index: 7, kind: input, shape index: {}]
  %s8 = inlined_call_operand.vmem [shape: f32[1,32], index: 8, kind: input, shape index: {}]
  %s9 = inlined_call_operand.vmem [shape: bf16[32,128], index: 9, kind: input, shape index: {}]
  %s10 = inlined_call_operand.vmem [shape: f32[1,128], index: 10, kind: input, shape index: {}]
  %s11 = inlined_call_operand.vmem [shape: bf16[128,32], index: 11, kind: input, shape index: {}]
  %s12 = inlined_call_operand.vmem [shape: f32[1,32], index: 12, kind: input, shape index: {}]
  %s13 = inlined_call_operand.hbm [shape: f32[2,8,32], index: 13, kind: output, shape index: {}]
  %s14 = sld [smem:[#allocation0]]
  $region106: #{tpu_custom_call.1} parent=0
    _
  %s16 = ssub.s32 1, %s14
  %s17 = scalar_select 0, %s16, %s14
  $region1: #{tpu_custom_call.1} parent=0
    #allocation4 [shape = 'u8[8192]{0}', space=vmem, size = 0x2000, scoped, tag = 'output window, operand 0']
    #allocation5 [shape = 's32[2]{0}', space=sflag, size = 0x8, scoped, tag = 'scoped memory for tpu_custom_call.1']
    %18 = vsyncpa [#allocation5], 0
    %s19 = scalar_lea.sflag [#allocation5], 1
    %20 = vsyncpa %s19, 0
    loop: start=0, step=1, limit=4
    $region2: #{tpu_custom_call.1} parent=1 // loop_pre_header
      _
    $region3: #{tpu_custom_call.1} parent=1 // loop_header
      %s22 = sphi 0, %s26
      %p23 = scmp.ge.s32.totalorder %s22, 4
      %s29 = sphi 0, %s41
      %s30 = sphi 0, %s37
      %s31 = sphi 0, %s29
      %s32 = sphi 0, %s30
      %s33 = sphi 0, %s31
      %s34 = sphi 0, %s32
      %s46 = sphi 0, %s48
      %s49 = sphi 0, %s46
      %s50 = sphi 0, %s49
      %s66 = sphi 0, %s50
      %s70 = sphi 0, %s70
      %s72 = sphi 0, %s70
      %s73 = sphi 0, %s72
      %s87 = sphi 0, %s73
      %s91 = sphi 0, %s91
      %s93 = sphi 0, %s91
      %s94 = sphi 0, %s93
      %s108 = sphi 0, %s94
      %s112 = sphi 0, %s112
      %s114 = sphi 0, %s112
      %s115 = sphi 0, %s114
      %s129 = sphi 0, %s115
      %s133 = sphi 0, %s133
      %s135 = sphi 0, %s133
      %s136 = sphi 0, %s135
      %s150 = sphi 0, %s136
      %s154 = sphi 0, %s154
      %s156 = sphi 0, %s154
      %s157 = sphi 0, %s156
      %s171 = sphi 0, %s157
      %s175 = sphi 0, %s175
      %s177 = sphi 0, %s175
      %s178 = sphi 0, %s177
      %s192 = sphi 0, %s178
      %s196 = sphi 0, %s196
      %s198 = sphi 0, %s196
      %s199 = sphi 0, %s198
      %s213 = sphi 0, %s199
      %s217 = sphi 0, %s217
      %s219 = sphi 0, %s217
      %s220 = sphi 0, %s219
      %s234 = sphi 0, %s220
      %s238 = sphi 0, %s238
      %s240 = sphi 0, %s238
      %s241 = sphi 0, %s240
      %s255 = sphi 0, %s241
      %s259 = sphi 0, %s259
      %s261 = sphi 0, %s259
      %s262 = sphi 0, %s261
      %s276 = sphi 0, %s262
      %s280 = sphi 0, %s280
      %s282 = sphi 0, %s280
      %s283 = sphi 0, %s282
      %s297 = sphi 0, %s283
      %s301 = sphi 0, %s301
      %s303 = sphi 0, %s301
      %s304 = sphi 0, %s303
      %s318 = sphi 0, %s304
      %s326 = sphi 0, %s328
      %s329 = sphi 0, %s326
      %s330 = sphi 0, %s329
      %s346 = sphi 0, %s330
    $region4: #{tpu_custom_call.1} parent=1 // loop_header_branch
      %25 = sbr.rel (%p23) target = $region8
    $region5: #{tpu_custom_call.1} parent=1 // loop_body
      %s27 = ssub.s32 %s22, 1
      %s28 = ssub.s32 %s22, 2
      %s35 = sadd.s32 1, %s30
      %p36 = scmp.ge.s32.totalorder %s35, 1
      %s37 = scalar_select %p36, 0, %s35
      %s38 = sadd.s32 1, %s29
      %s39 = scalar_select %p36, %s38, %s29
      %p40 = scmp.ge.s32.totalorder %s39, 2
      %s41 = scalar_select %p40, 0, %s39
      %s42 = ssub.s32 %s29, %s41
      %s43 = ssub.s32 %s30, %s37
      %s44 = sor.u32 %s42, %s43
      %p45 = scmp.eq.s32.totalorder %s44, 0
      %s47 = sadd.s32 %s46, 1
      %s48 = scalar_select %p45, %s46, %s47
      %p51 = pneg %p45
      %p52 = scmp.eq.s32.totalorder %s22, 1
      %p53 = por %p51, %p52
      %p54 = scmp.ne.s32.totalorder %s46, %s49
      %p55 = scmp.eq.s32.totalorder %s22, 0
      %p56 = por %p54, %p55
      %p57 = scmp.ne.s32.totalorder %s46, %s49
      %p58 = scmp.eq.s32.totalorder %s27, 1
      %p59 = por %p57, %p58
      %p60 = scmp.ne.s32.totalorder %s49, %s50
      %p61 = scmp.eq.s32.totalorder %s27, 0
      %p62 = por %p60, %p61
      %p63 = scmp.ne.s32.totalorder %s49, %s50
      %p64 = scmp.eq.s32.totalorder %s28, 1
      %p65 = por %p63, %p64
      %p67 = scmp.ne.s32.totalorder %s50, %s66
      %p68 = scmp.eq.s32.totalorder %s28, 0
      %p69 = por %p67, %p68
      %s71 = sadd.s32 %s70, 1
      %p74 = scmp.eq.s32.totalorder %s22, 1
      %p75 = scmp.ne.s32.totalorder %s70, %s72
      %p76 = scmp.eq.s32.totalorder %s22, 0
      %p77 = por %p75, %p76
      %p78 = scmp.ne.s32.totalorder %s70, %s72
      %p79 = scmp.eq.s32.totalorder %s27, 1
      %p80 = por %p78, %p79
      %p81 = scmp.ne.s32.totalorder %s72, %s73
      %p82 = scmp.eq.s32.totalorder %s27, 0
      %p83 = por %p81, %p82
      %p84 = scmp.ne.s32.totalorder %s72, %s73
      %p85 = scmp.eq.s32.totalorder %s28, 1
      %p86 = por %p84, %p85
      %p88 = scmp.ne.s32.totalorder %s73, %s87
      %p89 = scmp.eq.s32.totalorder %s28, 0
      %p90 = por %p88, %p89
      %s92 = sadd.s32 %s91, 1
      %p95 = scmp.eq.s32.totalorder %s22, 1
      %p96 = scmp.ne.s32.totalorder %s91, %s93
      %p97 = scmp.eq.s32.totalorder %s22, 0
      %p98 = por %p96, %p97
      %p99 = scmp.ne.s32.totalorder %s91, %s93
      %p100 = scmp.eq.s32.totalorder %s27, 1
      %p101 = por %p99, %p100
      %p102 = scmp.ne.s32.totalorder %s93, %s94
      %p103 = scmp.eq.s32.totalorder %s27, 0
      %p104 = por %p102, %p103
      %p105 = scmp.ne.s32.totalorder %s93, %s94
      %p106 = scmp.eq.s32.totalorder %s28, 1
      %p107 = por %p105, %p106
      %p109 = scmp.ne.s32.totalorder %s94, %s108
      %p110 = scmp.eq.s32.totalorder %s28, 0
      %p111 = por %p109, %p110
      %s113 = sadd.s32 %s112, 1
      %p116 = scmp.eq.s32.totalorder %s22, 1
      %p117 = scmp.ne.s32.totalorder %s112, %s114
      %p118 = scmp.eq.s32.totalorder %s22, 0
      %p119 = por %p117, %p118
      %p120 = scmp.ne.s32.totalorder %s112, %s114
      %p121 = scmp.eq.s32.totalorder %s27, 1
      %p122 = por %p120, %p121
      %p123 = scmp.ne.s32.totalorder %s114, %s115
      %p124 = scmp.eq.s32.totalorder %s27, 0
      %p125 = por %p123, %p124
      %p126 = scmp.ne.s32.totalorder %s114, %s115
      %p127 = scmp.eq.s32.totalorder %s28, 1
      %p128 = por %p126, %p127
      %p130 = scmp.ne.s32.totalorder %s115, %s129
      %p131 = scmp.eq.s32.totalorder %s28, 0
      %p132 = por %p130, %p131
      %s134 = sadd.s32 %s133, 1
      %p137 = scmp.eq.s32.totalorder %s22, 1
      %p138 = scmp.ne.s32.totalorder %s133, %s135
      %p139 = scmp.eq.s32.totalorder %s22, 0
      %p140 = por %p138, %p139
      %p141 = scmp.ne.s32.totalorder %s133, %s135
      %p142 = scmp.eq.s32.totalorder %s27, 1
      %p143 = por %p141, %p142
      %p144 = scmp.ne.s32.totalorder %s135, %s136
      %p145 = scmp.eq.s32.totalorder %s27, 0
      %p146 = por %p144, %p145
      %p147 = scmp.ne.s32.totalorder %s135, %s136
      %p148 = scmp.eq.s32.totalorder %s28, 1
      %p149 = por %p147, %p148
      %p151 = scmp.ne.s32.totalorder %s136, %s150
      %p152 = scmp.eq.s32.totalorder %s28, 0
      %p153 = por %p151, %p152
      %s155 = sadd.s32 %s154, 1
      %p158 = scmp.eq.s32.totalorder %s22, 1
      %p159 = scmp.ne.s32.totalorder %s154, %s156
      %p160 = scmp.eq.s32.totalorder %s22, 0
      %p161 = por %p159, %p160
      %p162 = scmp.ne.s32.totalorder %s154, %s156
      %p163 = scmp.eq.s32.totalorder %s27, 1
      %p164 = por %p162, %p163
      %p165 = scmp.ne.s32.totalorder %s156, %s157
      %p166 = scmp.eq.s32.totalorder %s27, 0
      %p167 = por %p165, %p166
      %p168 = scmp.ne.s32.totalorder %s156, %s157
      %p169 = scmp.eq.s32.totalorder %s28, 1
      %p170 = por %p168, %p169
      %p172 = scmp.ne.s32.totalorder %s157, %s171
      %p173 = scmp.eq.s32.totalorder %s28, 0
      %p174 = por %p172, %p173
      %s176 = sadd.s32 %s175, 1
      %p179 = scmp.eq.s32.totalorder %s22, 1
      %p180 = scmp.ne.s32.totalorder %s175, %s177
      %p181 = scmp.eq.s32.totalorder %s22, 0
      %p182 = por %p180, %p181
      %p183 = scmp.ne.s32.totalorder %s175, %s177
      %p184 = scmp.eq.s32.totalorder %s27, 1
      %p185 = por %p183, %p184
      %p186 = scmp.ne.s32.totalorder %s177, %s178
      %p187 = scmp.eq.s32.totalorder %s27, 0
      %p188 = por %p186, %p187
      %p189 = scmp.ne.s32.totalorder %s177, %s178
      %p190 = scmp.eq.s32.totalorder %s28, 1
      %p191 = por %p189, %p190
      %p193 = scmp.ne.s32.totalorder %s178, %s192
      %p194 = scmp.eq.s32.totalorder %s28, 0
      %p195 = por %p193, %p194
      %s197 = sadd.s32 %s196, 1
      %p200 = scmp.eq.s32.totalorder %s22, 1
      %p201 = scmp.ne.s32.totalorder %s196, %s198
      %p202 = scmp.eq.s32.totalorder %s22, 0
      %p203 = por %p201, %p202
      %p204 = scmp.ne.s32.totalorder %s196, %s198
      %p205 = scmp.eq.s32.totalorder %s27, 1
      %p206 = por %p204, %p205
      %p207 = scmp.ne.s32.totalorder %s198, %s199
      %p208 = scmp.eq.s32.totalorder %s27, 0
      %p209 = por %p207, %p208
      %p210 = scmp.ne.s32.totalorder %s198, %s199
      %p211 = scmp.eq.s32.totalorder %s28, 1
      %p212 = por %p210, %p211
      %p214 = scmp.ne.s32.totalorder %s199, %s213
      %p215 = scmp.eq.s32.totalorder %s28, 0
      %p216 = por %p214, %p215
      %s218 = sadd.s32 %s217, 1
      %p221 = scmp.eq.s32.totalorder %s22, 1
      %p222 = scmp.ne.s32.totalorder %s217, %s219
      %p223 = scmp.eq.s32.totalorder %s22, 0
      %p224 = por %p222, %p223
      %p225 = scmp.ne.s32.totalorder %s217, %s219
      %p226 = scmp.eq.s32.totalorder %s27, 1
      %p227 = por %p225, %p226
      %p228 = scmp.ne.s32.totalorder %s219, %s220
      %p229 = scmp.eq.s32.totalorder %s27, 0
      %p230 = por %p228, %p229
      %p231 = scmp.ne.s32.totalorder %s219, %s220
      %p232 = scmp.eq.s32.totalorder %s28, 1
      %p233 = por %p231, %p232
      %p235 = scmp.ne.s32.totalorder %s220, %s234
      %p236 = scmp.eq.s32.totalorder %s28, 0
      %p237 = por %p235, %p236
      %s239 = sadd.s32 %s238, 1
      %p242 = scmp.eq.s32.totalorder %s22, 1
      %p243 = scmp.ne.s32.totalorder %s238, %s240
      %p244 = scmp.eq.s32.totalorder %s22, 0
      %p245 = por %p243, %p244
      %p246 = scmp.ne.s32.totalorder %s238, %s240
      %p247 = scmp.eq.s32.totalorder %s27, 1
      %p248 = por %p246, %p247
      %p249 = scmp.ne.s32.totalorder %s240, %s241
      %p250 = scmp.eq.s32.totalorder %s27, 0
      %p251 = por %p249, %p250
      %p252 = scmp.ne.s32.totalorder %s240, %s241
      %p253 = scmp.eq.s32.totalorder %s28, 1
      %p254 = por %p252, %p253
      %p256 = scmp.ne.s32.totalorder %s241, %s255
      %p257 = scmp.eq.s32.totalorder %s28, 0
      %p258 = por %p256, %p257
      %s260 = sadd.s32 %s259, 1
      %p263 = scmp.eq.s32.totalorder %s22, 1
      %p264 = scmp.ne.s32.totalorder %s259, %s261
      %p265 = scmp.eq.s32.totalorder %s22, 0
      %p266 = por %p264, %p265
      %p267 = scmp.ne.s32.totalorder %s259, %s261
      %p268 = scmp.eq.s32.totalorder %s27, 1
      %p269 = por %p267, %p268
      %p270 = scmp.ne.s32.totalorder %s261, %s262
      %p271 = scmp.eq.s32.totalorder %s27, 0
      %p272 = por %p270, %p271
      %p273 = scmp.ne.s32.totalorder %s261, %s262
      %p274 = scmp.eq.s32.totalorder %s28, 1
      %p275 = por %p273, %p274
      %p277 = scmp.ne.s32.totalorder %s262, %s276
      %p278 = scmp.eq.s32.totalorder %s28, 0
      %p279 = por %p277, %p278
      %s281 = sadd.s32 %s280, 1
      %p284 = scmp.eq.s32.totalorder %s22, 1
      %p285 = scmp.ne.s32.totalorder %s280, %s282
      %p286 = scmp.eq.s32.totalorder %s22, 0
      %p287 = por %p285, %p286
      %p288 = scmp.ne.s32.totalorder %s280, %s282
      %p289 = scmp.eq.s32.totalorder %s27, 1
      %p290 = por %p288, %p289
      %p291 = scmp.ne.s32.totalorder %s282, %s283
      %p292 = scmp.eq.s32.totalorder %s27, 0
      %p293 = por %p291, %p292
      %p294 = scmp.ne.s32.totalorder %s282, %s283
      %p295 = scmp.eq.s32.totalorder %s28, 1
      %p296 = por %p294, %p295
      %p298 = scmp.ne.s32.totalorder %s283, %s297
      %p299 = scmp.eq.s32.totalorder %s28, 0
      %p300 = por %p298, %p299
      %s302 = sadd.s32 %s301, 1
      %p305 = scmp.eq.s32.totalorder %s22, 1
      %p306 = scmp.ne.s32.totalorder %s301, %s303
      %p307 = scmp.eq.s32.totalorder %s22, 0
      %p308 = por %p306, %p307
      %p309 = scmp.ne.s32.totalorder %s301, %s303
      %p310 = scmp.eq.s32.totalorder %s27, 1
      %p311 = por %p309, %p310
      %p312 = scmp.ne.s32.totalorder %s303, %s304
      %p313 = scmp.eq.s32.totalorder %s27, 0
      %p314 = por %p312, %p313
      %p315 = scmp.ne.s32.totalorder %s303, %s304
      %p316 = scmp.eq.s32.totalorder %s28, 1
      %p317 = por %p315, %p316
      %p319 = scmp.ne.s32.totalorder %s304, %s318
      %p320 = scmp.eq.s32.totalorder %s28, 0
      %p321 = por %p319, %p320
      %s322 = ssub.s32 %s29, %s41
      %s323 = ssub.s32 %s30, %s37
      %s324 = sor.u32 %s322, %s323
      %p325 = scmp.eq.s32.totalorder %s324, 0
      %s327 = sadd.s32 %s326, 1
      %s328 = scalar_select %p325, %s326, %s327
      %p331 = pneg %p325
      %p332 = scmp.eq.s32.totalorder %s22, 1
      %p333 = por %p331, %p332
      %p334 = scmp.ne.s32.totalorder %s326, %s329
      %p335 = scmp.eq.s32.totalorder %s22, 0
      %p336 = por %p334, %p335
      %p337 = scmp.ne.s32.totalorder %s326, %s329
      %p338 = scmp.eq.s32.totalorder %s27, 1
      %p339 = por %p337, %p338
      %p340 = scmp.ne.s32.totalorder %s329, %s330
      %p341 = scmp.eq.s32.totalorder %s27, 0
      %p342 = por %p340, %p341
      %p343 = scmp.ne.s32.totalorder %s329, %s330
      %p344 = scmp.eq.s32.totalorder %s28, 1
      %p345 = por %p343, %p344
      %p347 = scmp.ne.s32.totalorder %s330, %s346
      %p348 = scmp.eq.s32.totalorder %s28, 0
      %p349 = por %p347, %p348
      %p350 = scmp.le.s32.totalorder 1, %s22
      %p351 = scmp.lt.s32.totalorder %s22, 3
      %p352 = pnand %p350, %p351
      %p353 = pneg %p352
      // Predicated region
      $region9: #{tpu_custom_call.1} parent=5 // pred_check
        _
      $region10: #{tpu_custom_call.1} parent=5 // pred_check_branch
        %355 = sbr.rel (%p352) target = $region12
      $region11: #{tpu_custom_call.1} parent=5 // pred_region
        %s356 = ssub.s32 %s22, 1
        // Predicated region
        $region13: #{tpu_custom_call.1} parent=11 // pred_check
          %p357 = pneg %p83
        $region14: #{tpu_custom_call.1} parent=11 // pred_check_branch
          %359 = sbr.rel (%p357) target = $region16
        $region15: #{tpu_custom_call.1} parent=11 // pred_region
          _
        $region16: #{tpu_custom_call.1} parent=11 // pred_fallthru
          _
        // Predicated region
        $region17: #{tpu_custom_call.1} parent=11 // pred_check
          %p360 = pneg %p104
        $region18: #{tpu_custom_call.1} parent=11 // pred_check_branch
          %362 = sbr.rel (%p360) target = $region20
        $region19: #{tpu_custom_call.1} parent=11 // pred_region
          _
        $region20: #{tpu_custom_call.1} parent=11 // pred_fallthru
          _
        // Predicated region
        $region21: #{tpu_custom_call.1} parent=11 // pred_check
          %p363 = pneg %p125
        $region22: #{tpu_custom_call.1} parent=11 // pred_check_branch
          %365 = sbr.rel (%p363) target = $region24
        $region23: #{tpu_custom_call.1} parent=11 // pred_region
          _
        $region24: #{tpu_custom_call.1} parent=11 // pred_fallthru
          _
        // Predicated region
        $region25: #{tpu_custom_call.1} parent=11 // pred_check
          %p366 = pneg %p146
        $region26: #{tpu_custom_call.1} parent=11 // pred_check_branch
          %368 = sbr.rel (%p366) target = $region28
        $region27: #{tpu_custom_call.1} parent=11 // pred_region
          _
        $region28: #{tpu_custom_call.1} parent=11 // pred_fallthru
          _
        // Predicated region
        $region29: #{tpu_custom_call.1} parent=11 // pred_check
          %p369 = pneg %p167
        $region30: #{tpu_custom_call.1} parent=11 // pred_check_branch
          %371 = sbr.rel (%p369) target = $region32
        $region31: #{tpu_custom_call.1} parent=11 // pred_region
          _
        $region32: #{tpu_custom_call.1} parent=11 // pred_fallthru
          _
        // Predicated region
        $region33: #{tpu_custom_call.1} parent=11 // pred_check
          %p372 = pneg %p188
        $region34: #{tpu_custom_call.1} parent=11 // pred_check_branch
          %374 = sbr.rel (%p372) target = $region36
        $region35: #{tpu_custom_call.1} parent=11 // pred_region
          _
        $region36: #{tpu_custom_call.1} parent=11 // pred_fallthru
          _
        // Predicated region
        $region37: #{tpu_custom_call.1} parent=11 // pred_check
          %p375 = pneg %p209
        $region38: #{tpu_custom_call.1} parent=11 // pred_check_branch
          %377 = sbr.rel (%p375) target = $region40
        $region39: #{tpu_custom_call.1} parent=11 // pred_region
          _
        $region40: #{tpu_custom_call.1} parent=11 // pred_fallthru
          _
        // Predicated region
        $region41: #{tpu_custom_call.1} parent=11 // pred_check
          %p378 = pneg %p230
        $region42: #{tpu_custom_call.1} parent=11 // pred_check_branch
          %380 = sbr.rel (%p378) target = $region44
        $region43: #{tpu_custom_call.1} parent=11 // pred_region
          _
        $region44: #{tpu_custom_call.1} parent=11 // pred_fallthru
          _
        // Predicated region
        $region45: #{tpu_custom_call.1} parent=11 // pred_check
          %p381 = pneg %p251
        $region46: #{tpu_custom_call.1} parent=11 // pred_check_branch
          %383 = sbr.rel (%p381) target = $region48
        $region47: #{tpu_custom_call.1} parent=11 // pred_region
          _
        $region48: #{tpu_custom_call.1} parent=11 // pred_fallthru
          _
        // Predicated region
        $region49: #{tpu_custom_call.1} parent=11 // pred_check
          %p384 = pneg %p272
        $region50: #{tpu_custom_call.1} parent=11 // pred_check_branch
          %386 = sbr.rel (%p384) target = $region52
        $region51: #{tpu_custom_call.1} parent=11 // pred_region
          _
        $region52: #{tpu_custom_call.1} parent=11 // pred_fallthru
          _
        // Predicated region
        $region53: #{tpu_custom_call.1} parent=11 // pred_check
          %p387 = pneg %p293
        $region54: #{tpu_custom_call.1} parent=11 // pred_check_branch
          %389 = sbr.rel (%p387) target = $region56
        $region55: #{tpu_custom_call.1} parent=11 // pred_region
          _
        $region56: #{tpu_custom_call.1} parent=11 // pred_fallthru
          _
        // Predicated region
        $region57: #{tpu_custom_call.1} parent=11 // pred_check
          %p390 = pneg %p314
        $region58: #{tpu_custom_call.1} parent=11 // pred_check_branch
          %392 = sbr.rel (%p390) target = $region60
        $region59: #{tpu_custom_call.1} parent=11 // pred_region
          _
        $region60: #{tpu_custom_call.1} parent=11 // pred_fallthru
          _
      $region12: #{tpu_custom_call.1} parent=5 // pred_fallthru
        _
      %p393 = scmp.lt.s32.totalorder %s22, 2
      // Predicated region
      $region61: #{tpu_custom_call.1} parent=5 // pred_check
        %p394 = pneg %p393
      $region62: #{tpu_custom_call.1} parent=5 // pred_check_branch
        %396 = sbr.rel (%p394) target = $region64
      $region63: #{tpu_custom_call.1} parent=5 // pred_region
        // Predicated region
        $region65: #{tpu_custom_call.1} parent=63 // pred_check
          %p397 = pneg %p56
        $region66: #{tpu_custom_call.1} parent=63 // pred_check_branch
          %399 = sbr.rel (%p397) target = $region68
        $region67: #{tpu_custom_call.1} parent=63 // pred_region
          %p400 = scmp.lt.s32.totalorder %s29, 1
          %s401 = scalar_select %p400, %s29, 1
          %p402 = scmp.lt.s32.totalorder %s30, 0
          %s403 = scalar_select %p402, %s30, 0
          %s404 = sadd.s32 %s403, %s401
          %s405 = smul.addr %s404, 8
          %s406 = scalar_lea.vmem %s0, %s405
        $region68: #{tpu_custom_call.1} parent=63 // pred_fallthru
          _
      $region64: #{tpu_custom_call.1} parent=5 // pred_fallthru
        _
      %p407 = scmp.le.s32.totalorder 1, %s22
      %p408 = scmp.lt.s32.totalorder %s22, 3
      %p409 = pnand %p407, %p408
      %p410 = pneg %p409
      // Predicated region
      $region69: #{tpu_custom_call.1} parent=5 // pred_check
        _
      $region70: #{tpu_custom_call.1} parent=5 // pred_check_branch
        %412 = sbr.rel (%p409) target = $region72
      $region71: #{tpu_custom_call.1} parent=5 // pred_region
        %s413 = ssub.s32 %s22, 1
        %p414 = scmp.lt.s32.totalorder %s31, 1
        %s415 = scalar_select %p414, %s31, 1
        %p416 = scmp.lt.s32.totalorder %s32, 0
        %s417 = scalar_select %p416, %s32, 0
        %s418 = sadd.s32 %s417, %s415
        %s419 = smul.addr %s418, 8
        %s420 = scalar_lea.vmem %s0, %s419
        %p421 = pneg %p62
        %p422 = pneg %p59
        %p423 = pneg %p83
        %p424 = pneg %p80
        %p425 = pneg %p104
        %p426 = pneg %p101
        %p427 = pneg %p125
        %p428 = pneg %p122
        %p429 = pneg %p146
        %p430 = pneg %p143
        %p431 = pneg %p167
        %p432 = pneg %p164
        %p433 = pneg %p188
        %p434 = pneg %p185
        %p435 = pneg %p209
        %p436 = pneg %p206
        %p437 = pneg %p230
        %p438 = pneg %p227
        %p439 = pneg %p251
        %p440 = pneg %p248
        %p441 = pneg %p272
        %p442 = pneg %p269
        %p443 = pneg %p293
        %p444 = pneg %p290
        %p445 = pneg %p314
        %p446 = pneg %p311
        %p447 = pneg %p342
        %p448 = pneg %p339
        %s449 = sand.u32 %s329, 1
        %s450 = scalar_lea.sflag [#allocation5], %s449
        %s451 = sand.u32 %s329, 1
        %s452 = smul.addr %s451, 8
        %s453 = scalar_lea.vmem [#allocation4], %s452
        %p454 = scmp.lt.s32.totalorder %s31, 1
        %s455 = scalar_select %p454, %s31, 1
        %p456 = scmp.lt.s32.totalorder %s32, 0
        %s457 = scalar_select %p456, %s32, 0
        %s458 = sadd.s32 %s457, %s455
        %s459 = smul.addr %s458, 8
        %s460 = scalar_lea.vmem %s0, %s459
        %s462 = smul.u32 %s32, 8
        %v463 = vld [vmem:[%s460] sm:$0xff]
        %v464 = vld [vmem:[%s1] sm:$0x1]
        %v465 = vld [vmem:[%s2] sm:$0x1]
        %vm466 = vcmask 261120
        %v467 = vsel %vm466, %v463, 0.0
        %468 = vadd.xlane.f32.xlu0 %v467
        %v469 = vpop.xlane.xlu0 %468
        %v470 = vrcp.pop 32.0
        %v471 = vmul.f32 %v469, %v470
        %v472 = vsub.f32 %v463, %v471
        %v473 = vmul.f32 %v472, %v472
        %v474 = vsel %vm466, %v473, 0.0
        %475 = vadd.xlane.f32.xlu0 %v474
        %v476 = vpop.xlane.xlu0 %475
        %v477 = vmul.f32 %v476, %v470
        %v478 = vadd.f32 %v477, 1e-05
        %v479 = vrsqrt.pop %v478
        %v480 = vmul.f32 %v472, %v479
        %v482 = vlaneseq
        %v483 = vshrl.u32 %v482, 7
        %v484 = vsub.s32 0, %v483
        %v485 = vrot.slane %v464, %v484
        %v487 = vmul.f32 %v480, %v485
        %v489 = vlaneseq
        %v490 = vshrl.u32 %v489, 7
        %v491 = vsub.s32 0, %v490
        %v492 = vrot.slane %v465, %v491
        %v494 = vadd.f32 %v487, %v492
        %v495 = vpack.c.bf16 %v494, %v494
        loop: start=0, step=1, limit=4
        $region73: #{tpu_custom_call.1} parent=71 // loop_pre_header
          _
        $region74: #{tpu_custom_call.1} parent=71 // loop_header
          %s497 = sphi 0, %s501
          %p498 = scmp.ge.s32.totalorder %s497, 4
        $region75: #{tpu_custom_call.1} parent=71 // loop_header_branch
          %500 = sbr.rel (%p498) target = $region79
        $region76: #{tpu_custom_call.1} parent=71 // loop_body
          %s502 = smul.u32 %s497, 4
          %s503 = smul.addr %s502, 4
          %s504 = scalar_lea.vmem %s3, %s503
          %v505 = vld [vmem:[%s504] sm:$0xf]
          %v506 = vld [vmem:[%s504 + $0x4] sm:$0xf]
          %v507 = vld [vmem:[%s504 + $0x8] sm:$0xf]
          %v508 = vld [vmem:[%s504 + $0xc] sm:$0xf]
          %s509 = scalar_lea.vmem %s4, %s497
          %v510 = vld [vmem:[%s509] sm:$0x1]
          %v512 = vlaneseq
          %v513 = vshrl.u32 %v512, 7
          %v514 = vsub.s32 0, %v513
          %v515 = vrot.slane %v510, %v514
          %v521 = vunpack.c.l.b16 %v505
          %v522 = vunpack.c.l.b16 %v506
          %v523 = vunpack.c.l.b16 %v507
          %v524 = vunpack.c.l.b16 %v508
          %v525 = vpack.c.b16 %v522, %v521
          %v526 = vpack.c.b16 %v524, %v523
          %v530 = vsel %vm466, %v495, 0
          %532 = vmatprep.subr.bf16.mxu0 0
          %533 = vmatpush1.bf16.msra.mxu0 %v525
          %534 = vmatprep.subr.bf16.mxu0 0
          %535 = vmatpush1.bf16.msra.mxu0 %v526
          %536 = vmatprep.subr.bf16.mxu0 0
          %537 = vmatpush1.bf16.msra.mxu0 0
          %538 = vmatprep.subr.bf16.mxu0 0
          %539 = vmatpush1.bf16.msra.mxu0 0
          %540 = vmatprep.subr.bf16.mxu0 0
          %541 = vmatpush1.bf16.msra.mxu0 0
          %542 = vmatprep.subr.bf16.mxu0 0
          %543 = vmatpush1.bf16.msra.mxu0 0
          %544 = vmatprep.subr.bf16.mxu0 0
          %545 = vmatpush1.bf16.msra.mxu0 0
          %546 = vmatprep.subr.bf16.mxu0 0
          %547 = vmatpush1.bf16.msra.mxu0 0
          %548 = vmatprep.subr.bf16.mxu0 0
          %549 = vmatpush1.bf16.msra.mxu0 0
          %550 = vmatprep.subr.bf16.mxu0 0
          %551 = vmatpush1.bf16.msra.mxu0 0
          %552 = vmatprep.subr.bf16.mxu0 0
          %553 = vmatpush1.bf16.msra.mxu0 0
          %554 = vmatprep.subr.bf16.mxu0 0
          %555 = vmatpush1.bf16.msra.mxu0 0
          %556 = vmatprep.subr.bf16.mxu0 0
          %557 = vmatpush1.bf16.msra.mxu0 0
          %558 = vmatprep.subr.bf16.mxu0 0
          %559 = vmatpush1.bf16.msra.mxu0 0
          %560 = vmatprep.subr.bf16.mxu0 0
          %561 = vmatpush1.bf16.msra.mxu0 0
          %562 = vmatprep.subr.bf16.mxu0 0
          %563 = vmatpush1.bf16.msra.mxu0 0
          %564 = vmatprep.mubr.bf16.mxu0 0
          %565 = vmatmul.mubr.bf16.gmra.mrb[0].mxu0 %v530
          %v566 = vpop.f32.mrb[0].mxu0
          %v567 = vadd.f32 %v515, %v566
          %v568 = vpop.f32.mrb[0].mxu0
          %v569 = vpop.f32.mrb[0].mxu0
          %v570 = vpop.f32.mrb[0].mxu0
          %571 = vdwg.mxu0
          %v572 = vpack.c.bf16 %v567, %v567
          %s573 = sshra.s32 %s462, 3
          %s574 = sand.u32 %s462, 7
          %s575 = sadd.s32 %s573, %s497
          %s576 = smul.addr %s575, 4
          %s577 = scalar_lea.vmem [#allocation2], %s576
          %vm578 = vcmask 60416
          %579 = vst.msk [vmem:[%s577] sm:$0xf] %vm578, %v572
        $region77: #{tpu_custom_call.1} parent=71 // loop_footer
          %s501 = sadd.s32 1, %s497
        $region78: #{tpu_custom_call.1} parent=71 // loop_footer_branch
          %496 = sbr.rel target = $region74
        $region79: #{tpu_custom_call.1} parent=71 // loop_exit
          _
        %s580 = sshra.s32 %s462, 3
        %s581 = sand.u32 %s462, 7
        %s582 = smul.addr %s580, 4
        %s583 = scalar_lea.vmem [#allocation2], %s582
        %v584 = vld [vmem:[%s583] sm:$0xf]
        %v585 = vld [vmem:[%s583 + $0x4] sm:$0xf]
        %v586 = vld [vmem:[%s583 + $0x8] sm:$0xf]
        %v587 = vld [vmem:[%s583 + $0xc] sm:$0xf]
        %v588 = vlaneseq
        %v589 = vshrl.u32 %v588, 7
        %v590 = vstv %s462
        %v591 = vadd.s32 %v590, %v589
        %v592 = vlaneseq
        %v593 = vand.u32 %v592, 127
        %s594 = sadd.s32 %s32, 1
        // While loop
        $region80: #{tpu_custom_call.1} parent=71 // loop_pre_header
          _
        $region81: #{tpu_custom_call.1} parent=71 // loop_header
          %s596 = sphi 0, %s598
          %p597 = scmp.ge.s32.totalorder %s596, %s594
          %v601 = vphi -1e+30, %v832
          %v602 = vphi -1e+30, %v833
          %v603 = vphi -1e+30, %v834
          %v604 = vphi -1e+30, %v835
          %v605 = vphi 0.0, %v876
          %v606 = vphi 0.0, %v877
          %v607 = vphi 0.0, %v878
          %v608 = vphi 0.0, %v879
          %v609 = vphi 0.0, %v1069
          %v610 = vphi 0.0, %v1070
          %v611 = vphi 0.0, %v1071
          %v612 = vphi 0.0, %v1072
        $region82: #{tpu_custom_call.1} parent=71 // loop_header_branch
          %600 = sbr.rel (%p597) target = $region86
        $region83: #{tpu_custom_call.1} parent=71 // loop_body
          %s613 = smul.u32 %s596, 8
          %s614 = sshra.s32 %s613, 3
          %s615 = sand.u32 %s613, 7
          %s616 = smul.addr %s614, 4
          %s617 = scalar_lea.vmem [#allocation2], %s616
          %v618 = vld [vmem:[%s617] sm:$0xf]
          %v619 = vld [vmem:[%s617 + $0x4] sm:$0xf]
          %v620 = vld [vmem:[%s617 + $0x8] sm:$0xf]
          %v621 = vld [vmem:[%s617 + $0xc] sm:$0xf]
          %vm622 = vcmask 64512
          %v624 = vsel %vm622, %v584, 0
          %v627 = vsel %vm622, %v618, 0
          %629 = vmatprep.subr.bf16.mxu0 0
          %630 = vmatpush1.bf16.xpose.msra.mxu0 %v627
          %631 = vmatprep.subr.bf16.mxu0 0
          %632 = vmatpush1.bf16.xpose.msra.mxu0 0
          %633 = vmatprep.subr.bf16.mxu0 0
          %634 = vmatpush1.bf16.xpose.msra.mxu0 0
          %635 = vmatprep.subr.bf16.mxu0 0
          %636 = vmatpush1.bf16.xpose.msra.mxu0 0
          %637 = vmatprep.subr.bf16.mxu0 0
          %638 = vmatpush1.bf16.xpose.msra.mxu0 0
          %639 = vmatprep.subr.bf16.mxu0 0
          %640 = vmatpush1.bf16.xpose.msra.mxu0 0
          %641 = vmatprep.subr.bf16.mxu0 0
          %642 = vmatpush1.bf16.xpose.msra.mxu0 0
          %643 = vmatprep.subr.bf16.mxu0 0
          %644 = vmatpush1.bf16.xpose.msra.mxu0 0
          %645 = vmatprep.subr.bf16.mxu0 0
          %646 = vmatpush1.bf16.xpose.msra.mxu0 0
          %647 = vmatprep.subr.bf16.mxu0 0
          %648 = vmatpush1.bf16.xpose.msra.mxu0 0
          %649 = vmatprep.subr.bf16.mxu0 0
          %650 = vmatpush1.bf16.xpose.msra.mxu0 0
          %651 = vmatprep.subr.bf16.mxu0 0
          %652 = vmatpush1.bf16.xpose.msra.mxu0 0
          %653 = vmatprep.subr.bf16.mxu0 0
          %654 = vmatpush1.bf16.xpose.msra.mxu0 0
          %655 = vmatprep.subr.bf16.mxu0 0
          %656 = vmatpush1.bf16.xpose.msra.mxu0 0
          %657 = vmatprep.subr.bf16.mxu0 0
          %658 = vmatpush1.bf16.xpose.msra.mxu0 0
          %659 = vmatprep.subr.bf16.mxu0 0
          %660 = vmatpush1.bf16.xpose.msra.mxu0 0
          %661 = vmatprep.mubr.bf16.mxu0 0
          %662 = vmatmul.mubr.bf16.gmra.mrb[0].mxu0 %v624
          %v663 = vpop.f32.mrb[0].mxu0
          %v664 = vadd.f32 0.0, %v663
          %v665 = vpop.f32.mrb[0].mxu0
          %v666 = vpop.f32.mrb[0].mxu0
          %v667 = vpop.f32.mrb[0].mxu0
          %668 = vdwg.mxu0
          %v670 = vsel %vm622, %v585, 0
          %v673 = vsel %vm622, %v619, 0
          %675 = vmatprep.subr.bf16.mxu0 0
          %676 = vmatpush1.bf16.xpose.msra.mxu0 %v673
          %677 = vmatprep.subr.bf16.mxu0 0
          %678 = vmatpush1.bf16.xpose.msra.mxu0 0
          %679 = vmatprep.subr.bf16.mxu0 0
          %680 = vmatpush1.bf16.xpose.msra.mxu0 0
          %681 = vmatprep.subr.bf16.mxu0 0
          %682 = vmatpush1.bf16.xpose.msra.mxu0 0
          %683 = vmatprep.subr.bf16.mxu0 0
          %684 = vmatpush1.bf16.xpose.msra.mxu0 0
          %685 = vmatprep.subr.bf16.mxu0 0
          %686 = vmatpush1.bf16.xpose.msra.mxu0 0
          %687 = vmatprep.subr.bf16.mxu0 0
          %688 = vmatpush1.bf16.xpose.msra.mxu0 0
          %689 = vmatprep.subr.bf16.mxu0 0
          %690 = vmatpush1.bf16.xpose.msra.mxu0 0
          %691 = vmatprep.subr.bf16.mxu0 0
          %692 = vmatpush1.bf16.xpose.msra.mxu0 0
          %693 = vmatprep.subr.bf16.mxu0 0
          %694 = vmatpush1.bf16.xpose.msra.mxu0 0
          %695 = vmatprep.subr.bf16.mxu0 0
          %696 = vmatpush1.bf16.xpose.msra.mxu0 0
          %697 = vmatprep.subr.bf16.mxu0 0
          %698 = vmatpush1.bf16.xpose.msra.mxu0 0
          %699 = vmatprep.subr.bf16.mxu0 0
          %700 = vmatpush1.bf16.xpose.msra.mxu0 0
          %701 = vmatprep.subr.bf16.mxu0 0
          %702 = vmatpush1.bf16.xpose.msra.mxu0 0
          %703 = vmatprep.subr.bf16.mxu0 0
          %704 = vmatpush1.bf16.xpose.msra.mxu0 0
          %705 = vmatprep.subr.bf16.mxu0 0
          %706 = vmatpush1.bf16.xpose.msra.mxu0 0
          %707 = vmatprep.mubr.bf16.mxu0 0
          %708 = vmatmul.mubr.bf16.gmra.mrb[0].mxu0 %v670
          %v709 = vpop.f32.mrb[0].mxu0
          %v710 = vadd.f32 0.0, %v709
          %v711 = vpop.f32.mrb[0].mxu0
          %v712 = vpop.f32.mrb[0].mxu0
          %v713 = vpop.f32.mrb[0].mxu0
          %714 = vdwg.mxu0
          %v716 = vsel %vm622, %v586, 0
          %v719 = vsel %vm622, %v620, 0
          %721 = vmatprep.subr.bf16.mxu0 0
          %722 = vmatpush1.bf16.xpose.msra.mxu0 %v719
          %723 = vmatprep.subr.bf16.mxu0 0
          %724 = vmatpush1.bf16.xpose.msra.mxu0 0
          %725 = vmatprep.subr.bf16.mxu0 0
          %726 = vmatpush1.bf16.xpose.msra.mxu0 0
          %727 = vmatprep.subr.bf16.mxu0 0
          %728 = vmatpush1.bf16.xpose.msra.mxu0 0
          %729 = vmatprep.subr.bf16.mxu0 0
          %730 = vmatpush1.bf16.xpose.msra.mxu0 0
          %731 = vmatprep.subr.bf16.mxu0 0
          %732 = vmatpush1.bf16.xpose.msra.mxu0 0
          %733 = vmatprep.subr.bf16.mxu0 0
          %734 = vmatpush1.bf16.xpose.msra.mxu0 0
          %735 = vmatprep.subr.bf16.mxu0 0
          %736 = vmatpush1.bf16.xpose.msra.mxu0 0
          %737 = vmatprep.subr.bf16.mxu0 0
          %738 = vmatpush1.bf16.xpose.msra.mxu0 0
          %739 = vmatprep.subr.bf16.mxu0 0
          %740 = vmatpush1.bf16.xpose.msra.mxu0 0
          %741 = vmatprep.subr.bf16.mxu0 0
          %742 = vmatpush1.bf16.xpose.msra.mxu0 0
          %743 = vmatprep.subr.bf16.mxu0 0
          %744 = vmatpush1.bf16.xpose.msra.mxu0 0
          %745 = vmatprep.subr.bf16.mxu0 0
          %746 = vmatpush1.bf16.xpose.msra.mxu0 0
          %747 = vmatprep.subr.bf16.mxu0 0
          %748 = vmatpush1.bf16.xpose.msra.mxu0 0
          %749 = vmatprep.subr.bf16.mxu0 0
          %750 = vmatpush1.bf16.xpose.msra.mxu0 0
          %751 = vmatprep.subr.bf16.mxu0 0
          %752 = vmatpush1.bf16.xpose.msra.mxu0 0
          %753 = vmatprep.mubr.bf16.mxu0 0
          %754 = vmatmul.mubr.bf16.gmra.mrb[0].mxu0 %v716
          %v755 = vpop.f32.mrb[0].mxu0
          %v756 = vadd.f32 0.0, %v755
          %v757 = vpop.f32.mrb[0].mxu0
          %v758 = vpop.f32.mrb[0].mxu0
          %v759 = vpop.f32.mrb[0].mxu0
          %760 = vdwg.mxu0
          %v762 = vsel %vm622, %v587, 0
          %v765 = vsel %vm622, %v621, 0
          %767 = vmatprep.subr.bf16.mxu0 0
          %768 = vmatpush1.bf16.xpose.msra.mxu0 %v765
          %769 = vmatprep.subr.bf16.mxu0 0
          %770 = vmatpush1.bf16.xpose.msra.mxu0 0
          %771 = vmatprep.subr.bf16.mxu0 0
          %772 = vmatpush1.bf16.xpose.msra.mxu0 0
          %773 = vmatprep.subr.bf16.mxu0 0
          %774 = vmatpush1.bf16.xpose.msra.mxu0 0
          %775 = vmatprep.subr.bf16.mxu0 0
          %776 = vmatpush1.bf16.xpose.msra.mxu0 0
          %777 = vmatprep.subr.bf16.mxu0 0
          %778 = vmatpush1.bf16.xpose.msra.mxu0 0
          %779 = vmatprep.subr.bf16.mxu0 0
          %780 = vmatpush1.bf16.xpose.msra.mxu0 0
          %781 = vmatprep.subr.bf16.mxu0 0
          %782 = vmatpush1.bf16.xpose.msra.mxu0 0
          %783 = vmatprep.subr.bf16.mxu0 0
          %784 = vmatpush1.bf16.xpose.msra.mxu0 0
          %785 = vmatprep.subr.bf16.mxu0 0
          %786 = vmatpush1.bf16.xpose.msra.mxu0 0
          %787 = vmatprep.subr.bf16.mxu0 0
          %788 = vmatpush1.bf16.xpose.msra.mxu0 0
          %789 = vmatprep.subr.bf16.mxu0 0
          %790 = vmatpush1.bf16.xpose.msra.mxu0 0
          %791 = vmatprep.subr.bf16.mxu0 0
          %792 = vmatpush1.bf16.xpose.msra.mxu0 0
          %793 = vmatprep.subr.bf16.mxu0 0
          %794 = vmatpush1.bf16.xpose.msra.mxu0 0
          %795 = vmatprep.subr.bf16.mxu0 0
          %796 = vmatpush1.bf16.xpose.msra.mxu0 0
          %797 = vmatprep.subr.bf16.mxu0 0
          %798 = vmatpush1.bf16.xpose.msra.mxu0 0
          %799 = vmatprep.mubr.bf16.mxu0 0
          %800 = vmatmul.mubr.bf16.gmra.mrb[0].mxu0 %v762
          %v801 = vpop.f32.mrb[0].mxu0
          %v802 = vadd.f32 0.0, %v801
          %v803 = vpop.f32.mrb[0].mxu0
          %v804 = vpop.f32.mrb[0].mxu0
          %v805 = vpop.f32.mrb[0].mxu0
          %806 = vdwg.mxu0
          %v807 = vmul.f32 %v664, 0.35355338
          %v808 = vmul.f32 %v710, 0.35355338
          %v809 = vmul.f32 %v756, 0.35355338
          %v810 = vmul.f32 %v802, 0.35355338
          %v811 = vstv %s613
          %v812 = vadd.s32 %v811, %v593
          %vm813 = vcmp.le.s32.totalorder %v812, %v591
          %v814 = vsel %vm813, 1, 0
          %vm815 = vcmp.eq.s32.totalorder %v814, 1
          %v816 = vsel %vm815, %v807, -1e+30
          %v817 = vsel %vm815, %v808, -1e+30
          %v818 = vsel %vm815, %v809, -1e+30
          %v819 = vsel %vm815, %v810, -1e+30
          %v820 = vsel %vm622, %v816, -inf
          %821 = vmax.xlane.f32.xlu0 %v820
          %v822 = vpop.xlane.xlu0 %821
          %v823 = vsel %vm622, %v817, -inf
          %824 = vmax.xlane.f32.xlu0 %v823
          %v825 = vpop.xlane.xlu0 %824
          %v826 = vsel %vm622, %v818, -inf
          %827 = vmax.xlane.f32.xlu0 %v826
          %v828 = vpop.xlane.xlu0 %827
          %v829 = vsel %vm622, %v819, -inf
          %830 = vmax.xlane.f32.xlu0 %v829
          %v831 = vpop.xlane.xlu0 %830
          %v832 = vmax.f32 %v601, %v822
          %v833 = vmax.f32 %v602, %v825
          %v834 = vmax.f32 %v603, %v828
          %v835 = vmax.f32 %v604, %v831
          %v836 = vsub.f32 %v601, %v832
          %v837 = vsub.f32 %v602, %v833
          %v838 = vsub.f32 %v603, %v834
          %v839 = vsub.f32 %v604, %v835
          %v840 = vmul.f32 %v836, 1.442695
          %v841 = vpow.pop %v840
          %v842 = vmul.f32 %v837, 1.442695
          %v843 = vpow.pop %v842
          %v844 = vmul.f32 %v838, 1.442695
          %v845 = vpow.pop %v844
          %v846 = vmul.f32 %v839, 1.442695
          %v847 = vpow.pop %v846
          %v848 = vsub.f32 %v816, %v832
          %v849 = vsub.f32 %v817, %v833
          %v850 = vsub.f32 %v818, %v834
          %v851 = vsub.f32 %v819, %v835
          %v852 = vmul.f32 %v848, 1.442695
          %v853 = vpow.pop %v852
          %v854 = vmul.f32 %v849, 1.442695
          %v855 = vpow.pop %v854
          %v856 = vmul.f32 %v850, 1.442695
          %v857 = vpow.pop %v856
          %v858 = vmul.f32 %v851, 1.442695
          %v859 = vpow.pop %v858
          %v860 = vmul.f32 %v841, %v605
          %v861 = vmul.f32 %v843, %v606
          %v862 = vmul.f32 %v845, %v607
          %v863 = vmul.f32 %v847, %v608
          %v864 = vsel %vm622, %v853, 0.0
          %865 = vadd.xlane.f32.xlu0 %v864
          %v866 = vpop.xlane.xlu0 %865
          %v867 = vsel %vm622, %v855, 0.0
          %868 = vadd.xlane.f32.xlu0 %v867
          %v869 = vpop.xlane.xlu0 %868
          %v870 = vsel %vm622, %v857, 0.0
          %871 = vadd.xlane.f32.xlu0 %v870
          %v872 = vpop.xlane.xlu0 %871
          %v873 = vsel %vm622, %v859, 0.0
          %874 = vadd.xlane.f32.xlu0 %v873
          %v875 = vpop.xlane.xlu0 %874
          %v876 = vadd.f32 %v860, %v866
          %v877 = vadd.f32 %v861, %v869
          %v878 = vadd.f32 %v862, %v872
          %v879 = vadd.f32 %v863, %v875
          %v880 = vpack.c.bf16 %v853, %v853
          %v881 = vpack.c.bf16 %v855, %v855
          %v882 = vpack.c.bf16 %v857, %v857
          %v883 = vpack.c.bf16 %v859, %v859
          %v885 = vsel %vm622, %v880, 0
          %vm887 = vcmask 1043456
          %v888 = vsel %vm887, %v618, 0
          %890 = vmatprep.subr.bf16.mxu0 0
          %891 = vmatpush1.bf16.msra.mxu0 %v888
          %892 = vmatprep.subr.bf16.mxu0 0
          %893 = vmatpush1.bf16.msra.mxu0 0
          %894 = vmatprep.subr.bf16.mxu0 0
          %895 = vmatpush1.bf16.msra.mxu0 0
          %896 = vmatprep.subr.bf16.mxu0 0
          %897 = vmatpush1.bf16.msra.mxu0 0
          %898 = vmatprep.subr.bf16.mxu0 0
          %899 = vmatpush1.bf16.msra.mxu0 0
          %900 = vmatprep.subr.bf16.mxu0 0
          %901 = vmatpush1.bf16.msra.mxu0 0
          %902 = vmatprep.subr.bf16.mxu0 0
          %903 = vmatpush1.bf16.msra.mxu0 0
          %904 = vmatprep.subr.bf16.mxu0 0
          %905 = vmatpush1.bf16.msra.mxu0 0
          %906 = vmatprep.subr.bf16.mxu0 0
          %907 = vmatpush1.bf16.msra.mxu0 0
          %908 = vmatprep.subr.bf16.mxu0 0
          %909 = vmatpush1.bf16.msra.mxu0 0
          %910 = vmatprep.subr.bf16.mxu0 0
          %911 = vmatpush1.bf16.msra.mxu0 0
          %912 = vmatprep.subr.bf16.mxu0 0
          %913 = vmatpush1.bf16.msra.mxu0 0
          %914 = vmatprep.subr.bf16.mxu0 0
          %915 = vmatpush1.bf16.msra.mxu0 0
          %916 = vmatprep.subr.bf16.mxu0 0
          %917 = vmatpush1.bf16.msra.mxu0 0
          %918 = vmatprep.subr.bf16.mxu0 0
          %919 = vmatpush1.bf16.msra.mxu0 0
          %920 = vmatprep.subr.bf16.mxu0 0
          %921 = vmatpush1.bf16.msra.mxu0 0
          %922 = vmatprep.mubr.bf16.mxu0 0
          %923 = vmatmul.mubr.bf16.gmra.mrb[0].mxu0 %v885
          %v924 = vpop.f32.mrb[0].mxu0
          %v925 = vadd.f32 0.0, %v924
          %v926 = vpop.f32.mrb[0].mxu0
          %v927 = vpop.f32.mrb[0].mxu0
          %v928 = vpop.f32.mrb[0].mxu0
          %929 = vdwg.mxu0
          %v931 = vsel %vm622, %v881, 0
          %v933 = vsel %vm887, %v619, 0
          %935 = vmatprep.subr.bf16.mxu0 0
          %936 = vmatpush1.bf16.msra.mxu0 %v933
          %937 = vmatprep.subr.bf16.mxu0 0
          %938 = vmatpush1.bf16.msra.mxu0 0
          %939 = vmatprep.subr.bf16.mxu0 0
          %940 = vmatpush1.bf16.msra.mxu0 0
          %941 = vmatprep.subr.bf16.mxu0 0
          %942 = vmatpush1.bf16.msra.mxu0 0
          %943 = vmatprep.subr.bf16.mxu0 0
          %944 = vmatpush1.bf16.msra.mxu0 0
          %945 = vmatprep.subr.bf16.mxu0 0
          %946 = vmatpush1.bf16.msra.mxu0 0
          %947 = vmatprep.subr.bf16.mxu0 0
          %948 = vmatpush1.bf16.msra.mxu0 0
          %949 = vmatprep.subr.bf16.mxu0 0
          %950 = vmatpush1.bf16.msra.mxu0 0
          %951 = vmatprep.subr.bf16.mxu0 0
          %952 = vmatpush1.bf16.msra.mxu0 0
          %953 = vmatprep.subr.bf16.mxu0 0
          %954 = vmatpush1.bf16.msra.mxu0 0
          %955 = vmatprep.subr.bf16.mxu0 0
          %956 = vmatpush1.bf16.msra.mxu0 0
          %957 = vmatprep.subr.bf16.mxu0 0
          %958 = vmatpush1.bf16.msra.mxu0 0
          %959 = vmatprep.subr.bf16.mxu0 0
          %960 = vmatpush1.bf16.msra.mxu0 0
          %961 = vmatprep.subr.bf16.mxu0 0
          %962 = vmatpush1.bf16.msra.mxu0 0
          %963 = vmatprep.subr.bf16.mxu0 0
          %964 = vmatpush1.bf16.msra.mxu0 0
          %965 = vmatprep.subr.bf16.mxu0 0
          %966 = vmatpush1.bf16.msra.mxu0 0
          %967 = vmatprep.mubr.bf16.mxu0 0
          %968 = vmatmul.mubr.bf16.gmra.mrb[0].mxu0 %v931
          %v969 = vpop.f32.mrb[0].mxu0
          %v970 = vadd.f32 0.0, %v969
          %v971 = vpop.f32.mrb[0].mxu0
          %v972 = vpop.f32.mrb[0].mxu0
          %v973 = vpop.f32.mrb[0].mxu0
          %974 = vdwg.mxu0
          %v976 = vsel %vm622, %v882, 0
          %v978 = vsel %vm887, %v620, 0
          %980 = vmatprep.subr.bf16.mxu0 0
          %981 = vmatpush1.bf16.msra.mxu0 %v978
          %982 = vmatprep.subr.bf16.mxu0 0
          %983 = vmatpush1.bf16.msra.mxu0 0
          %984 = vmatprep.subr.bf16.mxu0 0
          %985 = vmatpush1.bf16.msra.mxu0 0
          %986 = vmatprep.subr.bf16.mxu0 0
          %987 = vmatpush1.bf16.msra.mxu0 0
          %988 = vmatprep.subr.bf16.mxu0 0
          %989 = vmatpush1.bf16.msra.mxu0 0
          %990 = vmatprep.subr.bf16.mxu0 0
          %991 = vmatpush1.bf16.msra.mxu0 0
          %992 = vmatprep.subr.bf16.mxu0 0
          %993 = vmatpush1.bf16.msra.mxu0 0
          %994 = vmatprep.subr.bf16.mxu0 0
          %995 = vmatpush1.bf16.msra.mxu0 0
          %996 = vmatprep.subr.bf16.mxu0 0
          %997 = vmatpush1.bf16.msra.mxu0 0
          %998 = vmatprep.subr.bf16.mxu0 0
          %999 = vmatpush1.bf16.msra.mxu0 0
          %1000 = vmatprep.subr.bf16.mxu0 0
          %1001 = vmatpush1.bf16.msra.mxu0 0
          %1002 = vmatprep.subr.bf16.mxu0 0
          %1003 = vmatpush1.bf16.msra.mxu0 0
          %1004 = vmatprep.subr.bf16.mxu0 0
          %1005 = vmatpush1.bf16.msra.mxu0 0
          %1006 = vmatprep.subr.bf16.mxu0 0
          %1007 = vmatpush1.bf16.msra.mxu0 0
          %1008 = vmatprep.subr.bf16.mxu0 0
          %1009 = vmatpush1.bf16.msra.mxu0 0
          %1010 = vmatprep.subr.bf16.mxu0 0
          %1011 = vmatpush1.bf16.msra.mxu0 0
          %1012 = vmatprep.mubr.bf16.mxu0 0
          %1013 = vmatmul.mubr.bf16.gmra.mrb[0].mxu0 %v976
          %v1014 = vpop.f32.mrb[0].mxu0
          %v1015 = vadd.f32 0.0, %v1014
          %v1016 = vpop.f32.mrb[0].mxu0
          %v1017 = vpop.f32.mrb[0].mxu0
          %v1018 = vpop.f32.mrb[0].mxu0
          %1019 = vdwg.mxu0
          %v1021 = vsel %vm622, %v883, 0
          %v1023 = vsel %vm887, %v621, 0
          %1025 = vmatprep.subr.bf16.mxu0 0
          %1026 = vmatpush1.bf16.msra.mxu0 %v1023
          %1027 = vmatprep.subr.bf16.mxu0 0
          %1028 = vmatpush1.bf16.msra.mxu0 0
          %1029 = vmatprep.subr.bf16.mxu0 0
          %1030 = vmatpush1.bf16.msra.mxu0 0
          %1031 = vmatprep.subr.bf16.mxu0 0
          %1032 = vmatpush1.bf16.msra.mxu0 0
          %1033 = vmatprep.subr.bf16.mxu0 0
          %1034 = vmatpush1.bf16.msra.mxu0 0
          %1035 = vmatprep.subr.bf16.mxu0 0
          %1036 = vmatpush1.bf16.msra.mxu0 0
          %1037 = vmatprep.subr.bf16.mxu0 0
          %1038 = vmatpush1.bf16.msra.mxu0 0
          %1039 = vmatprep.subr.bf16.mxu0 0
          %1040 = vmatpush1.bf16.msra.mxu0 0
          %1041 = vmatprep.subr.bf16.mxu0 0
          %1042 = vmatpush1.bf16.msra.mxu0 0
          %1043 = vmatprep.subr.bf16.mxu0 0
          %1044 = vmatpush1.bf16.msra.mxu0 0
          %1045 = vmatprep.subr.bf16.mxu0 0
          %1046 = vmatpush1.bf16.msra.mxu0 0
          %1047 = vmatprep.subr.bf16.mxu0 0
          %1048 = vmatpush1.bf16.msra.mxu0 0
          %1049 = vmatprep.subr.bf16.mxu0 0
          %1050 = vmatpush1.bf16.msra.mxu0 0
          %1051 = vmatprep.subr.bf16.mxu0 0
          %1052 = vmatpush1.bf16.msra.mxu0 0
          %1053 = vmatprep.subr.bf16.mxu0 0
          %1054 = vmatpush1.bf16.msra.mxu0 0
          %1055 = vmatprep.subr.bf16.mxu0 0
          %1056 = vmatpush1.bf16.msra.mxu0 0
          %1057 = vmatprep.mubr.bf16.mxu0 0
          %1058 = vmatmul.mubr.bf16.gmra.mrb[0].mxu0 %v1021
          %v1059 = vpop.f32.mrb[0].mxu0
          %v1060 = vadd.f32 0.0, %v1059
          %v1061 = vpop.f32.mrb[0].mxu0
          %v1062 = vpop.f32.mrb[0].mxu0
          %v1063 = vpop.f32.mrb[0].mxu0
          %1064 = vdwg.mxu0
          %v1065 = vmul.f32 %v841, %v609
          %v1066 = vmul.f32 %v843, %v610
          %v1067 = vmul.f32 %v845, %v611
          %v1068 = vmul.f32 %v847, %v612
          %v1069 = vadd.f32 %v1065, %v925
          %v1070 = vadd.f32 %v1066, %v970
          %v1071 = vadd.f32 %v1067, %v1015
          %v1072 = vadd.f32 %v1068, %v1060
        $region84: #{tpu_custom_call.1} parent=71 // loop_footer
          %s598 = sadd.s32 %s596, 1
        $region85: #{tpu_custom_call.1} parent=71 // loop_footer_branch
          %595 = sbr.rel target = $region81
        $region86: #{tpu_custom_call.1} parent=71 // loop_exit
          _
        %v1073 = vrcp.pop %v605
        %v1074 = vrcp.pop %v606
        %v1075 = vrcp.pop %v607
        %v1076 = vrcp.pop %v608
        %v1077 = vmul.f32 %v609, %v1073
        %v1078 = vmul.f32 %v610, %v1074
        %v1079 = vmul.f32 %v611, %v1075
        %v1080 = vmul.f32 %v612, %v1076
        %v1081 = vpack.c.bf16 %v1077, %v1077
        %v1082 = vpack.c.bf16 %v1078, %v1078
        %v1083 = vpack.c.bf16 %v1079, %v1079
        %v1084 = vpack.c.bf16 %v1080, %v1080
        %vm1085 = vcmask 60416
        %1086 = vst.msk [vmem:[#allocation3] sm:$0xf] %vm1085, %v1081
        %1087 = vst.msk [vmem:[#allocation3 + $0x4] sm:$0xf] %vm1085, %v1082
        %1088 = vst.msk [vmem:[#allocation3 + $0x8] sm:$0xf] %vm1085, %v1083
        %1089 = vst.msk [vmem:[#allocation3 + $0xc] sm:$0xf] %vm1085, %v1084
        %v1090 = vld [vmem:[%s6] sm:$0x1]
        %v1092 = vlaneseq
        %v1093 = vshrl.u32 %v1092, 7
        %v1094 = vsub.s32 0, %v1093
        %v1095 = vrot.slane %v1090, %v1094
        %v1097 = vadd.f32 %v463, %v1095
        loop: start=0, step=1, limit=4
        $region87: #{tpu_custom_call.1} parent=71 // loop_pre_header
          _
        $region88: #{tpu_custom_call.1} parent=71 // loop_header
          %s1099 = sphi 0, %s1103
          %p1100 = scmp.ge.s32.totalorder %s1099, 4
          %v1104 = vphi %v1097, %v1159
        $region89: #{tpu_custom_call.1} parent=71 // loop_header_branch
          %1102 = sbr.rel (%p1100) target = $region93
        $region90: #{tpu_custom_call.1} parent=71 // loop_body
          %s1105 = smul.addr %s1099, 4
          %s1106 = scalar_lea.vmem [#allocation3], %s1105
          %v1107 = vld [vmem:[%s1106] sm:$0xf]
          %s1108 = smul.addr %s1099, 4
          %s1109 = scalar_lea.vmem %s5, %s1108
          %v1110 = vld [vmem:[%s1109] sm:$0xf]
          %vm1111 = vcmask 64512
          %v1113 = vsel %vm1111, %v1107, 0
          %vm1115 = vcmask 1043456
          %v1117 = vsel %vm1115, %v1110, 0
          %1119 = vmatprep.subr.bf16.mxu0 0
          %1120 = vmatpush1.bf16.msra.mxu0 %v1117
          %1121 = vmatprep.subr.bf16.mxu0 0
          %1122 = vmatpush1.bf16.msra.mxu0 0
          %1123 = vmatprep.subr.bf16.mxu0 0
          %1124 = vmatpush1.bf16.msra.mxu0 0
          %1125 = vmatprep.subr.bf16.mxu0 0
          %1126 = vmatpush1.bf16.msra.mxu0 0
          %1127 = vmatprep.subr.bf16.mxu0 0
          %1128 = vmatpush1.bf16.msra.mxu0 0
          %1129 = vmatprep.subr.bf16.mxu0 0
          %1130 = vmatpush1.bf16.msra.mxu0 0
          %1131 = vmatprep.subr.bf16.mxu0 0
          %1132 = vmatpush1.bf16.msra.mxu0 0
          %1133 = vmatprep.subr.bf16.mxu0 0
          %1134 = vmatpush1.bf16.msra.mxu0 0
          %1135 = vmatprep.subr.bf16.mxu0 0
          %1136 = vmatpush1.bf16.msra.mxu0 0
          %1137 = vmatprep.subr.bf16.mxu0 0
          %1138 = vmatpush1.bf16.msra.mxu0 0
          %1139 = vmatprep.subr.bf16.mxu0 0
          %1140 = vmatpush1.bf16.msra.mxu0 0
          %1141 = vmatprep.subr.bf16.mxu0 0
          %1142 = vmatpush1.bf16.msra.mxu0 0
          %1143 = vmatprep.subr.bf16.mxu0 0
          %1144 = vmatpush1.bf16.msra.mxu0 0
          %1145 = vmatprep.subr.bf16.mxu0 0
          %1146 = vmatpush1.bf16.msra.mxu0 0
          %1147 = vmatprep.subr.bf16.mxu0 0
          %1148 = vmatpush1.bf16.msra.mxu0 0
          %1149 = vmatprep.subr.bf16.mxu0 0
          %1150 = vmatpush1.bf16.msra.mxu0 0
          %1151 = vmatprep.mubr.bf16.mxu0 0
          %1152 = vmatmul.mubr.bf16.gmra.mrb[0].mxu0 %v1113
          %v1153 = vpop.f32.mrb[0].mxu0
          %v1154 = vadd.f32 0.0, %v1153
          %v1155 = vpop.f32.mrb[0].mxu0
          %v1156 = vpop.f32.mrb[0].mxu0
          %v1157 = vpop.f32.mrb[0].mxu0
          %1158 = vdwg.mxu0
          %v1159 = vadd.f32 %v1104, %v1154
        $region91: #{tpu_custom_call.1} parent=71 // loop_footer
          %s1103 = sadd.s32 1, %s1099
        $region92: #{tpu_custom_call.1} parent=71 // loop_footer_branch
          %1098 = sbr.rel target = $region88
        $region93: #{tpu_custom_call.1} parent=71 // loop_exit
          _
        %v1160 = vld [vmem:[%s7] sm:$0x1]
        %v1161 = vld [vmem:[%s8] sm:$0x1]
        %v1162 = vsel %vm466, %v1104, 0.0
        %1163 = vadd.xlane.f32.xlu0 %v1162
        %v1164 = vpop.xlane.xlu0 %1163
        %v1165 = vmul.f32 %v1164, %v470
        %v1166 = vsub.f32 %v1104, %v1165
        %v1167 = vmul.f32 %v1166, %v1166
        %v1168 = vsel %vm466, %v1167, 0.0
        %1169 = vadd.xlane.f32.xlu0 %v1168
        %v1170 = vpop.xlane.xlu0 %1169
        %v1171 = vmul.f32 %v1170, %v470
        %v1172 = vadd.f32 %v1171, 1e-05
        %v1173 = vrsqrt.pop %v1172
        %v1174 = vmul.f32 %v1166, %v1173
        %v1176 = vlaneseq
        %v1177 = vshrl.u32 %v1176, 7
        %v1178 = vsub.s32 0, %v1177
        %v1179 = vrot.slane %v1160, %v1178
        %v1181 = vmul.f32 %v1174, %v1179
        %v1183 = vlaneseq
        %v1184 = vshrl.u32 %v1183, 7
        %v1185 = vsub.s32 0, %v1184
        %v1186 = vrot.slane %v1161, %v1185
        %v1188 = vadd.f32 %v1181, %v1186
        %v1189 = vpack.c.bf16 %v1188, %v1188
        %v1190 = vld [vmem:[%s9] sm:$0xf]
        %v1191 = vld [vmem:[%s9 + $0x4] sm:$0xf]
        %v1192 = vld [vmem:[%s9 + $0x8] sm:$0xf]
        %v1193 = vld [vmem:[%s9 + $0xc] sm:$0xf]
        %v1194 = vld [vmem:[%s10] sm:$0x1]
        %v1196 = vlaneseq
        %v1197 = vshrl.u32 %v1196, 7
        %v1198 = vsub.s32 0, %v1197
        %v1199 = vrot.slane %v1194, %v1198
        %v1205 = vunpack.c.l.b16 %v1190
        %v1206 = vunpack.c.l.b16 %v1191
        %v1207 = vunpack.c.l.b16 %v1192
        %v1208 = vunpack.c.l.b16 %v1193
        %v1209 = vpack.c.b16 %v1206, %v1205
        %v1210 = vpack.c.b16 %v1208, %v1207
        %v1214 = vsel %vm466, %v1189, 0
        %1216 = vmatprep.subr.bf16.mxu0 0
        %1217 = vmatpush1.bf16.msra.mxu0 %v1209
        %1218 = vmatprep.subr.bf16.mxu0 0
        %1219 = vmatpush1.bf16.msra.mxu0 %v1210
        %1220 = vmatprep.subr.bf16.mxu0 0
        %1221 = vmatpush1.bf16.msra.mxu0 0
        %1222 = vmatprep.subr.bf16.mxu0 0
        %1223 = vmatpush1.bf16.msra.mxu0 0
        %1224 = vmatprep.subr.bf16.mxu0 0
        %1225 = vmatpush1.bf16.msra.mxu0 0
        %1226 = vmatprep.subr.bf16.mxu0 0
        %1227 = vmatpush1.bf16.msra.mxu0 0
        %1228 = vmatprep.subr.bf16.mxu0 0
        %1229 = vmatpush1.bf16.msra.mxu0 0
        %1230 = vmatprep.subr.bf16.mxu0 0
        %1231 = vmatpush1.bf16.msra.mxu0 0
        %1232 = vmatprep.subr.bf16.mxu0 0
        %1233 = vmatpush1.bf16.msra.mxu0 0
        %1234 = vmatprep.subr.bf16.mxu0 0
        %1235 = vmatpush1.bf16.msra.mxu0 0
        %1236 = vmatprep.subr.bf16.mxu0 0
        %1237 = vmatpush1.bf16.msra.mxu0 0
        %1238 = vmatprep.subr.bf16.mxu0 0
        %1239 = vmatpush1.bf16.msra.mxu0 0
        %1240 = vmatprep.subr.bf16.mxu0 0
        %1241 = vmatpush1.bf16.msra.mxu0 0
        %1242 = vmatprep.subr.bf16.mxu0 0
        %1243 = vmatpush1.bf16.msra.mxu0 0
        %1244 = vmatprep.subr.bf16.mxu0 0
        %1245 = vmatpush1.bf16.msra.mxu0 0
        %1246 = vmatprep.subr.bf16.mxu0 0
        %1247 = vmatpush1.bf16.msra.mxu0 0
        %1248 = vmatprep.mubr.bf16.mxu0 0
        %1249 = vmatmul.mubr.bf16.gmra.mrb[0].mxu0 %v1214
        %v1250 = vpop.f32.mrb[0].mxu0
        %v1251 = vadd.f32 %v1199, %v1250
        %v1252 = vpop.f32.mrb[0].mxu0
        %v1253 = vpop.f32.mrb[0].mxu0
        %v1254 = vpop.f32.mrb[0].mxu0
        %1255 = vdwg.mxu0
        %v1256 = vmul.f32 %v1251, %v1251
        %v1257 = vmul.f32 %v1256, 0.035677407
        %v1258 = vadd.f32 %v1257, 0.7978846
        %v1259 = vmul.f32 %v1251, %v1258
        %v1260 = vmul.f32 %v1251, 0.5
        %v1261 = vtanh.pop %v1259
        %v1262 = vadd.f32 %v1261, 1.0
        %v1263 = vmul.f32 %v1260, %v1262
        %v1264 = vpack.c.bf16 %v1263, %v1263
        %v1265 = vld [vmem:[%s11] sm:$0xf]
        %v1266 = vld [vmem:[%s11 + $0x4] sm:$0xf]
        %v1267 = vld [vmem:[%s11 + $0x8] sm:$0xf]
        %v1268 = vld [vmem:[%s11 + $0xc] sm:$0xf]
        %v1269 = vld [vmem:[%s11 + $0x10] sm:$0xf]
        %v1270 = vld [vmem:[%s11 + $0x14] sm:$0xf]
        %v1271 = vld [vmem:[%s11 + $0x18] sm:$0xf]
        %v1272 = vld [vmem:[%s11 + $0x1c] sm:$0xf]
        %v1273 = vld [vmem:[%s11 + $0x20] sm:$0xf]
        %v1274 = vld [vmem:[%s11 + $0x24] sm:$0xf]
        %v1275 = vld [vmem:[%s11 + $0x28] sm:$0xf]
        %v1276 = vld [vmem:[%s11 + $0x2c] sm:$0xf]
        %v1277 = vld [vmem:[%s11 + $0x30] sm:$0xf]
        %v1278 = vld [vmem:[%s11 + $0x34] sm:$0xf]
        %v1279 = vld [vmem:[%s11 + $0x38] sm:$0xf]
        %v1280 = vld [vmem:[%s11 + $0x3c] sm:$0xf]
        %v1281 = vld [vmem:[%s12] sm:$0x1]
        %v1283 = vlaneseq
        %v1284 = vshrl.u32 %v1283, 7
        %v1285 = vsub.s32 0, %v1284
        %v1286 = vrot.slane %v1281, %v1285
        %v1304 = vunpack.c.l.b16 %v1265
        %v1305 = vunpack.c.l.b16 %v1266
        %v1306 = vunpack.c.l.b16 %v1267
        %v1307 = vunpack.c.l.b16 %v1268
        %v1308 = vunpack.c.l.b16 %v1269
        %v1309 = vunpack.c.l.b16 %v1270
        %v1310 = vunpack.c.l.b16 %v1271
        %v1311 = vunpack.c.l.b16 %v1272
        %v1312 = vunpack.c.l.b16 %v1273
        %v1313 = vunpack.c.l.b16 %v1274
        %v1314 = vunpack.c.l.b16 %v1275
        %v1315 = vunpack.c.l.b16 %v1276
        %v1316 = vunpack.c.l.b16 %v1277
        %v1317 = vunpack.c.l.b16 %v1278
        %v1318 = vunpack.c.l.b16 %v1279
        %v1319 = vunpack.c.l.b16 %v1280
        %v1320 = vpack.c.b16 %v1305, %v1304
        %v1321 = vpack.c.b16 %v1307, %v1306
        %v1322 = vpack.c.b16 %v1309, %v1308
        %v1323 = vpack.c.b16 %v1311, %v1310
        %v1324 = vpack.c.b16 %v1313, %v1312
        %v1325 = vpack.c.b16 %v1315, %v1314
        %v1326 = vpack.c.b16 %v1317, %v1316
        %v1327 = vpack.c.b16 %v1319, %v1318
        %1336 = vmatprep.subr.bf16.mxu0 0
        %1337 = vmatpush1.bf16.msra.mxu0 %v1320
        %1338 = vmatprep.subr.bf16.mxu0 0
        %1339 = vmatpush1.bf16.msra.mxu0 %v1321
        %1340 = vmatprep.subr.bf16.mxu0 0
        %1341 = vmatpush1.bf16.msra.mxu0 %v1322
        %1342 = vmatprep.subr.bf16.mxu0 0
        %1343 = vmatpush1.bf16.msra.mxu0 %v1323
        %1344 = vmatprep.subr.bf16.mxu0 0
        %1345 = vmatpush1.bf16.msra.mxu0 %v1324
        %1346 = vmatprep.subr.bf16.mxu0 0
        %1347 = vmatpush1.bf16.msra.mxu0 %v1325
        %1348 = vmatprep.subr.bf16.mxu0 0
        %1349 = vmatpush1.bf16.msra.mxu0 %v1326
        %1350 = vmatprep.subr.bf16.mxu0 0
        %1351 = vmatpush1.bf16.msra.mxu0 %v1327
        %1352 = vmatprep.subr.bf16.mxu0 0
        %1353 = vmatpush1.bf16.msra.mxu0 0
        %1354 = vmatprep.subr.bf16.mxu0 0
        %1355 = vmatpush1.bf16.msra.mxu0 0
        %1356 = vmatprep.subr.bf16.mxu0 0
        %1357 = vmatpush1.bf16.msra.mxu0 0
        %1358 = vmatprep.subr.bf16.mxu0 0
        %1359 = vmatpush1.bf16.msra.mxu0 0
        %1360 = vmatprep.subr.bf16.mxu0 0
        %1361 = vmatpush1.bf16.msra.mxu0 0
        %1362 = vmatprep.subr.bf16.mxu0 0
        %1363 = vmatpush1.bf16.msra.mxu0 0
        %1364 = vmatprep.subr.bf16.mxu0 0
        %1365 = vmatpush1.bf16.msra.mxu0 0
        %1366 = vmatprep.subr.bf16.mxu0 0
        %1367 = vmatpush1.bf16.msra.mxu0 0
        %1368 = vmatprep.mubr.bf16.mxu0 0
        %1369 = vmatmul.mubr.bf16.gmra.mrb[0].mxu0 %v1264
        %v1370 = vpop.f32.mrb[0].mxu0
        %v1371 = vadd.f32 %v1286, %v1370
        %v1372 = vpop.f32.mrb[0].mxu0
        %v1373 = vpop.f32.mrb[0].mxu0
        %v1374 = vpop.f32.mrb[0].mxu0
        %1375 = vdwg.mxu0
        %v1376 = vadd.f32 %v1104, %v1371
        %1377 = vst.msk [vmem:[%s453] sm:$0xff] %vm466, %v1376
        %s1378 = sand.u32 %s329, 1
        %s1379 = scalar_lea.sflag [#allocation5], %s1378
        %s1380 = sand.u32 %s329, 1
        %s1381 = smul.addr %s1380, 8
        %s1382 = scalar_lea.vmem [#allocation4], %s1381
        // Predicated region
        $region94: #{tpu_custom_call.1} parent=71 // pred_check
          %p1383 = pneg %p339
        $region95: #{tpu_custom_call.1} parent=71 // pred_check_branch
          %1385 = sbr.rel (%p1383) target = $region97
        $region96: #{tpu_custom_call.1} parent=71 // pred_region
          %s1387 = ssub.s32 128, 128
          %1388 = vsyncadd %s1379, %s1387
          %s1389 = sadd.s32 %s32, %s31
          %s1390 = smul.addr %s1389, 128
          %s1391 = scalar_lea.hbm %s13, %s1390
          %s1393 = sshll.u32 %s1382, 4
          %s1394 = int_to_ptr.vmem [resolvable:$true] %s1393
          %1396 = dma.vmem_to_hbm [thread:$0]  %s1394, 128, %s1391, %s1379
        $region97: #{tpu_custom_call.1} parent=71 // pred_fallthru
          _
      $region72: #{tpu_custom_call.1} parent=5 // pred_fallthru
        _
      %p1397 = scmp.le.s32.totalorder 2, %s22
      // Predicated region
      $region98: #{tpu_custom_call.1} parent=5 // pred_check
        %p1398 = pneg %p1397
      $region99: #{tpu_custom_call.1} parent=5 // pred_check_branch
        %1400 = sbr.rel (%p1398) target = $region101
      $region100: #{tpu_custom_call.1} parent=5 // pred_region
        %s1401 = ssub.s32 %s22, 2
        // Predicated region
        $region102: #{tpu_custom_call.1} parent=100 // pred_check
          %p1402 = pneg %p345
        $region103: #{tpu_custom_call.1} parent=100 // pred_check_branch
          %1404 = sbr.rel (%p1402) target = $region105
        $region104: #{tpu_custom_call.1} parent=100 // pred_region
          %s1405 = sand.u32 %s330, 1
          %s1406 = scalar_lea.sflag [#allocation5], %s1405
          %s1407 = sand.u32 %s330, 1
          %s1408 = smul.addr %s1407, 8
          %s1409 = scalar_lea.vmem [#allocation4], %s1408
          %1410 = dma.done %s1406, 128
        $region105: #{tpu_custom_call.1} parent=100 // pred_fallthru
          _
      $region101: #{tpu_custom_call.1} parent=5 // pred_fallthru
        _
    $region6: #{tpu_custom_call.1} parent=1 // loop_footer
      %s26 = sadd.s32 1, %s22
    $region7: #{tpu_custom_call.1} parent=1 // loop_footer_branch
      %21 = sbr.rel target = $region3
    $region8: #{tpu_custom_call.1} parent=1 // loop_exit
      _
    %1411 = vsyncpa [#allocation5], 1
    %s1412 = scalar_lea.sflag [#allocation5], 1
    %1413 = vsyncpa %s1412, 1

</llo_original>
